<compile_context>
chip_gen: v7x
topology: tpu7x:2x2x1
jax: 0.10.0
libtpu: 0.0.40
codegen_flags: <defaults>
</compile_context>

<pallas_src>
import functools

import jax
import jax.numpy as jnp
import numpy as np
from jax.experimental import pallas as pl
from jax.experimental.pallas import tpu as pltpu


def _round_up(x, m):
    return (x + m - 1) // m * m


def _fused_conv3d_stack_kernel(x_ref, w_ref, mask_ref, o_ref, buf_ref, col_ref, *,
                               num_layers, cmax, cout, offsets, shift, p_lanes):
    """Runs the whole Conv3d stack for one batch element (stride == 1).

    Layout: channels on sublanes, flattened canvas-spatial on lanes.
      x_ref    : (1, cmax, P)          canvas-embedded, channel-padded input
      w_ref    : (L, cout, taps*cmax)  flattened weights (VMEM-resident, constant map)
      mask_ref : (L, 1, P)             interior masks (1.0 inside next layer's box)
      o_ref    : (1, cout, P)          lane-dense output on the canvas grid
      buf_ref  : (cmax, P + margin)    activation canvas scratch (f32)
      col_ref  : (taps*cmax, P)        im2col scratch (f32)
    """
    # Zero the canvas ONCE (review item 1). Halos / channel tails afterwards are
    # kept zero by the masked writeback, never by another full-buffer zero fill.
    buf_ref[...] = jnp.zeros_like(buf_ref)
    # Dense channels-on-sublanes fill of the canvas base.
    buf_ref[0:cmax, shift:shift + p_lanes] = x_ref[0].astype(buf_ref.dtype)

    for layer in range(num_layers):
        # ---- im2col: one lane-shifted dense (cmax, P) copy per kernel tap ----
        # (the lane shift is handled by Mosaic's offset slicing / XLU rotates,
        #  which are idle slots in this kernel)
        for t, off in enumerate(offsets):
            col_ref[t * cmax:(t + 1) * cmax, :] = buf_ref[:, off:off + p_lanes]

        # ---- one MXU matmul per layer: (cout, taps*cmax) @ (taps*cmax, P) ----
        # emits (cout, P) directly -> no post-matmul transpose (review item 3).
        out = jnp.dot(w_ref[layer], col_ref[...],
                      preferred_element_type=jnp.float32)          # (cout, P)

        if layer + 1 < num_layers:
            # Masked writeback == next layer's zero-padded input. Because the
            # tap offsets are "centered", the output already sits at the next
            # layer's padded coordinates; the mask zeroes halo + lane tail.
            buf_ref[0:cout, shift:shift + p_lanes] = out * mask_ref[layer]
        else:
            # lane-dense store (P is a multiple of 128 -> unmasked vst)
            o_ref[0] = out.astype(o_ref.dtype)


def conv3d_stack_pallas(x_ncdhw, weights, *, kernel_size, stride=1, padding=1,
                        dilation=1):
    """Applies the whole stack of bias-free Conv3d layers in one pallas_call.

    x_ncdhw : (N, Cin, D, H, W)  (PyTorch layout)
    weights : list of (Cout, Cin_l, K, K, K)
    """
    # TODO(synk): strided output extraction inside the kernel not implemented.
    assert stride == 1
    num_layers = len(weights)
    n, cin0, d0, h0, w0 = x_ncdhw.shape
    cout = weights[0].shape[0]
    assert all(wt.shape[0] == cout for wt in weights)
    k = kernel_size
    taps = k ** 3
    dil = dilation
    p = padding

    # per-layer activation spatial shapes (stride == 1)
    spatial = [(d0, h0, w0)]
    for _ in range(num_layers):
        spatial.append(tuple(s + 2 * p - dil * (k - 1) for s in spatial[-1]))
    assert all(s > 0 for dims in spatial for s in dims)

    # One fixed flat "canvas": max padded extents over the stack; its strides are
    # shared by every layer so the inter-layer writeback is a single masked shift.
    dc = max(s[0] + 2 * p for s in spatial[:-1])
    hc = max(s[1] + 2 * p for s in spatial[:-1])
    wc = max(s[2] + 2 * p for s in spatial[:-1])
    pc = dc * hc * wc
    p_lanes = _round_up(pc, 128)                      # lane-dense extent

    cmax = max([cin0] + [wt.shape[1] for wt in weights] + [cout])

    # Flat-canvas tap offsets, "centered" so a layer's output lands directly at the
    # next layer's padded coordinates (shift = flat offset of padded coord (p,p,p)).
    offsets = tuple(kd * dil * hc * wc + kh * dil * wc + kw * dil
                    for kd in range(k) for kh in range(k) for kw in range(k))
    shift = p * (hc * wc + wc + 1)
    buf_len = p_lanes + max(max(offsets), shift)

    # weights -> (L, cout, taps*cmax), channel-padded along cin so every layer shares
    # one flattened contraction length (padded rows multiply zero canvas channels).
    w_flat = []
    for wt in weights:
        cin_l = wt.shape[1]
        wk = jnp.transpose(wt, (0, 2, 3, 4, 1))               # (cout, k, k, k, cin)
        if cin_l < cmax:
            wk = jnp.pad(wk, ((0, 0), (0, 0), (0, 0), (0, 0), (0, cmax - cin_l)))
        w_flat.append(wk.reshape(cout, taps * cmax))
    w_stack = jnp.stack(w_flat, axis=0)                       # (L, cout, taps*cmax)

    # Interior masks (host-built, resident in VMEM): 1.0 where a canvas position is
    # inside layer (l+1)'s valid padded-interior box, 0.0 in halos / lane tail.
    dd = np.arange(dc)[:, None, None]
    hh = np.arange(hc)[None, :, None]
    ww = np.arange(wc)[None, None, :]
    masks = []
    for l in range(num_layers):
        do_l, ho_l, wo_l = spatial[l + 1]
        m = ((dd >= p) & (dd < p + do_l) &
             (hh >= p) & (hh < p + ho_l) &
             (ww >= p) & (ww < p + wo_l)).astype(np.float32).reshape(pc)
        masks.append(np.pad(m, (0, p_lanes - pc)))
    mask_stack = jnp.asarray(np.stack(masks)[:, None, :])     # (L, 1, P)

    # Canvas-embed the input on the host (one tiny XLA pad) so the kernel gets a
    # lane-dense, channels-on-sublanes (cmax, P) block with a dense HBM->VMEM DMA.
    x_pad = jnp.pad(
        x_ncdhw.astype(jnp.float32),
        ((0, 0), (0, cmax - cin0),
         (p, dc - d0 - p), (p, hc - h0 - p), (p, wc - w0 - p)))
    x_flat = x_pad.reshape(n, cmax, pc)
    if p_lanes > pc:
        x_flat = jnp.pad(x_flat, ((0, 0), (0, 0), (0, p_lanes - pc)))

    kernel = functools.partial(
        _fused_conv3d_stack_kernel,
        num_layers=num_layers, cmax=cmax, cout=cout,
        offsets=offsets, shift=shift, p_lanes=p_lanes)

    out = pl.pallas_call(
        kernel,
        out_shape=jax.ShapeDtypeStruct((n, cout, p_lanes), jnp.float32),
        grid=(n,),
        in_specs=[
            pl.BlockSpec((1, cmax, p_lanes), lambda i: (i, 0, 0)),
            pl.BlockSpec((num_layers, cout, taps * cmax), lambda i: (0, 0, 0)),
            pl.BlockSpec((num_layers, 1, p_lanes), lambda i: (0, 0, 0)),
        ],
        out_specs=pl.BlockSpec((1, cout, p_lanes), lambda i: (i, 0, 0)),
        scratch_shapes=[
            pltpu.VMEM((cmax, buf_len), jnp.float32),          # activation canvas
            pltpu.VMEM((taps * cmax, p_lanes), jnp.float32),   # im2col columns
        ],
        compiler_params=pltpu.CompilerParams(
            dimension_semantics=("parallel",)),
    )(x_flat, w_stack, mask_stack)

    # canvas -> NCDHW: slice out the final layer's interior (cheap XLA glue)
    d_l, h_l, w_l = spatial[-1]
    out5 = out[:, :, :pc].reshape(n, cout, dc, hc, wc)
    return out5[:, :, p:p + d_l, p:p + h_l, p:p + w_l].astype(x_ncdhw.dtype)


class Conv3dTestPallas:
    """Mirror of Conv3dTestTorch: num_layers bias-free Conv3d layers applied sequentially."""

    def __init__(self, num_layers, ndim, shape, in_channels, out_channels,
                 kernel_size, stride, padding, dilation, key):
        assert ndim == 3
        self.shape = shape
        self.kernel_size = kernel_size
        self.stride = stride
        self.padding = padding
        self.dilation = dilation
        self.weights = []
        cin = in_channels
        for _ in range(num_layers):
            key, sub = jax.random.split(key)
            # deterministic init (kaiming-uniform-ish bound, bias-free like nn.Conv3d)
            fan_in = cin * kernel_size ** 3
            bound = 1.0 / np.sqrt(fan_in)
            w = jax.random.uniform(
                sub, (out_channels, cin, kernel_size, kernel_size, kernel_size),
                dtype=jnp.float32, minval=-bound, maxval=bound)
            self.weights.append(w)
            cin = out_channels

    def __call__(self, x_ncdhw):
        return conv3d_stack_pallas(
            x_ncdhw, self.weights, kernel_size=self.kernel_size,
            stride=self.stride, padding=self.padding, dilation=self.dilation)


def _reference(x_ncdhw, weights, stride, padding, dilation):
    """Pure-JAX reference via lax.conv_general_dilated (NCDHW, matching PyTorch)."""
    y = x_ncdhw
    for w in weights:
        y = jax.lax.conv_general_dilated(
            y, w,
            window_strides=(stride,) * 3,
            padding=[(padding, padding)] * 3,
            rhs_dilation=(dilation,) * 3,
            dimension_numbers=("NCDHW", "OIDHW", "NCDHW"),
        )
    return y


if __name__ == "__main__":
    # Small config consistent with the module's constructor signature.
    num_layers = 2
    ndim = 3
    shape = (8, 8, 8)          # D, H, W
    in_channels = 4
    out_channels = 8
    kernel_size = 3
    stride = 1
    padding = 1
    dilation = 1
    batch = 2

    key = jax.random.PRNGKey(0)
    key, xkey = jax.random.split(key)

    model = Conv3dTestPallas(
        num_layers, ndim, shape, in_channels, out_channels,
        kernel_size, stride, padding, dilation, key,
    )

    x = jax.random.normal(
        xkey, (batch, in_channels, *shape), dtype=jnp.float32
    )  # NCDHW like PyTorch

    out = model(x)
    out = jax.block_until_ready(out)

    ref = jax.block_until_ready(
        _reference(x, model.weights, stride, padding, dilation)
    )
    np.testing.assert_allclose(np.asarray(out), np.asarray(ref), rtol=1e-4, atol=1e-4)

    print("KERNEL_OK")
</pallas_src>

<mosaic_0001>
module attributes {stable_mosaic.version = 11 : i64} {
  func.func @_fused_conv3d_stack_kernel(%arg0: i32, %arg1: memref<1x8x1024xf32, #tpu.memory_space<vmem>>, %arg2: memref<2x8x216xf32, #tpu.memory_space<vmem>>, %arg3: memref<2x1x1024xf32, #tpu.memory_space<vmem>>, %arg4: memref<1x8x1024xf32, #tpu.memory_space<vmem>>, %arg5: memref<8x1246xf32, #tpu.memory_space<vmem>>, %arg6: memref<216x1024xf32, #tpu.memory_space<vmem>>) attributes {dimension_semantics = [#tpu.dimension_semantics<parallel>], iteration_bounds = array<i64: 2>, scalar_prefetch = 0 : i64, scratch_operands = 2 : i64, tpu.core_type = #tpu.core_type<tc>, window_params = [{transform_indices = @transform_0, window_bounds = array<i64: 1, 8, 1024>}, {pipeline_mode = #tpu.pipeline_mode<synchronous>, transform_indices = @transform_1, window_bounds = array<i64: 2, 8, 216>}, {pipeline_mode = #tpu.pipeline_mode<synchronous>, transform_indices = @transform_2, window_bounds = array<i64: 2, 1, 1024>}, {transform_indices = @transform_3, window_bounds = array<i64: 1, 8, 1024>}]} {
    %cst = arith.constant 0.000000e+00 : f32
    %0 = vector.broadcast %cst : f32 to vector<8x1246xf32>
    %c0 = arith.constant 0 : index
    %c0_0 = arith.constant 0 : index
    %1 = vector.load %arg5[%c0, %c0_0] : memref<8x1246xf32, #tpu.memory_space<vmem>>, vector<8x1246xf32>
    tpu.vector_store %arg5[%c0, %c0_0], %0 {strides = array<i32>} : memref<8x1246xf32, #tpu.memory_space<vmem>>, vector<8x1246xf32>,
    %c0_1 = arith.constant 0 : index
    %c0_2 = arith.constant 0 : index
    %c0_3 = arith.constant 0 : index
    %2 = vector.load %arg1[%c0_1, %c0_2, %c0_3] : memref<1x8x1024xf32, #tpu.memory_space<vmem>>, vector<1x8x1024xf32>
    %3 = vector.shape_cast %2 : vector<1x8x1024xf32> to vector<8x1024xf32>
    %c0_4 = arith.constant 0 : index
    %c111 = arith.constant 111 : index
    %4 = vector.load %arg5[%c0_4, %c111] : memref<8x1246xf32, #tpu.memory_space<vmem>>, vector<8x1024xf32>
    tpu.vector_store %arg5[%c0_4, %c111], %3 {strides = array<i32>} : memref<8x1246xf32, #tpu.memory_space<vmem>>, vector<8x1024xf32>,
    %c0_5 = arith.constant 0 : index
    %c0_6 = arith.constant 0 : index
    %5 = vector.load %arg5[%c0_5, %c0_6] : memref<8x1246xf32, #tpu.memory_space<vmem>>, vector<8x1024xf32>
    %c0_7 = arith.constant 0 : index
    %c0_8 = arith.constant 0 : index
    %6 = vector.load %arg6[%c0_7, %c0_8] : memref<216x1024xf32, #tpu.memory_space<vmem>>, vector<8x1024xf32>
    tpu.vector_store %arg6[%c0_7, %c0_8], %5 {strides = array<i32>} : memref<216x1024xf32, #tpu.memory_space<vmem>>, vector<8x1024xf32>,
    %c0_9 = arith.constant 0 : index
    %c1 = arith.constant 1 : index
    %7 = vector.load %arg5[%c0_9, %c1] : memref<8x1246xf32, #tpu.memory_space<vmem>>, vector<8x1024xf32>
    %c8 = arith.constant 8 : index
    %c0_10 = arith.constant 0 : index
    %8 = vector.load %arg6[%c8, %c0_10] : memref<216x1024xf32, #tpu.memory_space<vmem>>, vector<8x1024xf32>
    tpu.vector_store %arg6[%c8, %c0_10], %7 {strides = array<i32>} : memref<216x1024xf32, #tpu.memory_space<vmem>>, vector<8x1024xf32>,
    %c0_11 = arith.constant 0 : index
    %c2 = arith.constant 2 : index
    %9 = vector.load %arg5[%c0_11, %c2] : memref<8x1246xf32, #tpu.memory_space<vmem>>, vector<8x1024xf32>
    %c16 = arith.constant 16 : index
    %c0_12 = arith.constant 0 : index
    %10 = vector.load %arg6[%c16, %c0_12] : memref<216x1024xf32, #tpu.memory_space<vmem>>, vector<8x1024xf32>
    tpu.vector_store %arg6[%c16, %c0_12], %9 {strides = array<i32>} : memref<216x1024xf32, #tpu.memory_space<vmem>>, vector<8x1024xf32>,
    %c0_13 = arith.constant 0 : index
    %c10 = arith.constant 10 : index
    %11 = vector.load %arg5[%c0_13, %c10] : memref<8x1246xf32, #tpu.memory_space<vmem>>, vector<8x1024xf32>
    %c24 = arith.constant 24 : index
    %c0_14 = arith.constant 0 : index
    %12 = vector.load %arg6[%c24, %c0_14] : memref<216x1024xf32, #tpu.memory_space<vmem>>, vector<8x1024xf32>
    tpu.vector_store %arg6[%c24, %c0_14], %11 {strides = array<i32>} : memref<216x1024xf32, #tpu.memory_space<vmem>>, vector<8x1024xf32>,
    %c0_15 = arith.constant 0 : index
    %c11 = arith.constant 11 : index
    %13 = vector.load %arg5[%c0_15, %c11] : memref<8x1246xf32, #tpu.memory_space<vmem>>, vector<8x1024xf32>
    %c32 = arith.constant 32 : index
    %c0_16 = arith.constant 0 : index
    %14 = vector.load %arg6[%c32, %c0_16] : memref<216x1024xf32, #tpu.memory_space<vmem>>, vector<8x1024xf32>
    tpu.vector_store %arg6[%c32, %c0_16], %13 {strides = array<i32>} : memref<216x1024xf32, #tpu.memory_space<vmem>>, vector<8x1024xf32>,
    %c0_17 = arith.constant 0 : index
    %c12 = arith.constant 12 : index
    %15 = vector.load %arg5[%c0_17, %c12] : memref<8x1246xf32, #tpu.memory_space<vmem>>, vector<8x1024xf32>
    %c40 = arith.constant 40 : index
    %c0_18 = arith.constant 0 : index
    %16 = vector.load %arg6[%c40, %c0_18] : memref<216x1024xf32, #tpu.memory_space<vmem>>, vector<8x1024xf32>
    tpu.vector_store %arg6[%c40, %c0_18], %15 {strides = array<i32>} : memref<216x1024xf32, #tpu.memory_space<vmem>>, vector<8x1024xf32>,
    %c0_19 = arith.constant 0 : index
    %c20 = arith.constant 20 : index
    %17 = vector.load %arg5[%c0_19, %c20] : memref<8x1246xf32, #tpu.memory_space<vmem>>, vector<8x1024xf32>
    %c48 = arith.constant 48 : index
    %c0_20 = arith.constant 0 : index
    %18 = vector.load %arg6[%c48, %c0_20] : memref<216x1024xf32, #tpu.memory_space<vmem>>, vector<8x1024xf32>
    tpu.vector_store %arg6[%c48, %c0_20], %17 {strides = array<i32>} : memref<216x1024xf32, #tpu.memory_space<vmem>>, vector<8x1024xf32>,
    %c0_21 = arith.constant 0 : index
    %c21 = arith.constant 21 : index
    %19 = vector.load %arg5[%c0_21, %c21] : memref<8x1246xf32, #tpu.memory_space<vmem>>, vector<8x1024xf32>
    %c56 = arith.constant 56 : index
    %c0_22 = arith.constant 0 : index
    %20 = vector.load %arg6[%c56, %c0_22] : memref<216x1024xf32, #tpu.memory_space<vmem>>, vector<8x1024xf32>
    tpu.vector_store %arg6[%c56, %c0_22], %19 {strides = array<i32>} : memref<216x1024xf32, #tpu.memory_space<vmem>>, vector<8x1024xf32>,
    %c0_23 = arith.constant 0 : index
    %c22 = arith.constant 22 : index
    %21 = vector.load %arg5[%c0_23, %c22] : memref<8x1246xf32, #tpu.memory_space<vmem>>, vector<8x1024xf32>
    %c64 = arith.constant 64 : index
    %c0_24 = arith.constant 0 : index
    %22 = vector.load %arg6[%c64, %c0_24] : memref<216x1024xf32, #tpu.memory_space<vmem>>, vector<8x1024xf32>
    tpu.vector_store %arg6[%c64, %c0_24], %21 {strides = array<i32>} : memref<216x1024xf32, #tpu.memory_space<vmem>>, vector<8x1024xf32>,
    %c0_25 = arith.constant 0 : index
    %c100 = arith.constant 100 : index
    %23 = vector.load %arg5[%c0_25, %c100] : memref<8x1246xf32, #tpu.memory_space<vmem>>, vector<8x1024xf32>
    %c72 = arith.constant 72 : index
    %c0_26 = arith.constant 0 : index
    %24 = vector.load %arg6[%c72, %c0_26] : memref<216x1024xf32, #tpu.memory_space<vmem>>, vector<8x1024xf32>
    tpu.vector_store %arg6[%c72, %c0_26], %23 {strides = array<i32>} : memref<216x1024xf32, #tpu.memory_space<vmem>>, vector<8x1024xf32>,
    %c0_27 = arith.constant 0 : index
    %c101 = arith.constant 101 : index
    %25 = vector.load %arg5[%c0_27, %c101] : memref<8x1246xf32, #tpu.memory_space<vmem>>, vector<8x1024xf32>
    %c80 = arith.constant 80 : index
    %c0_28 = arith.constant 0 : index
    %26 = vector.load %arg6[%c80, %c0_28] : memref<216x1024xf32, #tpu.memory_space<vmem>>, vector<8x1024xf32>
    tpu.vector_store %arg6[%c80, %c0_28], %25 {strides = array<i32>} : memref<216x1024xf32, #tpu.memory_space<vmem>>, vector<8x1024xf32>,
    %c0_29 = arith.constant 0 : index
    %c102 = arith.constant 102 : index
    %27 = vector.load %arg5[%c0_29, %c102] : memref<8x1246xf32, #tpu.memory_space<vmem>>, vector<8x1024xf32>
    %c88 = arith.constant 88 : index
    %c0_30 = arith.constant 0 : index
    %28 = vector.load %arg6[%c88, %c0_30] : memref<216x1024xf32, #tpu.memory_space<vmem>>, vector<8x1024xf32>
    tpu.vector_store %arg6[%c88, %c0_30], %27 {strides = array<i32>} : memref<216x1024xf32, #tpu.memory_space<vmem>>, vector<8x1024xf32>,
    %c0_31 = arith.constant 0 : index
    %c110 = arith.constant 110 : index
    %29 = vector.load %arg5[%c0_31, %c110] : memref<8x1246xf32, #tpu.memory_space<vmem>>, vector<8x1024xf32>
    %c96 = arith.constant 96 : index
    %c0_32 = arith.constant 0 : index
    %30 = vector.load %arg6[%c96, %c0_32] : memref<216x1024xf32, #tpu.memory_space<vmem>>, vector<8x1024xf32>
    tpu.vector_store %arg6[%c96, %c0_32], %29 {strides = array<i32>} : memref<216x1024xf32, #tpu.memory_space<vmem>>, vector<8x1024xf32>,
    %c0_33 = arith.constant 0 : index
    %c111_34 = arith.constant 111 : index
    %31 = vector.load %arg5[%c0_33, %c111_34] : memref<8x1246xf32, #tpu.memory_space<vmem>>, vector<8x1024xf32>
    %c104 = arith.constant 104 : index
    %c0_35 = arith.constant 0 : index
    %32 = vector.load %arg6[%c104, %c0_35] : memref<216x1024xf32, #tpu.memory_space<vmem>>, vector<8x1024xf32>
    tpu.vector_store %arg6[%c104, %c0_35], %31 {strides = array<i32>} : memref<216x1024xf32, #tpu.memory_space<vmem>>, vector<8x1024xf32>,
    %c0_36 = arith.constant 0 : index
    %c112 = arith.constant 112 : index
    %33 = vector.load %arg5[%c0_36, %c112] : memref<8x1246xf32, #tpu.memory_space<vmem>>, vector<8x1024xf32>
    %c112_37 = arith.constant 112 : index
    %c0_38 = arith.constant 0 : index
    %34 = vector.load %arg6[%c112_37, %c0_38] : memref<216x1024xf32, #tpu.memory_space<vmem>>, vector<8x1024xf32>
    tpu.vector_store %arg6[%c112_37, %c0_38], %33 {strides = array<i32>} : memref<216x1024xf32, #tpu.memory_space<vmem>>, vector<8x1024xf32>,
    %c0_39 = arith.constant 0 : index
    %c120 = arith.constant 120 : index
    %35 = vector.load %arg5[%c0_39, %c120] : memref<8x1246xf32, #tpu.memory_space<vmem>>, vector<8x1024xf32>
    %c120_40 = arith.constant 120 : index
    %c0_41 = arith.constant 0 : index
    %36 = vector.load %arg6[%c120_40, %c0_41] : memref<216x1024xf32, #tpu.memory_space<vmem>>, vector<8x1024xf32>
    tpu.vector_store %arg6[%c120_40, %c0_41], %35 {strides = array<i32>} : memref<216x1024xf32, #tpu.memory_space<vmem>>, vector<8x1024xf32>,
    %c0_42 = arith.constant 0 : index
    %c121 = arith.constant 121 : index
    %37 = vector.load %arg5[%c0_42, %c121] : memref<8x1246xf32, #tpu.memory_space<vmem>>, vector<8x1024xf32>
    %c128 = arith.constant 128 : index
    %c0_43 = arith.constant 0 : index
    %38 = vector.load %arg6[%c128, %c0_43] : memref<216x1024xf32, #tpu.memory_space<vmem>>, vector<8x1024xf32>
    tpu.vector_store %arg6[%c128, %c0_43], %37 {strides = array<i32>} : memref<216x1024xf32, #tpu.memory_space<vmem>>, vector<8x1024xf32>,
    %c0_44 = arith.constant 0 : index
    %c122 = arith.constant 122 : index
    %39 = vector.load %arg5[%c0_44, %c122] : memref<8x1246xf32, #tpu.memory_space<vmem>>, vector<8x1024xf32>
    %c136 = arith.constant 136 : index
    %c0_45 = arith.constant 0 : index
    %40 = vector.load %arg6[%c136, %c0_45] : memref<216x1024xf32, #tpu.memory_space<vmem>>, vector<8x1024xf32>
    tpu.vector_store %arg6[%c136, %c0_45], %39 {strides = array<i32>} : memref<216x1024xf32, #tpu.memory_space<vmem>>, vector<8x1024xf32>,
    %c0_46 = arith.constant 0 : index
    %c200 = arith.constant 200 : index
    %41 = vector.load %arg5[%c0_46, %c200] : memref<8x1246xf32, #tpu.memory_space<vmem>>, vector<8x1024xf32>
    %c144 = arith.constant 144 : index
    %c0_47 = arith.constant 0 : index
    %42 = vector.load %arg6[%c144, %c0_47] : memref<216x1024xf32, #tpu.memory_space<vmem>>, vector<8x1024xf32>
    tpu.vector_store %arg6[%c144, %c0_47], %41 {strides = array<i32>} : memref<216x1024xf32, #tpu.memory_space<vmem>>, vector<8x1024xf32>,
    %c0_48 = arith.constant 0 : index
    %c201 = arith.constant 201 : index
    %43 = vector.load %arg5[%c0_48, %c201] : memref<8x1246xf32, #tpu.memory_space<vmem>>, vector<8x1024xf32>
    %c152 = arith.constant 152 : index
    %c0_49 = arith.constant 0 : index
    %44 = vector.load %arg6[%c152, %c0_49] : memref<216x1024xf32, #tpu.memory_space<vmem>>, vector<8x1024xf32>
    tpu.vector_store %arg6[%c152, %c0_49], %43 {strides = array<i32>} : memref<216x1024xf32, #tpu.memory_space<vmem>>, vector<8x1024xf32>,
    %c0_50 = arith.constant 0 : index
    %c202 = arith.constant 202 : index
    %45 = vector.load %arg5[%c0_50, %c202] : memref<8x1246xf32, #tpu.memory_space<vmem>>, vector<8x1024xf32>
    %c160 = arith.constant 160 : index
    %c0_51 = arith.constant 0 : index
    %46 = vector.load %arg6[%c160, %c0_51] : memref<216x1024xf32, #tpu.memory_space<vmem>>, vector<8x1024xf32>
    tpu.vector_store %arg6[%c160, %c0_51], %45 {strides = array<i32>} : memref<216x1024xf32, #tpu.memory_space<vmem>>, vector<8x1024xf32>,
    %c0_52 = arith.constant 0 : index
    %c210 = arith.constant 210 : index
    %47 = vector.load %arg5[%c0_52, %c210] : memref<8x1246xf32, #tpu.memory_space<vmem>>, vector<8x1024xf32>
    %c168 = arith.constant 168 : index
    %c0_53 = arith.constant 0 : index
    %48 = vector.load %arg6[%c168, %c0_53] : memref<216x1024xf32, #tpu.memory_space<vmem>>, vector<8x1024xf32>
    tpu.vector_store %arg6[%c168, %c0_53], %47 {strides = array<i32>} : memref<216x1024xf32, #tpu.memory_space<vmem>>, vector<8x1024xf32>,
    %c0_54 = arith.constant 0 : index
    %c211 = arith.constant 211 : index
    %49 = vector.load %arg5[%c0_54, %c211] : memref<8x1246xf32, #tpu.memory_space<vmem>>, vector<8x1024xf32>
    %c176 = arith.constant 176 : index
    %c0_55 = arith.constant 0 : index
    %50 = vector.load %arg6[%c176, %c0_55] : memref<216x1024xf32, #tpu.memory_space<vmem>>, vector<8x1024xf32>
    tpu.vector_store %arg6[%c176, %c0_55], %49 {strides = array<i32>} : memref<216x1024xf32, #tpu.memory_space<vmem>>, vector<8x1024xf32>,
    %c0_56 = arith.constant 0 : index
    %c212 = arith.constant 212 : index
    %51 = vector.load %arg5[%c0_56, %c212] : memref<8x1246xf32, #tpu.memory_space<vmem>>, vector<8x1024xf32>
    %c184 = arith.constant 184 : index
    %c0_57 = arith.constant 0 : index
    %52 = vector.load %arg6[%c184, %c0_57] : memref<216x1024xf32, #tpu.memory_space<vmem>>, vector<8x1024xf32>
    tpu.vector_store %arg6[%c184, %c0_57], %51 {strides = array<i32>} : memref<216x1024xf32, #tpu.memory_space<vmem>>, vector<8x1024xf32>,
    %c0_58 = arith.constant 0 : index
    %c220 = arith.constant 220 : index
    %53 = vector.load %arg5[%c0_58, %c220] : memref<8x1246xf32, #tpu.memory_space<vmem>>, vector<8x1024xf32>
    %c192 = arith.constant 192 : index
    %c0_59 = arith.constant 0 : index
    %54 = vector.load %arg6[%c192, %c0_59] : memref<216x1024xf32, #tpu.memory_space<vmem>>, vector<8x1024xf32>
    tpu.vector_store %arg6[%c192, %c0_59], %53 {strides = array<i32>} : memref<216x1024xf32, #tpu.memory_space<vmem>>, vector<8x1024xf32>,
    %c0_60 = arith.constant 0 : index
    %c221 = arith.constant 221 : index
    %55 = vector.load %arg5[%c0_60, %c221] : memref<8x1246xf32, #tpu.memory_space<vmem>>, vector<8x1024xf32>
    %c200_61 = arith.constant 200 : index
    %c0_62 = arith.constant 0 : index
    %56 = vector.load %arg6[%c200_61, %c0_62] : memref<216x1024xf32, #tpu.memory_space<vmem>>, vector<8x1024xf32>
    tpu.vector_store %arg6[%c200_61, %c0_62], %55 {strides = array<i32>} : memref<216x1024xf32, #tpu.memory_space<vmem>>, vector<8x1024xf32>,
    %c0_63 = arith.constant 0 : index
    %c222 = arith.constant 222 : index
    %57 = vector.load %arg5[%c0_63, %c222] : memref<8x1246xf32, #tpu.memory_space<vmem>>, vector<8x1024xf32>
    %c208 = arith.constant 208 : index
    %c0_64 = arith.constant 0 : index
    %58 = vector.load %arg6[%c208, %c0_64] : memref<216x1024xf32, #tpu.memory_space<vmem>>, vector<8x1024xf32>
    tpu.vector_store %arg6[%c208, %c0_64], %57 {strides = array<i32>} : memref<216x1024xf32, #tpu.memory_space<vmem>>, vector<8x1024xf32>,
    %c0_65 = arith.constant 0 : index
    %c0_66 = arith.constant 0 : index
    %c0_67 = arith.constant 0 : index
    %59 = vector.load %arg2[%c0_65, %c0_66, %c0_67] : memref<2x8x216xf32, #tpu.memory_space<vmem>>, vector<1x8x216xf32>
    %60 = vector.shape_cast %59 : vector<1x8x216xf32> to vector<8x216xf32>
    %c0_68 = arith.constant 0 : index
    %c0_69 = arith.constant 0 : index
    %61 = vector.load %arg6[%c0_68, %c0_69] : memref<216x1024xf32, #tpu.memory_space<vmem>>, vector<216x1024xf32>
    %cst_70 = arith.constant dense<0.000000e+00> : vector<8x1024xf32>
    %62 = tpu.matmul %60, %61, %cst_70 {dimension_numbers = #tpu.dot_dimension_numbers<[1], [0], [0], [1], [0, 0, 1, 1], [], []>} : vector<8x216xf32>, vector<216x1024xf32>, vector<8x1024xf32> -> vector<8x1024xf32>
    %c0_71 = arith.constant 0 : index
    %c0_72 = arith.constant 0 : index
    %c0_73 = arith.constant 0 : index
    %63 = vector.load %arg3[%c0_71, %c0_72, %c0_73] : memref<2x1x1024xf32, #tpu.memory_space<vmem>>, vector<1x1x1024xf32>
    %64 = vector.shape_cast %63 : vector<1x1x1024xf32> to vector<1x1024xf32>
    %65 = vector.broadcast %64 : vector<1x1024xf32> to vector<8x1024xf32>
    %66 = arith.mulf %62, %65 : vector<8x1024xf32>
    %c0_74 = arith.constant 0 : index
    %c111_75 = arith.constant 111 : index
    %67 = vector.load %arg5[%c0_74, %c111_75] : memref<8x1246xf32, #tpu.memory_space<vmem>>, vector<8x1024xf32>
    tpu.vector_store %arg5[%c0_74, %c111_75], %66 {strides = array<i32>} : memref<8x1246xf32, #tpu.memory_space<vmem>>, vector<8x1024xf32>,
    %c0_76 = arith.constant 0 : index
    %c0_77 = arith.constant 0 : index
    %68 = vector.load %arg5[%c0_76, %c0_77] : memref<8x1246xf32, #tpu.memory_space<vmem>>, vector<8x1024xf32>
    %c0_78 = arith.constant 0 : index
    %c0_79 = arith.constant 0 : index
    %69 = vector.load %arg6[%c0_78, %c0_79] : memref<216x1024xf32, #tpu.memory_space<vmem>>, vector<8x1024xf32>
    tpu.vector_store %arg6[%c0_78, %c0_79], %68 {strides = array<i32>} : memref<216x1024xf32, #tpu.memory_space<vmem>>, vector<8x1024xf32>,
    %c0_80 = arith.constant 0 : index
    %c1_81 = arith.constant 1 : index
    %70 = vector.load %arg5[%c0_80, %c1_81] : memref<8x1246xf32, #tpu.memory_space<vmem>>, vector<8x1024xf32>
    %c8_82 = arith.constant 8 : index
    %c0_83 = arith.constant 0 : index
    %71 = vector.load %arg6[%c8_82, %c0_83] : memref<216x1024xf32, #tpu.memory_space<vmem>>, vector<8x1024xf32>
    tpu.vector_store %arg6[%c8_82, %c0_83], %70 {strides = array<i32>} : memref<216x1024xf32, #tpu.memory_space<vmem>>, vector<8x1024xf32>,
    %c0_84 = arith.constant 0 : index
    %c2_85 = arith.constant 2 : index
    %72 = vector.load %arg5[%c0_84, %c2_85] : memref<8x1246xf32, #tpu.memory_space<vmem>>, vector<8x1024xf32>
    %c16_86 = arith.constant 16 : index
    %c0_87 = arith.constant 0 : index
    %73 = vector.load %arg6[%c16_86, %c0_87] : memref<216x1024xf32, #tpu.memory_space<vmem>>, vector<8x1024xf32>
    tpu.vector_store %arg6[%c16_86, %c0_87], %72 {strides = array<i32>} : memref<216x1024xf32, #tpu.memory_space<vmem>>, vector<8x1024xf32>,
    %c0_88 = arith.constant 0 : index
    %c10_89 = arith.constant 10 : index
    %74 = vector.load %arg5[%c0_88, %c10_89] : memref<8x1246xf32, #tpu.memory_space<vmem>>, vector<8x1024xf32>
    %c24_90 = arith.constant 24 : index
    %c0_91 = arith.constant 0 : index
    %75 = vector.load %arg6[%c24_90, %c0_91] : memref<216x1024xf32, #tpu.memory_space<vmem>>, vector<8x1024xf32>
    tpu.vector_store %arg6[%c24_90, %c0_91], %74 {strides = array<i32>} : memref<216x1024xf32, #tpu.memory_space<vmem>>, vector<8x1024xf32>,
    %c0_92 = arith.constant 0 : index
    %c11_93 = arith.constant 11 : index
    %76 = vector.load %arg5[%c0_92, %c11_93] : memref<8x1246xf32, #tpu.memory_space<vmem>>, vector<8x1024xf32>
    %c32_94 = arith.constant 32 : index
    %c0_95 = arith.constant 0 : index
    %77 = vector.load %arg6[%c32_94, %c0_95] : memref<216x1024xf32, #tpu.memory_space<vmem>>, vector<8x1024xf32>
    tpu.vector_store %arg6[%c32_94, %c0_95], %76 {strides = array<i32>} : memref<216x1024xf32, #tpu.memory_space<vmem>>, vector<8x1024xf32>,
    %c0_96 = arith.constant 0 : index
    %c12_97 = arith.constant 12 : index
    %78 = vector.load %arg5[%c0_96, %c12_97] : memref<8x1246xf32, #tpu.memory_space<vmem>>, vector<8x1024xf32>
    %c40_98 = arith.constant 40 : index
    %c0_99 = arith.constant 0 : index
    %79 = vector.load %arg6[%c40_98, %c0_99] : memref<216x1024xf32, #tpu.memory_space<vmem>>, vector<8x1024xf32>
    tpu.vector_store %arg6[%c40_98, %c0_99], %78 {strides = array<i32>} : memref<216x1024xf32, #tpu.memory_space<vmem>>, vector<8x1024xf32>,
    %c0_100 = arith.constant 0 : index
    %c20_101 = arith.constant 20 : index
    %80 = vector.load %arg5[%c0_100, %c20_101] : memref<8x1246xf32, #tpu.memory_space<vmem>>, vector<8x1024xf32>
    %c48_102 = arith.constant 48 : index
    %c0_103 = arith.constant 0 : index
    %81 = vector.load %arg6[%c48_102, %c0_103] : memref<216x1024xf32, #tpu.memory_space<vmem>>, vector<8x1024xf32>
    tpu.vector_store %arg6[%c48_102, %c0_103], %80 {strides = array<i32>} : memref<216x1024xf32, #tpu.memory_space<vmem>>, vector<8x1024xf32>,
    %c0_104 = arith.constant 0 : index
    %c21_105 = arith.constant 21 : index
    %82 = vector.load %arg5[%c0_104, %c21_105] : memref<8x1246xf32, #tpu.memory_space<vmem>>, vector<8x1024xf32>
    %c56_106 = arith.constant 56 : index
    %c0_107 = arith.constant 0 : index
    %83 = vector.load %arg6[%c56_106, %c0_107] : memref<216x1024xf32, #tpu.memory_space<vmem>>, vector<8x1024xf32>
    tpu.vector_store %arg6[%c56_106, %c0_107], %82 {strides = array<i32>} : memref<216x1024xf32, #tpu.memory_space<vmem>>, vector<8x1024xf32>,
    %c0_108 = arith.constant 0 : index
    %c22_109 = arith.constant 22 : index
    %84 = vector.load %arg5[%c0_108, %c22_109] : memref<8x1246xf32, #tpu.memory_space<vmem>>, vector<8x1024xf32>
    %c64_110 = arith.constant 64 : index
    %c0_111 = arith.constant 0 : index
    %85 = vector.load %arg6[%c64_110, %c0_111] : memref<216x1024xf32, #tpu.memory_space<vmem>>, vector<8x1024xf32>
    tpu.vector_store %arg6[%c64_110, %c0_111], %84 {strides = array<i32>} : memref<216x1024xf32, #tpu.memory_space<vmem>>, vector<8x1024xf32>,
    %c0_112 = arith.constant 0 : index
    %c100_113 = arith.constant 100 : index
    %86 = vector.load %arg5[%c0_112, %c100_113] : memref<8x1246xf32, #tpu.memory_space<vmem>>, vector<8x1024xf32>
    %c72_114 = arith.constant 72 : index
    %c0_115 = arith.constant 0 : index
    %87 = vector.load %arg6[%c72_114, %c0_115] : memref<216x1024xf32, #tpu.memory_space<vmem>>, vector<8x1024xf32>
    tpu.vector_store %arg6[%c72_114, %c0_115], %86 {strides = array<i32>} : memref<216x1024xf32, #tpu.memory_space<vmem>>, vector<8x1024xf32>,
    %c0_116 = arith.constant 0 : index
    %c101_117 = arith.constant 101 : index
    %88 = vector.load %arg5[%c0_116, %c101_117] : memref<8x1246xf32, #tpu.memory_space<vmem>>, vector<8x1024xf32>
    %c80_118 = arith.constant 80 : index
    %c0_119 = arith.constant 0 : index
    %89 = vector.load %arg6[%c80_118, %c0_119] : memref<216x1024xf32, #tpu.memory_space<vmem>>, vector<8x1024xf32>
    tpu.vector_store %arg6[%c80_118, %c0_119], %88 {strides = array<i32>} : memref<216x1024xf32, #tpu.memory_space<vmem>>, vector<8x1024xf32>,
    %c0_120 = arith.constant 0 : index
    %c102_121 = arith.constant 102 : index
    %90 = vector.load %arg5[%c0_120, %c102_121] : memref<8x1246xf32, #tpu.memory_space<vmem>>, vector<8x1024xf32>
    %c88_122 = arith.constant 88 : index
    %c0_123 = arith.constant 0 : index
    %91 = vector.load %arg6[%c88_122, %c0_123] : memref<216x1024xf32, #tpu.memory_space<vmem>>, vector<8x1024xf32>
    tpu.vector_store %arg6[%c88_122, %c0_123], %90 {strides = array<i32>} : memref<216x1024xf32, #tpu.memory_space<vmem>>, vector<8x1024xf32>,
    %c0_124 = arith.constant 0 : index
    %c110_125 = arith.constant 110 : index
    %92 = vector.load %arg5[%c0_124, %c110_125] : memref<8x1246xf32, #tpu.memory_space<vmem>>, vector<8x1024xf32>
    %c96_126 = arith.constant 96 : index
    %c0_127 = arith.constant 0 : index
    %93 = vector.load %arg6[%c96_126, %c0_127] : memref<216x1024xf32, #tpu.memory_space<vmem>>, vector<8x1024xf32>
    tpu.vector_store %arg6[%c96_126, %c0_127], %92 {strides = array<i32>} : memref<216x1024xf32, #tpu.memory_space<vmem>>, vector<8x1024xf32>,
    %c0_128 = arith.constant 0 : index
    %c111_129 = arith.constant 111 : index
    %94 = vector.load %arg5[%c0_128, %c111_129] : memref<8x1246xf32, #tpu.memory_space<vmem>>, vector<8x1024xf32>
    %c104_130 = arith.constant 104 : index
    %c0_131 = arith.constant 0 : index
    %95 = vector.load %arg6[%c104_130, %c0_131] : memref<216x1024xf32, #tpu.memory_space<vmem>>, vector<8x1024xf32>
    tpu.vector_store %arg6[%c104_130, %c0_131], %94 {strides = array<i32>} : memref<216x1024xf32, #tpu.memory_space<vmem>>, vector<8x1024xf32>,
    %c0_132 = arith.constant 0 : index
    %c112_133 = arith.constant 112 : index
    %96 = vector.load %arg5[%c0_132, %c112_133] : memref<8x1246xf32, #tpu.memory_space<vmem>>, vector<8x1024xf32>
    %c112_134 = arith.constant 112 : index
    %c0_135 = arith.constant 0 : index
    %97 = vector.load %arg6[%c112_134, %c0_135] : memref<216x1024xf32, #tpu.memory_space<vmem>>, vector<8x1024xf32>
    tpu.vector_store %arg6[%c112_134, %c0_135], %96 {strides = array<i32>} : memref<216x1024xf32, #tpu.memory_space<vmem>>, vector<8x1024xf32>,
    %c0_136 = arith.constant 0 : index
    %c120_137 = arith.constant 120 : index
    %98 = vector.load %arg5[%c0_136, %c120_137] : memref<8x1246xf32, #tpu.memory_space<vmem>>, vector<8x1024xf32>
    %c120_138 = arith.constant 120 : index
    %c0_139 = arith.constant 0 : index
    %99 = vector.load %arg6[%c120_138, %c0_139] : memref<216x1024xf32, #tpu.memory_space<vmem>>, vector<8x1024xf32>
    tpu.vector_store %arg6[%c120_138, %c0_139], %98 {strides = array<i32>} : memref<216x1024xf32, #tpu.memory_space<vmem>>, vector<8x1024xf32>,
    %c0_140 = arith.constant 0 : index
    %c121_141 = arith.constant 121 : index
    %100 = vector.load %arg5[%c0_140, %c121_141] : memref<8x1246xf32, #tpu.memory_space<vmem>>, vector<8x1024xf32>
    %c128_142 = arith.constant 128 : index
    %c0_143 = arith.constant 0 : index
    %101 = vector.load %arg6[%c128_142, %c0_143] : memref<216x1024xf32, #tpu.memory_space<vmem>>, vector<8x1024xf32>
    tpu.vector_store %arg6[%c128_142, %c0_143], %100 {strides = array<i32>} : memref<216x1024xf32, #tpu.memory_space<vmem>>, vector<8x1024xf32>,
    %c0_144 = arith.constant 0 : index
    %c122_145 = arith.constant 122 : index
    %102 = vector.load %arg5[%c0_144, %c122_145] : memref<8x1246xf32, #tpu.memory_space<vmem>>, vector<8x1024xf32>
    %c136_146 = arith.constant 136 : index
    %c0_147 = arith.constant 0 : index
    %103 = vector.load %arg6[%c136_146, %c0_147] : memref<216x1024xf32, #tpu.memory_space<vmem>>, vector<8x1024xf32>
    tpu.vector_store %arg6[%c136_146, %c0_147], %102 {strides = array<i32>} : memref<216x1024xf32, #tpu.memory_space<vmem>>, vector<8x1024xf32>,
    %c0_148 = arith.constant 0 : index
    %c200_149 = arith.constant 200 : index
    %104 = vector.load %arg5[%c0_148, %c200_149] : memref<8x1246xf32, #tpu.memory_space<vmem>>, vector<8x1024xf32>
    %c144_150 = arith.constant 144 : index
    %c0_151 = arith.constant 0 : index
    %105 = vector.load %arg6[%c144_150, %c0_151] : memref<216x1024xf32, #tpu.memory_space<vmem>>, vector<8x1024xf32>
    tpu.vector_store %arg6[%c144_150, %c0_151], %104 {strides = array<i32>} : memref<216x1024xf32, #tpu.memory_space<vmem>>, vector<8x1024xf32>,
    %c0_152 = arith.constant 0 : index
    %c201_153 = arith.constant 201 : index
    %106 = vector.load %arg5[%c0_152, %c201_153] : memref<8x1246xf32, #tpu.memory_space<vmem>>, vector<8x1024xf32>
    %c152_154 = arith.constant 152 : index
    %c0_155 = arith.constant 0 : index
    %107 = vector.load %arg6[%c152_154, %c0_155] : memref<216x1024xf32, #tpu.memory_space<vmem>>, vector<8x1024xf32>
    tpu.vector_store %arg6[%c152_154, %c0_155], %106 {strides = array<i32>} : memref<216x1024xf32, #tpu.memory_space<vmem>>, vector<8x1024xf32>,
    %c0_156 = arith.constant 0 : index
    %c202_157 = arith.constant 202 : index
    %108 = vector.load %arg5[%c0_156, %c202_157] : memref<8x1246xf32, #tpu.memory_space<vmem>>, vector<8x1024xf32>
    %c160_158 = arith.constant 160 : index
    %c0_159 = arith.constant 0 : index
    %109 = vector.load %arg6[%c160_158, %c0_159] : memref<216x1024xf32, #tpu.memory_space<vmem>>, vector<8x1024xf32>
    tpu.vector_store %arg6[%c160_158, %c0_159], %108 {strides = array<i32>} : memref<216x1024xf32, #tpu.memory_space<vmem>>, vector<8x1024xf32>,
    %c0_160 = arith.constant 0 : index
    %c210_161 = arith.constant 210 : index
    %110 = vector.load %arg5[%c0_160, %c210_161] : memref<8x1246xf32, #tpu.memory_space<vmem>>, vector<8x1024xf32>
    %c168_162 = arith.constant 168 : index
    %c0_163 = arith.constant 0 : index
    %111 = vector.load %arg6[%c168_162, %c0_163] : memref<216x1024xf32, #tpu.memory_space<vmem>>, vector<8x1024xf32>
    tpu.vector_store %arg6[%c168_162, %c0_163], %110 {strides = array<i32>} : memref<216x1024xf32, #tpu.memory_space<vmem>>, vector<8x1024xf32>,
    %c0_164 = arith.constant 0 : index
    %c211_165 = arith.constant 211 : index
    %112 = vector.load %arg5[%c0_164, %c211_165] : memref<8x1246xf32, #tpu.memory_space<vmem>>, vector<8x1024xf32>
    %c176_166 = arith.constant 176 : index
    %c0_167 = arith.constant 0 : index
    %113 = vector.load %arg6[%c176_166, %c0_167] : memref<216x1024xf32, #tpu.memory_space<vmem>>, vector<8x1024xf32>
    tpu.vector_store %arg6[%c176_166, %c0_167], %112 {strides = array<i32>} : memref<216x1024xf32, #tpu.memory_space<vmem>>, vector<8x1024xf32>,
    %c0_168 = arith.constant 0 : index
    %c212_169 = arith.constant 212 : index
    %114 = vector.load %arg5[%c0_168, %c212_169] : memref<8x1246xf32, #tpu.memory_space<vmem>>, vector<8x1024xf32>
    %c184_170 = arith.constant 184 : index
    %c0_171 = arith.constant 0 : index
    %115 = vector.load %arg6[%c184_170, %c0_171] : memref<216x1024xf32, #tpu.memory_space<vmem>>, vector<8x1024xf32>
    tpu.vector_store %arg6[%c184_170, %c0_171], %114 {strides = array<i32>} : memref<216x1024xf32, #tpu.memory_space<vmem>>, vector<8x1024xf32>,
    %c0_172 = arith.constant 0 : index
    %c220_173 = arith.constant 220 : index
    %116 = vector.load %arg5[%c0_172, %c220_173] : memref<8x1246xf32, #tpu.memory_space<vmem>>, vector<8x1024xf32>
    %c192_174 = arith.constant 192 : index
    %c0_175 = arith.constant 0 : index
    %117 = vector.load %arg6[%c192_174, %c0_175] : memref<216x1024xf32, #tpu.memory_space<vmem>>, vector<8x1024xf32>
    tpu.vector_store %arg6[%c192_174, %c0_175], %116 {strides = array<i32>} : memref<216x1024xf32, #tpu.memory_space<vmem>>, vector<8x1024xf32>,
    %c0_176 = arith.constant 0 : index
    %c221_177 = arith.constant 221 : index
    %118 = vector.load %arg5[%c0_176, %c221_177] : memref<8x1246xf32, #tpu.memory_space<vmem>>, vector<8x1024xf32>
    %c200_178 = arith.constant 200 : index
    %c0_179 = arith.constant 0 : index
    %119 = vector.load %arg6[%c200_178, %c0_179] : memref<216x1024xf32, #tpu.memory_space<vmem>>, vector<8x1024xf32>
    tpu.vector_store %arg6[%c200_178, %c0_179], %118 {strides = array<i32>} : memref<216x1024xf32, #tpu.memory_space<vmem>>, vector<8x1024xf32>,
    %c0_180 = arith.constant 0 : index
    %c222_181 = arith.constant 222 : index
    %120 = vector.load %arg5[%c0_180, %c222_181] : memref<8x1246xf32, #tpu.memory_space<vmem>>, vector<8x1024xf32>
    %c208_182 = arith.constant 208 : index
    %c0_183 = arith.constant 0 : index
    %121 = vector.load %arg6[%c208_182, %c0_183] : memref<216x1024xf32, #tpu.memory_space<vmem>>, vector<8x1024xf32>
    tpu.vector_store %arg6[%c208_182, %c0_183], %120 {strides = array<i32>} : memref<216x1024xf32, #tpu.memory_space<vmem>>, vector<8x1024xf32>,
    %c1_184 = arith.constant 1 : index
    %c0_185 = arith.constant 0 : index
    %c0_186 = arith.constant 0 : index
    %122 = vector.load %arg2[%c1_184, %c0_185, %c0_186] : memref<2x8x216xf32, #tpu.memory_space<vmem>>, vector<1x8x216xf32>
    %123 = vector.shape_cast %122 : vector<1x8x216xf32> to vector<8x216xf32>
    %c0_187 = arith.constant 0 : index
    %c0_188 = arith.constant 0 : index
    %124 = vector.load %arg6[%c0_187, %c0_188] : memref<216x1024xf32, #tpu.memory_space<vmem>>, vector<216x1024xf32>
    %cst_189 = arith.constant dense<0.000000e+00> : vector<8x1024xf32>
    %125 = tpu.matmul %123, %124, %cst_189 {dimension_numbers = #tpu.dot_dimension_numbers<[1], [0], [0], [1], [0, 0, 1, 1], [], []>} : vector<8x216xf32>, vector<216x1024xf32>, vector<8x1024xf32> -> vector<8x1024xf32>
    %c0_190 = arith.constant 0 : index
    %c0_191 = arith.constant 0 : index
    %c0_192 = arith.constant 0 : index
    %126 = vector.load %arg4[%c0_190, %c0_191, %c0_192] : memref<1x8x1024xf32, #tpu.memory_space<vmem>>, vector<1x8x1024xf32>
    %127 = vector.shape_cast %126 : vector<1x8x1024xf32> to vector<8x1024xf32>
    %128 = vector.shape_cast %125 : vector<8x1024xf32> to vector<1x8x1024xf32>
    tpu.vector_store %arg4[%c0_190, %c0_191, %c0_192], %128 {strides = array<i32>} : memref<1x8x1024xf32, #tpu.memory_space<vmem>>, vector<1x8x1024xf32>,
    return
  }
  func.func @transform_0(%arg0: i32) -> (i32, i32, i32) {
    %c0_i32 = arith.constant 0 : i32
    %c0_i32_0 = arith.constant 0 : i32
    %c0_i32_1 = arith.constant 0 : i32
    return %arg0, %c0_i32, %c0_i32_0 : i32, i32, i32
  }
  func.func @transform_1(%arg0: i32) -> (i32, i32, i32) {
    %c0_i32 = arith.constant 0 : i32
    %c0_i32_0 = arith.constant 0 : i32
    %c0_i32_1 = arith.constant 0 : i32
    %c0_i32_2 = arith.constant 0 : i32
    return %c0_i32, %c0_i32_0, %c0_i32_1 : i32, i32, i32
  }
  func.func @transform_2(%arg0: i32) -> (i32, i32, i32) {
    %c0_i32 = arith.constant 0 : i32
    %c0_i32_0 = arith.constant 0 : i32
    %c0_i32_1 = arith.constant 0 : i32
    %c0_i32_2 = arith.constant 0 : i32
    return %c0_i32, %c0_i32_0, %c0_i32_1 : i32, i32, i32
  }
  func.func @transform_3(%arg0: i32) -> (i32, i32, i32) {
    %c0_i32 = arith.constant 0 : i32
    %c0_i32_0 = arith.constant 0 : i32
    %c0_i32_1 = arith.constant 0 : i32
    return %arg0, %c0_i32, %c0_i32_0 : i32, i32, i32
  }
}

</mosaic_0001>

<llo_original>
// kernel: tpu_custom_call.1
$region0: #{tpu_custom_call.1}
  #allocation0 [shape = 'u32[]', space=smem, size = 0x4, offset = 0x4, fixed_abs, tag = 'smem constant byte address 0x4 - core index']
  #allocation1 [shape = 'u32[144,128]{1,0:T(1,128)}', space=vmem, size = 0x12000, scoped, tag = 'internal scratch']
  #allocation2 [shape = 'f32[8,1246]{1,0:T(8,128)}', space=vmem, size = 0xa000, scoped, tag = 'scratch operand']
  #allocation3 [shape = 'f32[216,1024]{1,0:T(8,128)}', space=vmem, size = 0xd8000, scoped, tag = 'scratch operand']
  %s0 = inlined_call_operand.hbm [shape: f32[2,8,1024], index: 0, kind: input, shape index: {}]
  %s1 = inlined_call_operand.hbm [shape: f32[2,8,216], index: 1, kind: input, shape index: {}]
  %s2 = inlined_call_operand.hbm [shape: f32[2,1,1024], index: 2, kind: input, shape index: {}]
  %s3 = inlined_call_operand.hbm [shape: f32[2,8,1024], index: 3, kind: output, shape index: {}]
  %s4 = sld [smem:[#allocation0]]
  $region57: #{tpu_custom_call.1} parent=0
    _
  %s6 = ssub.s32 1, %s4
  %s7 = scalar_select 0, %s6, %s4
  $region1: #{tpu_custom_call.1} parent=0
    #allocation4 [shape = 'u8[65536]{0}', space=vmem, size = 0x10000, scoped, tag = 'input window, operand 0']
    #allocation5 [shape = 's32[2]{0}', space=sflag, size = 0x8, scoped, tag = 'scoped memory for tpu_custom_call.1']
    #allocation6 [shape = 's32[2]{0}', space=sflag, size = 0x8, scoped, tag = 'scoped memory for tpu_custom_call.1']
    #allocation7 [shape = 'u8[16384]{0}', space=vmem, size = 0x4000, scoped, tag = 'input window, operand 1, single buffered']
    #allocation8 [shape = 's32[1]{0}', space=sflag, size = 0x4, scoped, tag = 'scoped memory for tpu_custom_call.1']
    #allocation9 [shape = 'u8[8192]{0}', space=vmem, size = 0x2000, scoped, tag = 'input window, operand 2, single buffered']
    #allocation10 [shape = 'u8[65536]{0}', space=vmem, size = 0x10000, scoped, tag = 'output window, operand 0']
    %8 = vsyncpa [#allocation5], 0
    %s9 = scalar_lea.sflag [#allocation5], 1
    %10 = vsyncpa %s9, 0
    %11 = vsyncpa [#allocation8], 0
    %12 = vsyncpa [#allocation6], 0
    %s13 = scalar_lea.sflag [#allocation6], 1
    %14 = vsyncpa %s13, 0
    loop: start=0, step=1, limit=4
    $region2: #{tpu_custom_call.1} parent=1 // loop_pre_header
      _
    $region3: #{tpu_custom_call.1} parent=1 // loop_header
      %s16 = sphi 0, %s20
      %p17 = scmp.ge.s32.totalorder %s16, 4
      %s26 = sphi 0, %s28
      %s29 = sphi 0, %s26
      %s30 = sphi 0, %s29
      %s46 = sphi 0, %s30
      %s50 = sphi 0, %s50
      %s52 = sphi 0, %s50
      %s53 = sphi 0, %s52
      %s67 = sphi 0, %s53
      %s71 = sphi 0, %s71
      %s73 = sphi 0, %s71
      %s74 = sphi 0, %s73
      %s88 = sphi 0, %s74
      %s94 = sphi 0, %s96
      %s97 = sphi 0, %s94
      %s98 = sphi 0, %s97
      %s114 = sphi 0, %s98
    $region4: #{tpu_custom_call.1} parent=1 // loop_header_branch
      %19 = sbr.rel (%p17) target = $region8
    $region5: #{tpu_custom_call.1} parent=1 // loop_body
      %s21 = ssub.s32 %s16, 1
      %s22 = ssub.s32 %s16, 2
      %s23 = sadd.s32 %s16, 1
      %s24 = ssub.s32 %s16, %s23
      %p25 = scmp.eq.s32.totalorder %s24, 0
      %s27 = sadd.s32 %s26, 1
      %s28 = scalar_select %p25, %s26, %s27
      %p31 = pneg %p25
      %p32 = scmp.eq.s32.totalorder %s16, 1
      %p33 = por %p31, %p32
      %p34 = scmp.ne.s32.totalorder %s26, %s29
      %p35 = scmp.eq.s32.totalorder %s16, 0
      %p36 = por %p34, %p35
      %p37 = scmp.ne.s32.totalorder %s26, %s29
      %p38 = scmp.eq.s32.totalorder %s21, 1
      %p39 = por %p37, %p38
      %p40 = scmp.ne.s32.totalorder %s29, %s30
      %p41 = scmp.eq.s32.totalorder %s21, 0
      %p42 = por %p40, %p41
      %p43 = scmp.ne.s32.totalorder %s29, %s30
      %p44 = scmp.eq.s32.totalorder %s22, 1
      %p45 = por %p43, %p44
      %p47 = scmp.ne.s32.totalorder %s30, %s46
      %p48 = scmp.eq.s32.totalorder %s22, 0
      %p49 = por %p47, %p48
      %s51 = sadd.s32 %s50, 1
      %p54 = scmp.eq.s32.totalorder %s16, 1
      %p55 = scmp.ne.s32.totalorder %s50, %s52
      %p56 = scmp.eq.s32.totalorder %s16, 0
      %p57 = por %p55, %p56
      %p58 = scmp.ne.s32.totalorder %s50, %s52
      %p59 = scmp.eq.s32.totalorder %s21, 1
      %p60 = por %p58, %p59
      %p61 = scmp.ne.s32.totalorder %s52, %s53
      %p62 = scmp.eq.s32.totalorder %s21, 0
      %p63 = por %p61, %p62
      %p64 = scmp.ne.s32.totalorder %s52, %s53
      %p65 = scmp.eq.s32.totalorder %s22, 1
      %p66 = por %p64, %p65
      %p68 = scmp.ne.s32.totalorder %s53, %s67
      %p69 = scmp.eq.s32.totalorder %s22, 0
      %p70 = por %p68, %p69
      %s72 = sadd.s32 %s71, 1
      %p75 = scmp.eq.s32.totalorder %s16, 1
      %p76 = scmp.ne.s32.totalorder %s71, %s73
      %p77 = scmp.eq.s32.totalorder %s16, 0
      %p78 = por %p76, %p77
      %p79 = scmp.ne.s32.totalorder %s71, %s73
      %p80 = scmp.eq.s32.totalorder %s21, 1
      %p81 = por %p79, %p80
      %p82 = scmp.ne.s32.totalorder %s73, %s74
      %p83 = scmp.eq.s32.totalorder %s21, 0
      %p84 = por %p82, %p83
      %p85 = scmp.ne.s32.totalorder %s73, %s74
      %p86 = scmp.eq.s32.totalorder %s22, 1
      %p87 = por %p85, %p86
      %p89 = scmp.ne.s32.totalorder %s74, %s88
      %p90 = scmp.eq.s32.totalorder %s22, 0
      %p91 = por %p89, %p90
      %s92 = ssub.s32 %s16, %s23
      %p93 = scmp.eq.s32.totalorder %s92, 0
      %s95 = sadd.s32 %s94, 1
      %s96 = scalar_select %p93, %s94, %s95
      %p99 = pneg %p93
      %p100 = scmp.eq.s32.totalorder %s16, 1
      %p101 = por %p99, %p100
      %p102 = scmp.ne.s32.totalorder %s94, %s97
      %p103 = scmp.eq.s32.totalorder %s16, 0
      %p104 = por %p102, %p103
      %p105 = scmp.ne.s32.totalorder %s94, %s97
      %p106 = scmp.eq.s32.totalorder %s21, 1
      %p107 = por %p105, %p106
      %p108 = scmp.ne.s32.totalorder %s97, %s98
      %p109 = scmp.eq.s32.totalorder %s21, 0
      %p110 = por %p108, %p109
      %p111 = scmp.ne.s32.totalorder %s97, %s98
      %p112 = scmp.eq.s32.totalorder %s22, 1
      %p113 = por %p111, %p112
      %p115 = scmp.ne.s32.totalorder %s98, %s114
      %p116 = scmp.eq.s32.totalorder %s22, 0
      %p117 = por %p115, %p116
      %p118 = scmp.le.s32.totalorder 1, %s16
      %p119 = scmp.lt.s32.totalorder %s16, 3
      %p120 = pnand %p118, %p119
      %p121 = pneg %p120
      // Predicated region
      $region9: #{tpu_custom_call.1} parent=5 // pred_check
        _
      $region10: #{tpu_custom_call.1} parent=5 // pred_check_branch
        %123 = sbr.rel (%p120) target = $region12
      $region11: #{tpu_custom_call.1} parent=5 // pred_region
        %s124 = ssub.s32 %s16, 1
        // Predicated region
        $region13: #{tpu_custom_call.1} parent=11 // pred_check
          %p125 = pneg %p63
        $region14: #{tpu_custom_call.1} parent=11 // pred_check_branch
          %127 = sbr.rel (%p125) target = $region16
        $region15: #{tpu_custom_call.1} parent=11 // pred_region
          %s129 = ssub.s32 512, 512
          %130 = vsyncadd [#allocation8], %s129
          %s131 = sshll.u32 [#allocation7], 4
          %s132 = int_to_ptr.vmem [resolvable:$true] %s131
          %137 = dma.hbm_to_vmem [thread:$0]  %s1, 512, %s132, [#allocation8], 256, 256, 16
        $region16: #{tpu_custom_call.1} parent=11 // pred_fallthru
          _
        // Predicated region
        $region17: #{tpu_custom_call.1} parent=11 // pred_check
          %p138 = pneg %p84
        $region18: #{tpu_custom_call.1} parent=11 // pred_check_branch
          %140 = sbr.rel (%p138) target = $region20
        $region19: #{tpu_custom_call.1} parent=11 // pred_region
          %s142 = ssub.s32 256, 256
          %143 = vsyncadd [#allocation8], %s142
          %s144 = sshll.u32 [#allocation9], 4
          %s145 = int_to_ptr.vmem [resolvable:$true] %s144
          %150 = dma.hbm_to_vmem [thread:$0]  %s2, 256, %s145, [#allocation8], 128, 128, 8
        $region20: #{tpu_custom_call.1} parent=11 // pred_fallthru
          _
      $region12: #{tpu_custom_call.1} parent=5 // pred_fallthru
        _
      %p151 = scmp.lt.s32.totalorder %s16, 2
      // Predicated region
      $region21: #{tpu_custom_call.1} parent=5 // pred_check
        %p152 = pneg %p151
      $region22: #{tpu_custom_call.1} parent=5 // pred_check_branch
        %154 = sbr.rel (%p152) target = $region24
      $region23: #{tpu_custom_call.1} parent=5 // pred_region
        // Predicated region
        $region25: #{tpu_custom_call.1} parent=23 // pred_check
          %p155 = pneg %p36
        $region26: #{tpu_custom_call.1} parent=23 // pred_check_branch
          %157 = sbr.rel (%p155) target = $region28
        $region27: #{tpu_custom_call.1} parent=23 // pred_region
          %s158 = sand.u32 %s26, 1
          %s159 = scalar_lea.sflag [#allocation5], %s158
          %s160 = sand.u32 %s26, 1
          %s161 = smul.addr %s160, 64
          %s162 = scalar_lea.vmem [#allocation4], %s161
          %s164 = ssub.s32 1024, 1024
          %165 = vsyncadd %s159, %s164
          %s166 = smul.addr %s16, 8
          %s167 = smul.addr %s166, 128
          %s168 = scalar_lea.hbm %s0, %s167
          %s170 = sshll.u32 %s162, 4
          %s171 = int_to_ptr.vmem [resolvable:$true] %s170
          %173 = dma.hbm_to_vmem [thread:$0]  %s168, 1024, %s171, %s159
        $region28: #{tpu_custom_call.1} parent=23 // pred_fallthru
          _
      $region24: #{tpu_custom_call.1} parent=5 // pred_fallthru
        _
      %p174 = scmp.le.s32.totalorder 1, %s16
      %p175 = scmp.lt.s32.totalorder %s16, 3
      %p176 = pnand %p174, %p175
      %p177 = pneg %p176
      // Predicated region
      $region29: #{tpu_custom_call.1} parent=5 // pred_check
        _
      $region30: #{tpu_custom_call.1} parent=5 // pred_check_branch
        %179 = sbr.rel (%p176) target = $region32
      $region31: #{tpu_custom_call.1} parent=5 // pred_region
        %s180 = ssub.s32 %s16, 1
        %s181 = sand.u32 %s29, 1
        %s182 = scalar_lea.sflag [#allocation5], %s181
        %s183 = sand.u32 %s29, 1
        %s184 = smul.addr %s183, 64
        %s185 = scalar_lea.vmem [#allocation4], %s184
        // Predicated region
        $region33: #{tpu_custom_call.1} parent=31 // pred_check
          %p186 = pneg %p42
        $region34: #{tpu_custom_call.1} parent=31 // pred_check_branch
          %188 = sbr.rel (%p186) target = $region36
        $region35: #{tpu_custom_call.1} parent=31 // pred_region
          %189 = dma.done %s182, 1024
        $region36: #{tpu_custom_call.1} parent=31 // pred_fallthru
          _
        // Predicated region
        $region37: #{tpu_custom_call.1} parent=31 // pred_check
          %p190 = pneg %p63
        $region38: #{tpu_custom_call.1} parent=31 // pred_check_branch
          %192 = sbr.rel (%p190) target = $region40
        $region39: #{tpu_custom_call.1} parent=31 // pred_region
          %193 = dma.done [#allocation8], 512
        $region40: #{tpu_custom_call.1} parent=31 // pred_fallthru
          _
        // Predicated region
        $region41: #{tpu_custom_call.1} parent=31 // pred_check
          %p194 = pneg %p84
        $region42: #{tpu_custom_call.1} parent=31 // pred_check_branch
          %196 = sbr.rel (%p194) target = $region44
        $region43: #{tpu_custom_call.1} parent=31 // pred_region
          %197 = dma.done [#allocation8], 256
        $region44: #{tpu_custom_call.1} parent=31 // pred_fallthru
          _
        %s198 = sand.u32 %s29, 1
        %s199 = scalar_lea.sflag [#allocation5], %s198
        %s200 = sand.u32 %s29, 1
        %s201 = smul.addr %s200, 64
        %s202 = scalar_lea.vmem [#allocation4], %s201
        %p203 = pneg %p42
        %p204 = pneg %p39
        %p205 = pneg %p63
        %p206 = pneg %p60
        %p207 = pneg %p84
        %p208 = pneg %p81
        %p209 = pneg %p110
        %p210 = pneg %p107
        %s211 = sand.u32 %s97, 1
        %s212 = scalar_lea.sflag [#allocation6], %s211
        %s213 = sand.u32 %s97, 1
        %s214 = smul.addr %s213, 64
        %s215 = scalar_lea.vmem [#allocation10], %s214
        %216 = vst [vmem:[#allocation2] sm:$0xff] 0.0
        %217 = vst [vmem:[#allocation2 + $0x8] sm:$0xff] 0.0
        %218 = vst [vmem:[#allocation2 + $0x10] sm:$0xff] 0.0
        %219 = vst [vmem:[#allocation2 + $0x18] sm:$0xff] 0.0
        %220 = vst [vmem:[#allocation2 + $0x20] sm:$0xff] 0.0
        %221 = vst [vmem:[#allocation2 + $0x28] sm:$0xff] 0.0
        %222 = vst [vmem:[#allocation2 + $0x30] sm:$0xff] 0.0
        %223 = vst [vmem:[#allocation2 + $0x38] sm:$0xff] 0.0
        %224 = vst [vmem:[#allocation2 + $0x40] sm:$0xff] 0.0
        %vm225 = vcmask 769024
        %226 = vst.msk [vmem:[#allocation2 + $0x48] sm:$0xff] %vm225, 0.0
        %v227 = vld [vmem:[%s185] sm:$0xff]
        %v228 = vld [vmem:[%s185 + $0x8] sm:$0xff]
        %v229 = vld [vmem:[%s185 + $0x10] sm:$0xff]
        %v230 = vld [vmem:[%s185 + $0x18] sm:$0xff]
        %v231 = vld [vmem:[%s185 + $0x20] sm:$0xff]
        %v232 = vld [vmem:[%s185 + $0x28] sm:$0xff]
        %v233 = vld [vmem:[%s185 + $0x30] sm:$0xff]
        %v234 = vld [vmem:[%s185 + $0x38] sm:$0xff]
        %243 = vrot.lane.b32.xlu0 %v227, 111
        %v244 = vpop.permute.xlu0 %243
        %245 = vrot.lane.b32.xlu0 %v228, 111
        %v246 = vpop.permute.xlu0 %245
        %247 = vrot.lane.b32.xlu0 %v229, 111
        %v248 = vpop.permute.xlu0 %247
        %249 = vrot.lane.b32.xlu0 %v230, 111
        %v250 = vpop.permute.xlu0 %249
        %251 = vrot.lane.b32.xlu0 %v231, 111
        %v252 = vpop.permute.xlu0 %251
        %253 = vrot.lane.b32.xlu0 %v232, 111
        %v254 = vpop.permute.xlu0 %253
        %255 = vrot.lane.b32.xlu0 %v233, 111
        %v256 = vpop.permute.xlu0 %255
        %257 = vrot.lane.b32.xlu0 %v234, 111
        %v258 = vpop.permute.xlu0 %257
        %vm259 = vcmask 908288
        %v260 = vsel %vm259, %v244, %v246
        %v261 = vsel %vm259, %v246, %v248
        %v262 = vsel %vm259, %v248, %v250
        %v263 = vsel %vm259, %v250, %v252
        %v264 = vsel %vm259, %v252, %v254
        %v265 = vsel %vm259, %v254, %v256
        %v266 = vsel %vm259, %v256, %v258
        %vm276 = vcmask 1048440
        %277 = vst.msk [vmem:[#allocation2] sm:$0xff] %vm276, %v244
        %278 = vst [vmem:[#allocation2 + $0x8] sm:$0xff] %v260
        %279 = vst [vmem:[#allocation2 + $0x10] sm:$0xff] %v261
        %280 = vst [vmem:[#allocation2 + $0x18] sm:$0xff] %v262
        %281 = vst [vmem:[#allocation2 + $0x20] sm:$0xff] %v263
        %282 = vst [vmem:[#allocation2 + $0x28] sm:$0xff] %v264
        %283 = vst [vmem:[#allocation2 + $0x30] sm:$0xff] %v265
        %284 = vst [vmem:[#allocation2 + $0x38] sm:$0xff] %v266
        %285 = vst.msk [vmem:[#allocation2 + $0x40] sm:$0xff] %vm259, %v258
        %v286 = vld [vmem:[#allocation2] sm:$0xff]
        %v287 = vld [vmem:[#allocation2 + $0x8] sm:$0xff]
        %v288 = vld [vmem:[#allocation2 + $0x10] sm:$0xff]
        %v289 = vld [vmem:[#allocation2 + $0x18] sm:$0xff]
        %v290 = vld [vmem:[#allocation2 + $0x20] sm:$0xff]
        %v291 = vld [vmem:[#allocation2 + $0x28] sm:$0xff]
        %v292 = vld [vmem:[#allocation2 + $0x30] sm:$0xff]
        %v293 = vld [vmem:[#allocation2 + $0x38] sm:$0xff]
        %294 = vst [vmem:[#allocation3] sm:$0xff] %v286
        %295 = vst [vmem:[#allocation3 + $0x8] sm:$0xff] %v287
        %296 = vst [vmem:[#allocation3 + $0x10] sm:$0xff] %v288
        %297 = vst [vmem:[#allocation3 + $0x18] sm:$0xff] %v289
        %298 = vst [vmem:[#allocation3 + $0x20] sm:$0xff] %v290
        %299 = vst [vmem:[#allocation3 + $0x28] sm:$0xff] %v291
        %300 = vst [vmem:[#allocation3 + $0x30] sm:$0xff] %v292
        %301 = vst [vmem:[#allocation3 + $0x38] sm:$0xff] %v293
        %v302 = vld [vmem:[#allocation2] sm:$0xff]
        %v303 = vld [vmem:[#allocation2 + $0x8] sm:$0xff]
        %v304 = vld [vmem:[#allocation2 + $0x10] sm:$0xff]
        %v305 = vld [vmem:[#allocation2 + $0x18] sm:$0xff]
        %v306 = vld [vmem:[#allocation2 + $0x20] sm:$0xff]
        %v307 = vld [vmem:[#allocation2 + $0x28] sm:$0xff]
        %v308 = vld [vmem:[#allocation2 + $0x30] sm:$0xff]
        %v309 = vld [vmem:[#allocation2 + $0x38] sm:$0xff]
        %v310 = vld [vmem:[#allocation2 + $0x40] sm:$0xff]
        %320 = vrot.lane.b32.xlu0 %v302, 127
        %v321 = vpop.permute.xlu0 %320
        %322 = vrot.lane.b32.xlu0 %v303, 127
        %v323 = vpop.permute.xlu0 %322
        %324 = vrot.lane.b32.xlu0 %v304, 127
        %v325 = vpop.permute.xlu0 %324
        %326 = vrot.lane.b32.xlu0 %v305, 127
        %v327 = vpop.permute.xlu0 %326
        %328 = vrot.lane.b32.xlu0 %v306, 127
        %v329 = vpop.permute.xlu0 %328
        %330 = vrot.lane.b32.xlu0 %v307, 127
        %v331 = vpop.permute.xlu0 %330
        %332 = vrot.lane.b32.xlu0 %v308, 127
        %v333 = vpop.permute.xlu0 %332
        %334 = vrot.lane.b32.xlu0 %v309, 127
        %v335 = vpop.permute.xlu0 %334
        %336 = vrot.lane.b32.xlu0 %v310, 127
        %v337 = vpop.permute.xlu0 %336
        %vm338 = vcmask 1039360
        %v339 = vsel %vm338, %v321, %v323
        %v340 = vsel %vm338, %v323, %v325
        %v341 = vsel %vm338, %v325, %v327
        %v342 = vsel %vm338, %v327, %v329
        %v343 = vsel %vm338, %v329, %v331
        %v344 = vsel %vm338, %v331, %v333
        %v345 = vsel %vm338, %v333, %v335
        %v346 = vsel %vm338, %v335, %v337
        %355 = vst [vmem:[#allocation3 + $0x40] sm:$0xff] %v339
        %356 = vst [vmem:[#allocation3 + $0x48] sm:$0xff] %v340
        %357 = vst [vmem:[#allocation3 + $0x50] sm:$0xff] %v341
        %358 = vst [vmem:[#allocation3 + $0x58] sm:$0xff] %v342
        %359 = vst [vmem:[#allocation3 + $0x60] sm:$0xff] %v343
        %360 = vst [vmem:[#allocation3 + $0x68] sm:$0xff] %v344
        %361 = vst [vmem:[#allocation3 + $0x70] sm:$0xff] %v345
        %362 = vst [vmem:[#allocation3 + $0x78] sm:$0xff] %v346
        %v363 = vld [vmem:[#allocation2] sm:$0xff]
        %v364 = vld [vmem:[#allocation2 + $0x8] sm:$0xff]
        %v365 = vld [vmem:[#allocation2 + $0x10] sm:$0xff]
        %v366 = vld [vmem:[#allocation2 + $0x18] sm:$0xff]
        %v367 = vld [vmem:[#allocation2 + $0x20] sm:$0xff]
        %v368 = vld [vmem:[#allocation2 + $0x28] sm:$0xff]
        %v369 = vld [vmem:[#allocation2 + $0x30] sm:$0xff]
        %v370 = vld [vmem:[#allocation2 + $0x38] sm:$0xff]
        %v371 = vld [vmem:[#allocation2 + $0x40] sm:$0xff]
        %381 = vrot.lane.b32.xlu0 %v363, 126
        %v382 = vpop.permute.xlu0 %381
        %383 = vrot.lane.b32.xlu0 %v364, 126
        %v384 = vpop.permute.xlu0 %383
        %385 = vrot.lane.b32.xlu0 %v365, 126
        %v386 = vpop.permute.xlu0 %385
        %387 = vrot.lane.b32.xlu0 %v366, 126
        %v388 = vpop.permute.xlu0 %387
        %389 = vrot.lane.b32.xlu0 %v367, 126
        %v390 = vpop.permute.xlu0 %389
        %391 = vrot.lane.b32.xlu0 %v368, 126
        %v392 = vpop.permute.xlu0 %391
        %393 = vrot.lane.b32.xlu0 %v369, 126
        %v394 = vpop.permute.xlu0 %393
        %395 = vrot.lane.b32.xlu0 %v370, 126
        %v396 = vpop.permute.xlu0 %395
        %397 = vrot.lane.b32.xlu0 %v371, 126
        %v398 = vpop.permute.xlu0 %397
        %vm399 = vcmask 1031168
        %v400 = vsel %vm399, %v382, %v384
        %v401 = vsel %vm399, %v384, %v386
        %v402 = vsel %vm399, %v386, %v388
        %v403 = vsel %vm399, %v388, %v390
        %v404 = vsel %vm399, %v390, %v392
        %v405 = vsel %vm399, %v392, %v394
        %v406 = vsel %vm399, %v394, %v396
        %v407 = vsel %vm399, %v396, %v398
        %416 = vst [vmem:[#allocation3 + $0x80] sm:$0xff] %v400
        %417 = vst [vmem:[#allocation3 + $0x88] sm:$0xff] %v401
        %418 = vst [vmem:[#allocation3 + $0x90] sm:$0xff] %v402
        %419 = vst [vmem:[#allocation3 + $0x98] sm:$0xff] %v403
        %420 = vst [vmem:[#allocation3 + $0xa0] sm:$0xff] %v404
        %421 = vst [vmem:[#allocation3 + $0xa8] sm:$0xff] %v405
        %422 = vst [vmem:[#allocation3 + $0xb0] sm:$0xff] %v406
        %423 = vst [vmem:[#allocation3 + $0xb8] sm:$0xff] %v407
        %v424 = vld [vmem:[#allocation2] sm:$0xff]
        %v425 = vld [vmem:[#allocation2 + $0x8] sm:$0xff]
        %v426 = vld [vmem:[#allocation2 + $0x10] sm:$0xff]
        %v427 = vld [vmem:[#allocation2 + $0x18] sm:$0xff]
        %v428 = vld [vmem:[#allocation2 + $0x20] sm:$0xff]
        %v429 = vld [vmem:[#allocation2 + $0x28] sm:$0xff]
        %v430 = vld [vmem:[#allocation2 + $0x30] sm:$0xff]
        %v431 = vld [vmem:[#allocation2 + $0x38] sm:$0xff]
        %v432 = vld [vmem:[#allocation2 + $0x40] sm:$0xff]
        %442 = vrot.lane.b32.xlu0 %v424, 118
        %v443 = vpop.permute.xlu0 %442
        %444 = vrot.lane.b32.xlu0 %v425, 118
        %v445 = vpop.permute.xlu0 %444
        %446 = vrot.lane.b32.xlu0 %v426, 118
        %v447 = vpop.permute.xlu0 %446
        %448 = vrot.lane.b32.xlu0 %v427, 118
        %v449 = vpop.permute.xlu0 %448
        %450 = vrot.lane.b32.xlu0 %v428, 118
        %v451 = vpop.permute.xlu0 %450
        %452 = vrot.lane.b32.xlu0 %v429, 118
        %v453 = vpop.permute.xlu0 %452
        %454 = vrot.lane.b32.xlu0 %v430, 118
        %v455 = vpop.permute.xlu0 %454
        %456 = vrot.lane.b32.xlu0 %v431, 118
        %v457 = vpop.permute.xlu0 %456
        %458 = vrot.lane.b32.xlu0 %v432, 118
        %v459 = vpop.permute.xlu0 %458
        %vm460 = vcmask 965632
        %v461 = vsel %vm460, %v443, %v445
        %v462 = vsel %vm460, %v445, %v447
        %v463 = vsel %vm460, %v447, %v449
        %v464 = vsel %vm460, %v449, %v451
        %v465 = vsel %vm460, %v451, %v453
        %v466 = vsel %vm460, %v453, %v455
        %v467 = vsel %vm460, %v455, %v457
        %v468 = vsel %vm460, %v457, %v459
        %477 = vst [vmem:[#allocation3 + $0xc0] sm:$0xff] %v461
        %478 = vst [vmem:[#allocation3 + $0xc8] sm:$0xff] %v462
        %479 = vst [vmem:[#allocation3 + $0xd0] sm:$0xff] %v463
        %480 = vst [vmem:[#allocation3 + $0xd8] sm:$0xff] %v464
        %481 = vst [vmem:[#allocation3 + $0xe0] sm:$0xff] %v465
        %482 = vst [vmem:[#allocation3 + $0xe8] sm:$0xff] %v466
        %483 = vst [vmem:[#allocation3 + $0xf0] sm:$0xff] %v467
        %484 = vst [vmem:[#allocation3 + $0xf8] sm:$0xff] %v468
        %v485 = vld [vmem:[#allocation2] sm:$0xff]
        %v486 = vld [vmem:[#allocation2 + $0x8] sm:$0xff]
        %v487 = vld [vmem:[#allocation2 + $0x10] sm:$0xff]
        %v488 = vld [vmem:[#allocation2 + $0x18] sm:$0xff]
        %v489 = vld [vmem:[#allocation2 + $0x20] sm:$0xff]
        %v490 = vld [vmem:[#allocation2 + $0x28] sm:$0xff]
        %v491 = vld [vmem:[#allocation2 + $0x30] sm:$0xff]
        %v492 = vld [vmem:[#allocation2 + $0x38] sm:$0xff]
        %v493 = vld [vmem:[#allocation2 + $0x40] sm:$0xff]
        %503 = vrot.lane.b32.xlu0 %v485, 117
        %v504 = vpop.permute.xlu0 %503
        %505 = vrot.lane.b32.xlu0 %v486, 117
        %v506 = vpop.permute.xlu0 %505
        %507 = vrot.lane.b32.xlu0 %v487, 117
        %v508 = vpop.permute.xlu0 %507
        %509 = vrot.lane.b32.xlu0 %v488, 117
        %v510 = vpop.permute.xlu0 %509
        %511 = vrot.lane.b32.xlu0 %v489, 117
        %v512 = vpop.permute.xlu0 %511
        %513 = vrot.lane.b32.xlu0 %v490, 117
        %v514 = vpop.permute.xlu0 %513
        %515 = vrot.lane.b32.xlu0 %v491, 117
        %v516 = vpop.permute.xlu0 %515
        %517 = vrot.lane.b32.xlu0 %v492, 117
        %v518 = vpop.permute.xlu0 %517
        %519 = vrot.lane.b32.xlu0 %v493, 117
        %v520 = vpop.permute.xlu0 %519
        %vm521 = vcmask 957440
        %v522 = vsel %vm521, %v504, %v506
        %v523 = vsel %vm521, %v506, %v508
        %v524 = vsel %vm521, %v508, %v510
        %v525 = vsel %vm521, %v510, %v512
        %v526 = vsel %vm521, %v512, %v514
        %v527 = vsel %vm521, %v514, %v516
        %v528 = vsel %vm521, %v516, %v518
        %v529 = vsel %vm521, %v518, %v520
        %538 = vst [vmem:[#allocation3 + $0x100] sm:$0xff] %v522
        %539 = vst [vmem:[#allocation3 + $0x108] sm:$0xff] %v523
        %540 = vst [vmem:[#allocation3 + $0x110] sm:$0xff] %v524
        %541 = vst [vmem:[#allocation3 + $0x118] sm:$0xff] %v525
        %542 = vst [vmem:[#allocation3 + $0x120] sm:$0xff] %v526
        %543 = vst [vmem:[#allocation3 + $0x128] sm:$0xff] %v527
        %544 = vst [vmem:[#allocation3 + $0x130] sm:$0xff] %v528
        %545 = vst [vmem:[#allocation3 + $0x138] sm:$0xff] %v529
        %v546 = vld [vmem:[#allocation2] sm:$0xff]
        %v547 = vld [vmem:[#allocation2 + $0x8] sm:$0xff]
        %v548 = vld [vmem:[#allocation2 + $0x10] sm:$0xff]
        %v549 = vld [vmem:[#allocation2 + $0x18] sm:$0xff]
        %v550 = vld [vmem:[#allocation2 + $0x20] sm:$0xff]
        %v551 = vld [vmem:[#allocation2 + $0x28] sm:$0xff]
        %v552 = vld [vmem:[#allocation2 + $0x30] sm:$0xff]
        %v553 = vld [vmem:[#allocation2 + $0x38] sm:$0xff]
        %v554 = vld [vmem:[#allocation2 + $0x40] sm:$0xff]
        %564 = vrot.lane.b32.xlu0 %v546, 116
        %v565 = vpop.permute.xlu0 %564
        %566 = vrot.lane.b32.xlu0 %v547, 116
        %v567 = vpop.permute.xlu0 %566
        %568 = vrot.lane.b32.xlu0 %v548, 116
        %v569 = vpop.permute.xlu0 %568
        %570 = vrot.lane.b32.xlu0 %v549, 116
        %v571 = vpop.permute.xlu0 %570
        %572 = vrot.lane.b32.xlu0 %v550, 116
        %v573 = vpop.permute.xlu0 %572
        %574 = vrot.lane.b32.xlu0 %v551, 116
        %v575 = vpop.permute.xlu0 %574
        %576 = vrot.lane.b32.xlu0 %v552, 116
        %v577 = vpop.permute.xlu0 %576
        %578 = vrot.lane.b32.xlu0 %v553, 116
        %v579 = vpop.permute.xlu0 %578
        %580 = vrot.lane.b32.xlu0 %v554, 116
        %v581 = vpop.permute.xlu0 %580
        %vm582 = vcmask 949248
        %v583 = vsel %vm582, %v565, %v567
        %v584 = vsel %vm582, %v567, %v569
        %v585 = vsel %vm582, %v569, %v571
        %v586 = vsel %vm582, %v571, %v573
        %v587 = vsel %vm582, %v573, %v575
        %v588 = vsel %vm582, %v575, %v577
        %v589 = vsel %vm582, %v577, %v579
        %v590 = vsel %vm582, %v579, %v581
        %599 = vst [vmem:[#allocation3 + $0x140] sm:$0xff] %v583
        %600 = vst [vmem:[#allocation3 + $0x148] sm:$0xff] %v584
        %601 = vst [vmem:[#allocation3 + $0x150] sm:$0xff] %v585
        %602 = vst [vmem:[#allocation3 + $0x158] sm:$0xff] %v586
        %603 = vst [vmem:[#allocation3 + $0x160] sm:$0xff] %v587
        %604 = vst [vmem:[#allocation3 + $0x168] sm:$0xff] %v588
        %605 = vst [vmem:[#allocation3 + $0x170] sm:$0xff] %v589
        %606 = vst [vmem:[#allocation3 + $0x178] sm:$0xff] %v590
        %v607 = vld [vmem:[#allocation2] sm:$0xff]
        %v608 = vld [vmem:[#allocation2 + $0x8] sm:$0xff]
        %v609 = vld [vmem:[#allocation2 + $0x10] sm:$0xff]
        %v610 = vld [vmem:[#allocation2 + $0x18] sm:$0xff]
        %v611 = vld [vmem:[#allocation2 + $0x20] sm:$0xff]
        %v612 = vld [vmem:[#allocation2 + $0x28] sm:$0xff]
        %v613 = vld [vmem:[#allocation2 + $0x30] sm:$0xff]
        %v614 = vld [vmem:[#allocation2 + $0x38] sm:$0xff]
        %v615 = vld [vmem:[#allocation2 + $0x40] sm:$0xff]
        %625 = vrot.lane.b32.xlu0 %v607, 108
        %v626 = vpop.permute.xlu0 %625
        %627 = vrot.lane.b32.xlu0 %v608, 108
        %v628 = vpop.permute.xlu0 %627
        %629 = vrot.lane.b32.xlu0 %v609, 108
        %v630 = vpop.permute.xlu0 %629
        %631 = vrot.lane.b32.xlu0 %v610, 108
        %v632 = vpop.permute.xlu0 %631
        %633 = vrot.lane.b32.xlu0 %v611, 108
        %v634 = vpop.permute.xlu0 %633
        %635 = vrot.lane.b32.xlu0 %v612, 108
        %v636 = vpop.permute.xlu0 %635
        %637 = vrot.lane.b32.xlu0 %v613, 108
        %v638 = vpop.permute.xlu0 %637
        %639 = vrot.lane.b32.xlu0 %v614, 108
        %v640 = vpop.permute.xlu0 %639
        %641 = vrot.lane.b32.xlu0 %v615, 108
        %v642 = vpop.permute.xlu0 %641
        %vm643 = vcmask 883712
        %v644 = vsel %vm643, %v626, %v628
        %v645 = vsel %vm643, %v628, %v630
        %v646 = vsel %vm643, %v630, %v632
        %v647 = vsel %vm643, %v632, %v634
        %v648 = vsel %vm643, %v634, %v636
        %v649 = vsel %vm643, %v636, %v638
        %v650 = vsel %vm643, %v638, %v640
        %v651 = vsel %vm643, %v640, %v642
        %660 = vst [vmem:[#allocation3 + $0x180] sm:$0xff] %v644
        %661 = vst [vmem:[#allocation3 + $0x188] sm:$0xff] %v645
        %662 = vst [vmem:[#allocation3 + $0x190] sm:$0xff] %v646
        %663 = vst [vmem:[#allocation3 + $0x198] sm:$0xff] %v647
        %664 = vst [vmem:[#allocation3 + $0x1a0] sm:$0xff] %v648
        %665 = vst [vmem:[#allocation3 + $0x1a8] sm:$0xff] %v649
        %666 = vst [vmem:[#allocation3 + $0x1b0] sm:$0xff] %v650
        %667 = vst [vmem:[#allocation3 + $0x1b8] sm:$0xff] %v651
        %v668 = vld [vmem:[#allocation2] sm:$0xff]
        %v669 = vld [vmem:[#allocation2 + $0x8] sm:$0xff]
        %v670 = vld [vmem:[#allocation2 + $0x10] sm:$0xff]
        %v671 = vld [vmem:[#allocation2 + $0x18] sm:$0xff]
        %v672 = vld [vmem:[#allocation2 + $0x20] sm:$0xff]
        %v673 = vld [vmem:[#allocation2 + $0x28] sm:$0xff]
        %v674 = vld [vmem:[#allocation2 + $0x30] sm:$0xff]
        %v675 = vld [vmem:[#allocation2 + $0x38] sm:$0xff]
        %v676 = vld [vmem:[#allocation2 + $0x40] sm:$0xff]
        %686 = vrot.lane.b32.xlu0 %v668, 107
        %v687 = vpop.permute.xlu0 %686
        %688 = vrot.lane.b32.xlu0 %v669, 107
        %v689 = vpop.permute.xlu0 %688
        %690 = vrot.lane.b32.xlu0 %v670, 107
        %v691 = vpop.permute.xlu0 %690
        %692 = vrot.lane.b32.xlu0 %v671, 107
        %v693 = vpop.permute.xlu0 %692
        %694 = vrot.lane.b32.xlu0 %v672, 107
        %v695 = vpop.permute.xlu0 %694
        %696 = vrot.lane.b32.xlu0 %v673, 107
        %v697 = vpop.permute.xlu0 %696
        %698 = vrot.lane.b32.xlu0 %v674, 107
        %v699 = vpop.permute.xlu0 %698
        %700 = vrot.lane.b32.xlu0 %v675, 107
        %v701 = vpop.permute.xlu0 %700
        %702 = vrot.lane.b32.xlu0 %v676, 107
        %v703 = vpop.permute.xlu0 %702
        %vm704 = vcmask 875520
        %v705 = vsel %vm704, %v687, %v689
        %v706 = vsel %vm704, %v689, %v691
        %v707 = vsel %vm704, %v691, %v693
        %v708 = vsel %vm704, %v693, %v695
        %v709 = vsel %vm704, %v695, %v697
        %v710 = vsel %vm704, %v697, %v699
        %v711 = vsel %vm704, %v699, %v701
        %v712 = vsel %vm704, %v701, %v703
        %721 = vst [vmem:[#allocation3 + $0x1c0] sm:$0xff] %v705
        %722 = vst [vmem:[#allocation3 + $0x1c8] sm:$0xff] %v706
        %723 = vst [vmem:[#allocation3 + $0x1d0] sm:$0xff] %v707
        %724 = vst [vmem:[#allocation3 + $0x1d8] sm:$0xff] %v708
        %725 = vst [vmem:[#allocation3 + $0x1e0] sm:$0xff] %v709
        %726 = vst [vmem:[#allocation3 + $0x1e8] sm:$0xff] %v710
        %727 = vst [vmem:[#allocation3 + $0x1f0] sm:$0xff] %v711
        %728 = vst [vmem:[#allocation3 + $0x1f8] sm:$0xff] %v712
        %v729 = vld [vmem:[#allocation2] sm:$0xff]
        %v730 = vld [vmem:[#allocation2 + $0x8] sm:$0xff]
        %v731 = vld [vmem:[#allocation2 + $0x10] sm:$0xff]
        %v732 = vld [vmem:[#allocation2 + $0x18] sm:$0xff]
        %v733 = vld [vmem:[#allocation2 + $0x20] sm:$0xff]
        %v734 = vld [vmem:[#allocation2 + $0x28] sm:$0xff]
        %v735 = vld [vmem:[#allocation2 + $0x30] sm:$0xff]
        %v736 = vld [vmem:[#allocation2 + $0x38] sm:$0xff]
        %v737 = vld [vmem:[#allocation2 + $0x40] sm:$0xff]
        %747 = vrot.lane.b32.xlu0 %v729, 106
        %v748 = vpop.permute.xlu0 %747
        %749 = vrot.lane.b32.xlu0 %v730, 106
        %v750 = vpop.permute.xlu0 %749
        %751 = vrot.lane.b32.xlu0 %v731, 106
        %v752 = vpop.permute.xlu0 %751
        %753 = vrot.lane.b32.xlu0 %v732, 106
        %v754 = vpop.permute.xlu0 %753
        %755 = vrot.lane.b32.xlu0 %v733, 106
        %v756 = vpop.permute.xlu0 %755
        %757 = vrot.lane.b32.xlu0 %v734, 106
        %v758 = vpop.permute.xlu0 %757
        %759 = vrot.lane.b32.xlu0 %v735, 106
        %v760 = vpop.permute.xlu0 %759
        %761 = vrot.lane.b32.xlu0 %v736, 106
        %v762 = vpop.permute.xlu0 %761
        %763 = vrot.lane.b32.xlu0 %v737, 106
        %v764 = vpop.permute.xlu0 %763
        %vm765 = vcmask 867328
        %v766 = vsel %vm765, %v748, %v750
        %v767 = vsel %vm765, %v750, %v752
        %v768 = vsel %vm765, %v752, %v754
        %v769 = vsel %vm765, %v754, %v756
        %v770 = vsel %vm765, %v756, %v758
        %v771 = vsel %vm765, %v758, %v760
        %v772 = vsel %vm765, %v760, %v762
        %v773 = vsel %vm765, %v762, %v764
        %782 = vst [vmem:[#allocation3 + $0x200] sm:$0xff] %v766
        %783 = vst [vmem:[#allocation3 + $0x208] sm:$0xff] %v767
        %784 = vst [vmem:[#allocation3 + $0x210] sm:$0xff] %v768
        %785 = vst [vmem:[#allocation3 + $0x218] sm:$0xff] %v769
        %786 = vst [vmem:[#allocation3 + $0x220] sm:$0xff] %v770
        %787 = vst [vmem:[#allocation3 + $0x228] sm:$0xff] %v771
        %788 = vst [vmem:[#allocation3 + $0x230] sm:$0xff] %v772
        %789 = vst [vmem:[#allocation3 + $0x238] sm:$0xff] %v773
        %v790 = vld [vmem:[#allocation2] sm:$0xff]
        %v791 = vld [vmem:[#allocation2 + $0x8] sm:$0xff]
        %v792 = vld [vmem:[#allocation2 + $0x10] sm:$0xff]
        %v793 = vld [vmem:[#allocation2 + $0x18] sm:$0xff]
        %v794 = vld [vmem:[#allocation2 + $0x20] sm:$0xff]
        %v795 = vld [vmem:[#allocation2 + $0x28] sm:$0xff]
        %v796 = vld [vmem:[#allocation2 + $0x30] sm:$0xff]
        %v797 = vld [vmem:[#allocation2 + $0x38] sm:$0xff]
        %v798 = vld [vmem:[#allocation2 + $0x40] sm:$0xff]
        %808 = vrot.lane.b32.xlu0 %v790, 28
        %v809 = vpop.permute.xlu0 %808
        %810 = vrot.lane.b32.xlu0 %v791, 28
        %v811 = vpop.permute.xlu0 %810
        %812 = vrot.lane.b32.xlu0 %v792, 28
        %v813 = vpop.permute.xlu0 %812
        %814 = vrot.lane.b32.xlu0 %v793, 28
        %v815 = vpop.permute.xlu0 %814
        %816 = vrot.lane.b32.xlu0 %v794, 28
        %v817 = vpop.permute.xlu0 %816
        %818 = vrot.lane.b32.xlu0 %v795, 28
        %v819 = vpop.permute.xlu0 %818
        %820 = vrot.lane.b32.xlu0 %v796, 28
        %v821 = vpop.permute.xlu0 %820
        %822 = vrot.lane.b32.xlu0 %v797, 28
        %v823 = vpop.permute.xlu0 %822
        %824 = vrot.lane.b32.xlu0 %v798, 28
        %v825 = vpop.permute.xlu0 %824
        %vm826 = vcmask 228352
        %v827 = vsel %vm826, %v809, %v811
        %v828 = vsel %vm826, %v811, %v813
        %v829 = vsel %vm826, %v813, %v815
        %v830 = vsel %vm826, %v815, %v817
        %v831 = vsel %vm826, %v817, %v819
        %v832 = vsel %vm826, %v819, %v821
        %v833 = vsel %vm826, %v821, %v823
        %v834 = vsel %vm826, %v823, %v825
        %843 = vst [vmem:[#allocation3 + $0x240] sm:$0xff] %v827
        %844 = vst [vmem:[#allocation3 + $0x248] sm:$0xff] %v828
        %845 = vst [vmem:[#allocation3 + $0x250] sm:$0xff] %v829
        %846 = vst [vmem:[#allocation3 + $0x258] sm:$0xff] %v830
        %847 = vst [vmem:[#allocation3 + $0x260] sm:$0xff] %v831
        %848 = vst [vmem:[#allocation3 + $0x268] sm:$0xff] %v832
        %849 = vst [vmem:[#allocation3 + $0x270] sm:$0xff] %v833
        %850 = vst [vmem:[#allocation3 + $0x278] sm:$0xff] %v834
        %v851 = vld [vmem:[#allocation2] sm:$0xff]
        %v852 = vld [vmem:[#allocation2 + $0x8] sm:$0xff]
        %v853 = vld [vmem:[#allocation2 + $0x10] sm:$0xff]
        %v854 = vld [vmem:[#allocation2 + $0x18] sm:$0xff]
        %v855 = vld [vmem:[#allocation2 + $0x20] sm:$0xff]
        %v856 = vld [vmem:[#allocation2 + $0x28] sm:$0xff]
        %v857 = vld [vmem:[#allocation2 + $0x30] sm:$0xff]
        %v858 = vld [vmem:[#allocation2 + $0x38] sm:$0xff]
        %v859 = vld [vmem:[#allocation2 + $0x40] sm:$0xff]
        %869 = vrot.lane.b32.xlu0 %v851, 27
        %v870 = vpop.permute.xlu0 %869
        %871 = vrot.lane.b32.xlu0 %v852, 27
        %v872 = vpop.permute.xlu0 %871
        %873 = vrot.lane.b32.xlu0 %v853, 27
        %v874 = vpop.permute.xlu0 %873
        %875 = vrot.lane.b32.xlu0 %v854, 27
        %v876 = vpop.permute.xlu0 %875
        %877 = vrot.lane.b32.xlu0 %v855, 27
        %v878 = vpop.permute.xlu0 %877
        %879 = vrot.lane.b32.xlu0 %v856, 27
        %v880 = vpop.permute.xlu0 %879
        %881 = vrot.lane.b32.xlu0 %v857, 27
        %v882 = vpop.permute.xlu0 %881
        %883 = vrot.lane.b32.xlu0 %v858, 27
        %v884 = vpop.permute.xlu0 %883
        %885 = vrot.lane.b32.xlu0 %v859, 27
        %v886 = vpop.permute.xlu0 %885
        %vm887 = vcmask 220160
        %v888 = vsel %vm887, %v870, %v872
        %v889 = vsel %vm887, %v872, %v874
        %v890 = vsel %vm887, %v874, %v876
        %v891 = vsel %vm887, %v876, %v878
        %v892 = vsel %vm887, %v878, %v880
        %v893 = vsel %vm887, %v880, %v882
        %v894 = vsel %vm887, %v882, %v884
        %v895 = vsel %vm887, %v884, %v886
        %904 = vst [vmem:[#allocation3 + $0x280] sm:$0xff] %v888
        %905 = vst [vmem:[#allocation3 + $0x288] sm:$0xff] %v889
        %906 = vst [vmem:[#allocation3 + $0x290] sm:$0xff] %v890
        %907 = vst [vmem:[#allocation3 + $0x298] sm:$0xff] %v891
        %908 = vst [vmem:[#allocation3 + $0x2a0] sm:$0xff] %v892
        %909 = vst [vmem:[#allocation3 + $0x2a8] sm:$0xff] %v893
        %910 = vst [vmem:[#allocation3 + $0x2b0] sm:$0xff] %v894
        %911 = vst [vmem:[#allocation3 + $0x2b8] sm:$0xff] %v895
        %v912 = vld [vmem:[#allocation2] sm:$0xff]
        %v913 = vld [vmem:[#allocation2 + $0x8] sm:$0xff]
        %v914 = vld [vmem:[#allocation2 + $0x10] sm:$0xff]
        %v915 = vld [vmem:[#allocation2 + $0x18] sm:$0xff]
        %v916 = vld [vmem:[#allocation2 + $0x20] sm:$0xff]
        %v917 = vld [vmem:[#allocation2 + $0x28] sm:$0xff]
        %v918 = vld [vmem:[#allocation2 + $0x30] sm:$0xff]
        %v919 = vld [vmem:[#allocation2 + $0x38] sm:$0xff]
        %v920 = vld [vmem:[#allocation2 + $0x40] sm:$0xff]
        %930 = vrot.lane.b32.xlu0 %v912, 26
        %v931 = vpop.permute.xlu0 %930
        %932 = vrot.lane.b32.xlu0 %v913, 26
        %v933 = vpop.permute.xlu0 %932
        %934 = vrot.lane.b32.xlu0 %v914, 26
        %v935 = vpop.permute.xlu0 %934
        %936 = vrot.lane.b32.xlu0 %v915, 26
        %v937 = vpop.permute.xlu0 %936
        %938 = vrot.lane.b32.xlu0 %v916, 26
        %v939 = vpop.permute.xlu0 %938
        %940 = vrot.lane.b32.xlu0 %v917, 26
        %v941 = vpop.permute.xlu0 %940
        %942 = vrot.lane.b32.xlu0 %v918, 26
        %v943 = vpop.permute.xlu0 %942
        %944 = vrot.lane.b32.xlu0 %v919, 26
        %v945 = vpop.permute.xlu0 %944
        %946 = vrot.lane.b32.xlu0 %v920, 26
        %v947 = vpop.permute.xlu0 %946
        %vm948 = vcmask 211968
        %v949 = vsel %vm948, %v931, %v933
        %v950 = vsel %vm948, %v933, %v935
        %v951 = vsel %vm948, %v935, %v937
        %v952 = vsel %vm948, %v937, %v939
        %v953 = vsel %vm948, %v939, %v941
        %v954 = vsel %vm948, %v941, %v943
        %v955 = vsel %vm948, %v943, %v945
        %v956 = vsel %vm948, %v945, %v947
        %965 = vst [vmem:[#allocation3 + $0x2c0] sm:$0xff] %v949
        %966 = vst [vmem:[#allocation3 + $0x2c8] sm:$0xff] %v950
        %967 = vst [vmem:[#allocation3 + $0x2d0] sm:$0xff] %v951
        %968 = vst [vmem:[#allocation3 + $0x2d8] sm:$0xff] %v952
        %969 = vst [vmem:[#allocation3 + $0x2e0] sm:$0xff] %v953
        %970 = vst [vmem:[#allocation3 + $0x2e8] sm:$0xff] %v954
        %971 = vst [vmem:[#allocation3 + $0x2f0] sm:$0xff] %v955
        %972 = vst [vmem:[#allocation3 + $0x2f8] sm:$0xff] %v956
        %v973 = vld [vmem:[#allocation2] sm:$0xff]
        %v974 = vld [vmem:[#allocation2 + $0x8] sm:$0xff]
        %v975 = vld [vmem:[#allocation2 + $0x10] sm:$0xff]
        %v976 = vld [vmem:[#allocation2 + $0x18] sm:$0xff]
        %v977 = vld [vmem:[#allocation2 + $0x20] sm:$0xff]
        %v978 = vld [vmem:[#allocation2 + $0x28] sm:$0xff]
        %v979 = vld [vmem:[#allocation2 + $0x30] sm:$0xff]
        %v980 = vld [vmem:[#allocation2 + $0x38] sm:$0xff]
        %v981 = vld [vmem:[#allocation2 + $0x40] sm:$0xff]
        %991 = vrot.lane.b32.xlu0 %v973, 18
        %v992 = vpop.permute.xlu0 %991
        %993 = vrot.lane.b32.xlu0 %v974, 18
        %v994 = vpop.permute.xlu0 %993
        %995 = vrot.lane.b32.xlu0 %v975, 18
        %v996 = vpop.permute.xlu0 %995
        %997 = vrot.lane.b32.xlu0 %v976, 18
        %v998 = vpop.permute.xlu0 %997
        %999 = vrot.lane.b32.xlu0 %v977, 18
        %v1000 = vpop.permute.xlu0 %999
        %1001 = vrot.lane.b32.xlu0 %v978, 18
        %v1002 = vpop.permute.xlu0 %1001
        %1003 = vrot.lane.b32.xlu0 %v979, 18
        %v1004 = vpop.permute.xlu0 %1003
        %1005 = vrot.lane.b32.xlu0 %v980, 18
        %v1006 = vpop.permute.xlu0 %1005
        %1007 = vrot.lane.b32.xlu0 %v981, 18
        %v1008 = vpop.permute.xlu0 %1007
        %vm1009 = vcmask 146432
        %v1010 = vsel %vm1009, %v992, %v994
        %v1011 = vsel %vm1009, %v994, %v996
        %v1012 = vsel %vm1009, %v996, %v998
        %v1013 = vsel %vm1009, %v998, %v1000
        %v1014 = vsel %vm1009, %v1000, %v1002
        %v1015 = vsel %vm1009, %v1002, %v1004
        %v1016 = vsel %vm1009, %v1004, %v1006
        %v1017 = vsel %vm1009, %v1006, %v1008
        %1026 = vst [vmem:[#allocation3 + $0x300] sm:$0xff] %v1010
        %1027 = vst [vmem:[#allocation3 + $0x308] sm:$0xff] %v1011
        %1028 = vst [vmem:[#allocation3 + $0x310] sm:$0xff] %v1012
        %1029 = vst [vmem:[#allocation3 + $0x318] sm:$0xff] %v1013
        %1030 = vst [vmem:[#allocation3 + $0x320] sm:$0xff] %v1014
        %1031 = vst [vmem:[#allocation3 + $0x328] sm:$0xff] %v1015
        %1032 = vst [vmem:[#allocation3 + $0x330] sm:$0xff] %v1016
        %1033 = vst [vmem:[#allocation3 + $0x338] sm:$0xff] %v1017
        %v1034 = vld [vmem:[#allocation2] sm:$0xff]
        %v1035 = vld [vmem:[#allocation2 + $0x8] sm:$0xff]
        %v1036 = vld [vmem:[#allocation2 + $0x10] sm:$0xff]
        %v1037 = vld [vmem:[#allocation2 + $0x18] sm:$0xff]
        %v1038 = vld [vmem:[#allocation2 + $0x20] sm:$0xff]
        %v1039 = vld [vmem:[#allocation2 + $0x28] sm:$0xff]
        %v1040 = vld [vmem:[#allocation2 + $0x30] sm:$0xff]
        %v1041 = vld [vmem:[#allocation2 + $0x38] sm:$0xff]
        %v1042 = vld [vmem:[#allocation2 + $0x40] sm:$0xff]
        %1052 = vrot.lane.b32.xlu0 %v1034, 17
        %v1053 = vpop.permute.xlu0 %1052
        %1054 = vrot.lane.b32.xlu0 %v1035, 17
        %v1055 = vpop.permute.xlu0 %1054
        %1056 = vrot.lane.b32.xlu0 %v1036, 17
        %v1057 = vpop.permute.xlu0 %1056
        %1058 = vrot.lane.b32.xlu0 %v1037, 17
        %v1059 = vpop.permute.xlu0 %1058
        %1060 = vrot.lane.b32.xlu0 %v1038, 17
        %v1061 = vpop.permute.xlu0 %1060
        %1062 = vrot.lane.b32.xlu0 %v1039, 17
        %v1063 = vpop.permute.xlu0 %1062
        %1064 = vrot.lane.b32.xlu0 %v1040, 17
        %v1065 = vpop.permute.xlu0 %1064
        %1066 = vrot.lane.b32.xlu0 %v1041, 17
        %v1067 = vpop.permute.xlu0 %1066
        %1068 = vrot.lane.b32.xlu0 %v1042, 17
        %v1069 = vpop.permute.xlu0 %1068
        %vm1070 = vcmask 138240
        %v1071 = vsel %vm1070, %v1053, %v1055
        %v1072 = vsel %vm1070, %v1055, %v1057
        %v1073 = vsel %vm1070, %v1057, %v1059
        %v1074 = vsel %vm1070, %v1059, %v1061
        %v1075 = vsel %vm1070, %v1061, %v1063
        %v1076 = vsel %vm1070, %v1063, %v1065
        %v1077 = vsel %vm1070, %v1065, %v1067
        %v1078 = vsel %vm1070, %v1067, %v1069
        %1087 = vst [vmem:[#allocation3 + $0x340] sm:$0xff] %v1071
        %1088 = vst [vmem:[#allocation3 + $0x348] sm:$0xff] %v1072
        %1089 = vst [vmem:[#allocation3 + $0x350] sm:$0xff] %v1073
        %1090 = vst [vmem:[#allocation3 + $0x358] sm:$0xff] %v1074
        %1091 = vst [vmem:[#allocation3 + $0x360] sm:$0xff] %v1075
        %1092 = vst [vmem:[#allocation3 + $0x368] sm:$0xff] %v1076
        %1093 = vst [vmem:[#allocation3 + $0x370] sm:$0xff] %v1077
        %1094 = vst [vmem:[#allocation3 + $0x378] sm:$0xff] %v1078
        %v1095 = vld [vmem:[#allocation2] sm:$0xff]
        %v1096 = vld [vmem:[#allocation2 + $0x8] sm:$0xff]
        %v1097 = vld [vmem:[#allocation2 + $0x10] sm:$0xff]
        %v1098 = vld [vmem:[#allocation2 + $0x18] sm:$0xff]
        %v1099 = vld [vmem:[#allocation2 + $0x20] sm:$0xff]
        %v1100 = vld [vmem:[#allocation2 + $0x28] sm:$0xff]
        %v1101 = vld [vmem:[#allocation2 + $0x30] sm:$0xff]
        %v1102 = vld [vmem:[#allocation2 + $0x38] sm:$0xff]
        %v1103 = vld [vmem:[#allocation2 + $0x40] sm:$0xff]
        %1113 = vrot.lane.b32.xlu0 %v1095, 16
        %v1114 = vpop.permute.xlu0 %1113
        %1115 = vrot.lane.b32.xlu0 %v1096, 16
        %v1116 = vpop.permute.xlu0 %1115
        %1117 = vrot.lane.b32.xlu0 %v1097, 16
        %v1118 = vpop.permute.xlu0 %1117
        %1119 = vrot.lane.b32.xlu0 %v1098, 16
        %v1120 = vpop.permute.xlu0 %1119
        %1121 = vrot.lane.b32.xlu0 %v1099, 16
        %v1122 = vpop.permute.xlu0 %1121
        %1123 = vrot.lane.b32.xlu0 %v1100, 16
        %v1124 = vpop.permute.xlu0 %1123
        %1125 = vrot.lane.b32.xlu0 %v1101, 16
        %v1126 = vpop.permute.xlu0 %1125
        %1127 = vrot.lane.b32.xlu0 %v1102, 16
        %v1128 = vpop.permute.xlu0 %1127
        %1129 = vrot.lane.b32.xlu0 %v1103, 16
        %v1130 = vpop.permute.xlu0 %1129
        %vm1131 = vcmask 130048
        %v1132 = vsel %vm1131, %v1114, %v1116
        %v1133 = vsel %vm1131, %v1116, %v1118
        %v1134 = vsel %vm1131, %v1118, %v1120
        %v1135 = vsel %vm1131, %v1120, %v1122
        %v1136 = vsel %vm1131, %v1122, %v1124
        %v1137 = vsel %vm1131, %v1124, %v1126
        %v1138 = vsel %vm1131, %v1126, %v1128
        %v1139 = vsel %vm1131, %v1128, %v1130
        %1148 = vst [vmem:[#allocation3 + $0x380] sm:$0xff] %v1132
        %1149 = vst [vmem:[#allocation3 + $0x388] sm:$0xff] %v1133
        %1150 = vst [vmem:[#allocation3 + $0x390] sm:$0xff] %v1134
        %1151 = vst [vmem:[#allocation3 + $0x398] sm:$0xff] %v1135
        %1152 = vst [vmem:[#allocation3 + $0x3a0] sm:$0xff] %v1136
        %1153 = vst [vmem:[#allocation3 + $0x3a8] sm:$0xff] %v1137
        %1154 = vst [vmem:[#allocation3 + $0x3b0] sm:$0xff] %v1138
        %1155 = vst [vmem:[#allocation3 + $0x3b8] sm:$0xff] %v1139
        %v1156 = vld [vmem:[#allocation2] sm:$0xff]
        %v1157 = vld [vmem:[#allocation2 + $0x8] sm:$0xff]
        %v1158 = vld [vmem:[#allocation2 + $0x10] sm:$0xff]
        %v1159 = vld [vmem:[#allocation2 + $0x18] sm:$0xff]
        %v1160 = vld [vmem:[#allocation2 + $0x20] sm:$0xff]
        %v1161 = vld [vmem:[#allocation2 + $0x28] sm:$0xff]
        %v1162 = vld [vmem:[#allocation2 + $0x30] sm:$0xff]
        %v1163 = vld [vmem:[#allocation2 + $0x38] sm:$0xff]
        %v1164 = vld [vmem:[#allocation2 + $0x40] sm:$0xff]
        %1174 = vrot.lane.b32.xlu0 %v1156, 8
        %v1175 = vpop.permute.xlu0 %1174
        %1176 = vrot.lane.b32.xlu0 %v1157, 8
        %v1177 = vpop.permute.xlu0 %1176
        %1178 = vrot.lane.b32.xlu0 %v1158, 8
        %v1179 = vpop.permute.xlu0 %1178
        %1180 = vrot.lane.b32.xlu0 %v1159, 8
        %v1181 = vpop.permute.xlu0 %1180
        %1182 = vrot.lane.b32.xlu0 %v1160, 8
        %v1183 = vpop.permute.xlu0 %1182
        %1184 = vrot.lane.b32.xlu0 %v1161, 8
        %v1185 = vpop.permute.xlu0 %1184
        %1186 = vrot.lane.b32.xlu0 %v1162, 8
        %v1187 = vpop.permute.xlu0 %1186
        %1188 = vrot.lane.b32.xlu0 %v1163, 8
        %v1189 = vpop.permute.xlu0 %1188
        %1190 = vrot.lane.b32.xlu0 %v1164, 8
        %v1191 = vpop.permute.xlu0 %1190
        %vm1192 = vcmask 64512
        %v1193 = vsel %vm1192, %v1175, %v1177
        %v1194 = vsel %vm1192, %v1177, %v1179
        %v1195 = vsel %vm1192, %v1179, %v1181
        %v1196 = vsel %vm1192, %v1181, %v1183
        %v1197 = vsel %vm1192, %v1183, %v1185
        %v1198 = vsel %vm1192, %v1185, %v1187
        %v1199 = vsel %vm1192, %v1187, %v1189
        %v1200 = vsel %vm1192, %v1189, %v1191
        %1209 = vst [vmem:[#allocation3 + $0x3c0] sm:$0xff] %v1193
        %1210 = vst [vmem:[#allocation3 + $0x3c8] sm:$0xff] %v1194
        %1211 = vst [vmem:[#allocation3 + $0x3d0] sm:$0xff] %v1195
        %1212 = vst [vmem:[#allocation3 + $0x3d8] sm:$0xff] %v1196
        %1213 = vst [vmem:[#allocation3 + $0x3e0] sm:$0xff] %v1197
        %1214 = vst [vmem:[#allocation3 + $0x3e8] sm:$0xff] %v1198
        %1215 = vst [vmem:[#allocation3 + $0x3f0] sm:$0xff] %v1199
        %1216 = vst [vmem:[#allocation3 + $0x3f8] sm:$0xff] %v1200
        %v1217 = vld [vmem:[#allocation2] sm:$0xff]
        %v1218 = vld [vmem:[#allocation2 + $0x8] sm:$0xff]
        %v1219 = vld [vmem:[#allocation2 + $0x10] sm:$0xff]
        %v1220 = vld [vmem:[#allocation2 + $0x18] sm:$0xff]
        %v1221 = vld [vmem:[#allocation2 + $0x20] sm:$0xff]
        %v1222 = vld [vmem:[#allocation2 + $0x28] sm:$0xff]
        %v1223 = vld [vmem:[#allocation2 + $0x30] sm:$0xff]
        %v1224 = vld [vmem:[#allocation2 + $0x38] sm:$0xff]
        %v1225 = vld [vmem:[#allocation2 + $0x40] sm:$0xff]
        %1235 = vrot.lane.b32.xlu0 %v1217, 7
        %v1236 = vpop.permute.xlu0 %1235
        %1237 = vrot.lane.b32.xlu0 %v1218, 7
        %v1238 = vpop.permute.xlu0 %1237
        %1239 = vrot.lane.b32.xlu0 %v1219, 7
        %v1240 = vpop.permute.xlu0 %1239
        %1241 = vrot.lane.b32.xlu0 %v1220, 7
        %v1242 = vpop.permute.xlu0 %1241
        %1243 = vrot.lane.b32.xlu0 %v1221, 7
        %v1244 = vpop.permute.xlu0 %1243
        %1245 = vrot.lane.b32.xlu0 %v1222, 7
        %v1246 = vpop.permute.xlu0 %1245
        %1247 = vrot.lane.b32.xlu0 %v1223, 7
        %v1248 = vpop.permute.xlu0 %1247
        %1249 = vrot.lane.b32.xlu0 %v1224, 7
        %v1250 = vpop.permute.xlu0 %1249
        %1251 = vrot.lane.b32.xlu0 %v1225, 7
        %v1252 = vpop.permute.xlu0 %1251
        %vm1253 = vcmask 56320
        %v1254 = vsel %vm1253, %v1236, %v1238
        %v1255 = vsel %vm1253, %v1238, %v1240
        %v1256 = vsel %vm1253, %v1240, %v1242
        %v1257 = vsel %vm1253, %v1242, %v1244
        %v1258 = vsel %vm1253, %v1244, %v1246
        %v1259 = vsel %vm1253, %v1246, %v1248
        %v1260 = vsel %vm1253, %v1248, %v1250
        %v1261 = vsel %vm1253, %v1250, %v1252
        %1270 = vst [vmem:[#allocation3 + $0x400] sm:$0xff] %v1254
        %1271 = vst [vmem:[#allocation3 + $0x408] sm:$0xff] %v1255
        %1272 = vst [vmem:[#allocation3 + $0x410] sm:$0xff] %v1256
        %1273 = vst [vmem:[#allocation3 + $0x418] sm:$0xff] %v1257
        %1274 = vst [vmem:[#allocation3 + $0x420] sm:$0xff] %v1258
        %1275 = vst [vmem:[#allocation3 + $0x428] sm:$0xff] %v1259
        %1276 = vst [vmem:[#allocation3 + $0x430] sm:$0xff] %v1260
        %1277 = vst [vmem:[#allocation3 + $0x438] sm:$0xff] %v1261
        %v1278 = vld [vmem:[#allocation2] sm:$0xff]
        %v1279 = vld [vmem:[#allocation2 + $0x8] sm:$0xff]
        %v1280 = vld [vmem:[#allocation2 + $0x10] sm:$0xff]
        %v1281 = vld [vmem:[#allocation2 + $0x18] sm:$0xff]
        %v1282 = vld [vmem:[#allocation2 + $0x20] sm:$0xff]
        %v1283 = vld [vmem:[#allocation2 + $0x28] sm:$0xff]
        %v1284 = vld [vmem:[#allocation2 + $0x30] sm:$0xff]
        %v1285 = vld [vmem:[#allocation2 + $0x38] sm:$0xff]
        %v1286 = vld [vmem:[#allocation2 + $0x40] sm:$0xff]
        %1296 = vrot.lane.b32.xlu0 %v1278, 6
        %v1297 = vpop.permute.xlu0 %1296
        %1298 = vrot.lane.b32.xlu0 %v1279, 6
        %v1299 = vpop.permute.xlu0 %1298
        %1300 = vrot.lane.b32.xlu0 %v1280, 6
        %v1301 = vpop.permute.xlu0 %1300
        %1302 = vrot.lane.b32.xlu0 %v1281, 6
        %v1303 = vpop.permute.xlu0 %1302
        %1304 = vrot.lane.b32.xlu0 %v1282, 6
        %v1305 = vpop.permute.xlu0 %1304
        %1306 = vrot.lane.b32.xlu0 %v1283, 6
        %v1307 = vpop.permute.xlu0 %1306
        %1308 = vrot.lane.b32.xlu0 %v1284, 6
        %v1309 = vpop.permute.xlu0 %1308
        %1310 = vrot.lane.b32.xlu0 %v1285, 6
        %v1311 = vpop.permute.xlu0 %1310
        %1312 = vrot.lane.b32.xlu0 %v1286, 6
        %v1313 = vpop.permute.xlu0 %1312
        %vm1314 = vcmask 48128
        %v1315 = vsel %vm1314, %v1297, %v1299
        %v1316 = vsel %vm1314, %v1299, %v1301
        %v1317 = vsel %vm1314, %v1301, %v1303
        %v1318 = vsel %vm1314, %v1303, %v1305
        %v1319 = vsel %vm1314, %v1305, %v1307
        %v1320 = vsel %vm1314, %v1307, %v1309
        %v1321 = vsel %vm1314, %v1309, %v1311
        %v1322 = vsel %vm1314, %v1311, %v1313
        %1331 = vst [vmem:[#allocation3 + $0x440] sm:$0xff] %v1315
        %1332 = vst [vmem:[#allocation3 + $0x448] sm:$0xff] %v1316
        %1333 = vst [vmem:[#allocation3 + $0x450] sm:$0xff] %v1317
        %1334 = vst [vmem:[#allocation3 + $0x458] sm:$0xff] %v1318
        %1335 = vst [vmem:[#allocation3 + $0x460] sm:$0xff] %v1319
        %1336 = vst [vmem:[#allocation3 + $0x468] sm:$0xff] %v1320
        %1337 = vst [vmem:[#allocation3 + $0x470] sm:$0xff] %v1321
        %1338 = vst [vmem:[#allocation3 + $0x478] sm:$0xff] %v1322
        %v1339 = vld [vmem:[#allocation2 + $0x8] sm:$0xff]
        %v1340 = vld [vmem:[#allocation2 + $0x10] sm:$0xff]
        %v1341 = vld [vmem:[#allocation2 + $0x18] sm:$0xff]
        %v1342 = vld [vmem:[#allocation2 + $0x20] sm:$0xff]
        %v1343 = vld [vmem:[#allocation2 + $0x28] sm:$0xff]
        %v1344 = vld [vmem:[#allocation2 + $0x30] sm:$0xff]
        %v1345 = vld [vmem:[#allocation2 + $0x38] sm:$0xff]
        %v1346 = vld [vmem:[#allocation2 + $0x40] sm:$0xff]
        %v1347 = vld [vmem:[#allocation2 + $0x48] sm:$0xff]
        %1357 = vrot.lane.b32.xlu0 %v1339, 56
        %v1358 = vpop.permute.xlu0 %1357
        %1359 = vrot.lane.b32.xlu0 %v1340, 56
        %v1360 = vpop.permute.xlu0 %1359
        %1361 = vrot.lane.b32.xlu0 %v1341, 56
        %v1362 = vpop.permute.xlu0 %1361
        %1363 = vrot.lane.b32.xlu0 %v1342, 56
        %v1364 = vpop.permute.xlu0 %1363
        %1365 = vrot.lane.b32.xlu0 %v1343, 56
        %v1366 = vpop.permute.xlu0 %1365
        %1367 = vrot.lane.b32.xlu0 %v1344, 56
        %v1368 = vpop.permute.xlu0 %1367
        %1369 = vrot.lane.b32.xlu0 %v1345, 56
        %v1370 = vpop.permute.xlu0 %1369
        %1371 = vrot.lane.b32.xlu0 %v1346, 56
        %v1372 = vpop.permute.xlu0 %1371
        %1373 = vrot.lane.b32.xlu0 %v1347, 56
        %v1374 = vpop.permute.xlu0 %1373
        %vm1375 = vcmask 457728
        %v1376 = vsel %vm1375, %v1358, %v1360
        %v1377 = vsel %vm1375, %v1360, %v1362
        %v1378 = vsel %vm1375, %v1362, %v1364
        %v1379 = vsel %vm1375, %v1364, %v1366
        %v1380 = vsel %vm1375, %v1366, %v1368
        %v1381 = vsel %vm1375, %v1368, %v1370
        %v1382 = vsel %vm1375, %v1370, %v1372
        %v1383 = vsel %vm1375, %v1372, %v1374
        %1392 = vst [vmem:[#allocation3 + $0x480] sm:$0xff] %v1376
        %1393 = vst [vmem:[#allocation3 + $0x488] sm:$0xff] %v1377
        %1394 = vst [vmem:[#allocation3 + $0x490] sm:$0xff] %v1378
        %1395 = vst [vmem:[#allocation3 + $0x498] sm:$0xff] %v1379
        %1396 = vst [vmem:[#allocation3 + $0x4a0] sm:$0xff] %v1380
        %1397 = vst [vmem:[#allocation3 + $0x4a8] sm:$0xff] %v1381
        %1398 = vst [vmem:[#allocation3 + $0x4b0] sm:$0xff] %v1382
        %1399 = vst [vmem:[#allocation3 + $0x4b8] sm:$0xff] %v1383
        %v1400 = vld [vmem:[#allocation2 + $0x8] sm:$0xff]
        %v1401 = vld [vmem:[#allocation2 + $0x10] sm:$0xff]
        %v1402 = vld [vmem:[#allocation2 + $0x18] sm:$0xff]
        %v1403 = vld [vmem:[#allocation2 + $0x20] sm:$0xff]
        %v1404 = vld [vmem:[#allocation2 + $0x28] sm:$0xff]
        %v1405 = vld [vmem:[#allocation2 + $0x30] sm:$0xff]
        %v1406 = vld [vmem:[#allocation2 + $0x38] sm:$0xff]
        %v1407 = vld [vmem:[#allocation2 + $0x40] sm:$0xff]
        %v1408 = vld [vmem:[#allocation2 + $0x48] sm:$0xff]
        %1418 = vrot.lane.b32.xlu0 %v1400, 55
        %v1419 = vpop.permute.xlu0 %1418
        %1420 = vrot.lane.b32.xlu0 %v1401, 55
        %v1421 = vpop.permute.xlu0 %1420
        %1422 = vrot.lane.b32.xlu0 %v1402, 55
        %v1423 = vpop.permute.xlu0 %1422
        %1424 = vrot.lane.b32.xlu0 %v1403, 55
        %v1425 = vpop.permute.xlu0 %1424
        %1426 = vrot.lane.b32.xlu0 %v1404, 55
        %v1427 = vpop.permute.xlu0 %1426
        %1428 = vrot.lane.b32.xlu0 %v1405, 55
        %v1429 = vpop.permute.xlu0 %1428
        %1430 = vrot.lane.b32.xlu0 %v1406, 55
        %v1431 = vpop.permute.xlu0 %1430
        %1432 = vrot.lane.b32.xlu0 %v1407, 55
        %v1433 = vpop.permute.xlu0 %1432
        %1434 = vrot.lane.b32.xlu0 %v1408, 55
        %v1435 = vpop.permute.xlu0 %1434
        %vm1436 = vcmask 449536
        %v1437 = vsel %vm1436, %v1419, %v1421
        %v1438 = vsel %vm1436, %v1421, %v1423
        %v1439 = vsel %vm1436, %v1423, %v1425
        %v1440 = vsel %vm1436, %v1425, %v1427
        %v1441 = vsel %vm1436, %v1427, %v1429
        %v1442 = vsel %vm1436, %v1429, %v1431
        %v1443 = vsel %vm1436, %v1431, %v1433
        %v1444 = vsel %vm1436, %v1433, %v1435
        %1453 = vst [vmem:[#allocation3 + $0x4c0] sm:$0xff] %v1437
        %1454 = vst [vmem:[#allocation3 + $0x4c8] sm:$0xff] %v1438
        %1455 = vst [vmem:[#allocation3 + $0x4d0] sm:$0xff] %v1439
        %1456 = vst [vmem:[#allocation3 + $0x4d8] sm:$0xff] %v1440
        %1457 = vst [vmem:[#allocation3 + $0x4e0] sm:$0xff] %v1441
        %1458 = vst [vmem:[#allocation3 + $0x4e8] sm:$0xff] %v1442
        %1459 = vst [vmem:[#allocation3 + $0x4f0] sm:$0xff] %v1443
        %1460 = vst [vmem:[#allocation3 + $0x4f8] sm:$0xff] %v1444
        %v1461 = vld [vmem:[#allocation2 + $0x8] sm:$0xff]
        %v1462 = vld [vmem:[#allocation2 + $0x10] sm:$0xff]
        %v1463 = vld [vmem:[#allocation2 + $0x18] sm:$0xff]
        %v1464 = vld [vmem:[#allocation2 + $0x20] sm:$0xff]
        %v1465 = vld [vmem:[#allocation2 + $0x28] sm:$0xff]
        %v1466 = vld [vmem:[#allocation2 + $0x30] sm:$0xff]
        %v1467 = vld [vmem:[#allocation2 + $0x38] sm:$0xff]
        %v1468 = vld [vmem:[#allocation2 + $0x40] sm:$0xff]
        %v1469 = vld [vmem:[#allocation2 + $0x48] sm:$0xff]
        %1479 = vrot.lane.b32.xlu0 %v1461, 54
        %v1480 = vpop.permute.xlu0 %1479
        %1481 = vrot.lane.b32.xlu0 %v1462, 54
        %v1482 = vpop.permute.xlu0 %1481
        %1483 = vrot.lane.b32.xlu0 %v1463, 54
        %v1484 = vpop.permute.xlu0 %1483
        %1485 = vrot.lane.b32.xlu0 %v1464, 54
        %v1486 = vpop.permute.xlu0 %1485
        %1487 = vrot.lane.b32.xlu0 %v1465, 54
        %v1488 = vpop.permute.xlu0 %1487
        %1489 = vrot.lane.b32.xlu0 %v1466, 54
        %v1490 = vpop.permute.xlu0 %1489
        %1491 = vrot.lane.b32.xlu0 %v1467, 54
        %v1492 = vpop.permute.xlu0 %1491
        %1493 = vrot.lane.b32.xlu0 %v1468, 54
        %v1494 = vpop.permute.xlu0 %1493
        %1495 = vrot.lane.b32.xlu0 %v1469, 54
        %v1496 = vpop.permute.xlu0 %1495
        %vm1497 = vcmask 441344
        %v1498 = vsel %vm1497, %v1480, %v1482
        %v1499 = vsel %vm1497, %v1482, %v1484
        %v1500 = vsel %vm1497, %v1484, %v1486
        %v1501 = vsel %vm1497, %v1486, %v1488
        %v1502 = vsel %vm1497, %v1488, %v1490
        %v1503 = vsel %vm1497, %v1490, %v1492
        %v1504 = vsel %vm1497, %v1492, %v1494
        %v1505 = vsel %vm1497, %v1494, %v1496
        %1514 = vst [vmem:[#allocation3 + $0x500] sm:$0xff] %v1498
        %1515 = vst [vmem:[#allocation3 + $0x508] sm:$0xff] %v1499
        %1516 = vst [vmem:[#allocation3 + $0x510] sm:$0xff] %v1500
        %1517 = vst [vmem:[#allocation3 + $0x518] sm:$0xff] %v1501
        %1518 = vst [vmem:[#allocation3 + $0x520] sm:$0xff] %v1502
        %1519 = vst [vmem:[#allocation3 + $0x528] sm:$0xff] %v1503
        %1520 = vst [vmem:[#allocation3 + $0x530] sm:$0xff] %v1504
        %1521 = vst [vmem:[#allocation3 + $0x538] sm:$0xff] %v1505
        %v1522 = vld [vmem:[#allocation2 + $0x8] sm:$0xff]
        %v1523 = vld [vmem:[#allocation2 + $0x10] sm:$0xff]
        %v1524 = vld [vmem:[#allocation2 + $0x18] sm:$0xff]
        %v1525 = vld [vmem:[#allocation2 + $0x20] sm:$0xff]
        %v1526 = vld [vmem:[#allocation2 + $0x28] sm:$0xff]
        %v1527 = vld [vmem:[#allocation2 + $0x30] sm:$0xff]
        %v1528 = vld [vmem:[#allocation2 + $0x38] sm:$0xff]
        %v1529 = vld [vmem:[#allocation2 + $0x40] sm:$0xff]
        %v1530 = vld [vmem:[#allocation2 + $0x48] sm:$0xff]
        %1540 = vrot.lane.b32.xlu0 %v1522, 46
        %v1541 = vpop.permute.xlu0 %1540
        %1542 = vrot.lane.b32.xlu0 %v1523, 46
        %v1543 = vpop.permute.xlu0 %1542
        %1544 = vrot.lane.b32.xlu0 %v1524, 46
        %v1545 = vpop.permute.xlu0 %1544
        %1546 = vrot.lane.b32.xlu0 %v1525, 46
        %v1547 = vpop.permute.xlu0 %1546
        %1548 = vrot.lane.b32.xlu0 %v1526, 46
        %v1549 = vpop.permute.xlu0 %1548
        %1550 = vrot.lane.b32.xlu0 %v1527, 46
        %v1551 = vpop.permute.xlu0 %1550
        %1552 = vrot.lane.b32.xlu0 %v1528, 46
        %v1553 = vpop.permute.xlu0 %1552
        %1554 = vrot.lane.b32.xlu0 %v1529, 46
        %v1555 = vpop.permute.xlu0 %1554
        %1556 = vrot.lane.b32.xlu0 %v1530, 46
        %v1557 = vpop.permute.xlu0 %1556
        %vm1558 = vcmask 375808
        %v1559 = vsel %vm1558, %v1541, %v1543
        %v1560 = vsel %vm1558, %v1543, %v1545
        %v1561 = vsel %vm1558, %v1545, %v1547
        %v1562 = vsel %vm1558, %v1547, %v1549
        %v1563 = vsel %vm1558, %v1549, %v1551
        %v1564 = vsel %vm1558, %v1551, %v1553
        %v1565 = vsel %vm1558, %v1553, %v1555
        %v1566 = vsel %vm1558, %v1555, %v1557
        %1575 = vst [vmem:[#allocation3 + $0x540] sm:$0xff] %v1559
        %1576 = vst [vmem:[#allocation3 + $0x548] sm:$0xff] %v1560
        %1577 = vst [vmem:[#allocation3 + $0x550] sm:$0xff] %v1561
        %1578 = vst [vmem:[#allocation3 + $0x558] sm:$0xff] %v1562
        %1579 = vst [vmem:[#allocation3 + $0x560] sm:$0xff] %v1563
        %1580 = vst [vmem:[#allocation3 + $0x568] sm:$0xff] %v1564
        %1581 = vst [vmem:[#allocation3 + $0x570] sm:$0xff] %v1565
        %1582 = vst [vmem:[#allocation3 + $0x578] sm:$0xff] %v1566
        %v1583 = vld [vmem:[#allocation2 + $0x8] sm:$0xff]
        %v1584 = vld [vmem:[#allocation2 + $0x10] sm:$0xff]
        %v1585 = vld [vmem:[#allocation2 + $0x18] sm:$0xff]
        %v1586 = vld [vmem:[#allocation2 + $0x20] sm:$0xff]
        %v1587 = vld [vmem:[#allocation2 + $0x28] sm:$0xff]
        %v1588 = vld [vmem:[#allocation2 + $0x30] sm:$0xff]
        %v1589 = vld [vmem:[#allocation2 + $0x38] sm:$0xff]
        %v1590 = vld [vmem:[#allocation2 + $0x40] sm:$0xff]
        %v1591 = vld [vmem:[#allocation2 + $0x48] sm:$0xff]
        %1601 = vrot.lane.b32.xlu0 %v1583, 45
        %v1602 = vpop.permute.xlu0 %1601
        %1603 = vrot.lane.b32.xlu0 %v1584, 45
        %v1604 = vpop.permute.xlu0 %1603
        %1605 = vrot.lane.b32.xlu0 %v1585, 45
        %v1606 = vpop.permute.xlu0 %1605
        %1607 = vrot.lane.b32.xlu0 %v1586, 45
        %v1608 = vpop.permute.xlu0 %1607
        %1609 = vrot.lane.b32.xlu0 %v1587, 45
        %v1610 = vpop.permute.xlu0 %1609
        %1611 = vrot.lane.b32.xlu0 %v1588, 45
        %v1612 = vpop.permute.xlu0 %1611
        %1613 = vrot.lane.b32.xlu0 %v1589, 45
        %v1614 = vpop.permute.xlu0 %1613
        %1615 = vrot.lane.b32.xlu0 %v1590, 45
        %v1616 = vpop.permute.xlu0 %1615
        %1617 = vrot.lane.b32.xlu0 %v1591, 45
        %v1618 = vpop.permute.xlu0 %1617
        %vm1619 = vcmask 367616
        %v1620 = vsel %vm1619, %v1602, %v1604
        %v1621 = vsel %vm1619, %v1604, %v1606
        %v1622 = vsel %vm1619, %v1606, %v1608
        %v1623 = vsel %vm1619, %v1608, %v1610
        %v1624 = vsel %vm1619, %v1610, %v1612
        %v1625 = vsel %vm1619, %v1612, %v1614
        %v1626 = vsel %vm1619, %v1614, %v1616
        %v1627 = vsel %vm1619, %v1616, %v1618
        %1636 = vst [vmem:[#allocation3 + $0x580] sm:$0xff] %v1620
        %1637 = vst [vmem:[#allocation3 + $0x588] sm:$0xff] %v1621
        %1638 = vst [vmem:[#allocation3 + $0x590] sm:$0xff] %v1622
        %1639 = vst [vmem:[#allocation3 + $0x598] sm:$0xff] %v1623
        %1640 = vst [vmem:[#allocation3 + $0x5a0] sm:$0xff] %v1624
        %1641 = vst [vmem:[#allocation3 + $0x5a8] sm:$0xff] %v1625
        %1642 = vst [vmem:[#allocation3 + $0x5b0] sm:$0xff] %v1626
        %1643 = vst [vmem:[#allocation3 + $0x5b8] sm:$0xff] %v1627
        %v1644 = vld [vmem:[#allocation2 + $0x8] sm:$0xff]
        %v1645 = vld [vmem:[#allocation2 + $0x10] sm:$0xff]
        %v1646 = vld [vmem:[#allocation2 + $0x18] sm:$0xff]
        %v1647 = vld [vmem:[#allocation2 + $0x20] sm:$0xff]
        %v1648 = vld [vmem:[#allocation2 + $0x28] sm:$0xff]
        %v1649 = vld [vmem:[#allocation2 + $0x30] sm:$0xff]
        %v1650 = vld [vmem:[#allocation2 + $0x38] sm:$0xff]
        %v1651 = vld [vmem:[#allocation2 + $0x40] sm:$0xff]
        %v1652 = vld [vmem:[#allocation2 + $0x48] sm:$0xff]
        %1662 = vrot.lane.b32.xlu0 %v1644, 44
        %v1663 = vpop.permute.xlu0 %1662
        %1664 = vrot.lane.b32.xlu0 %v1645, 44
        %v1665 = vpop.permute.xlu0 %1664
        %1666 = vrot.lane.b32.xlu0 %v1646, 44
        %v1667 = vpop.permute.xlu0 %1666
        %1668 = vrot.lane.b32.xlu0 %v1647, 44
        %v1669 = vpop.permute.xlu0 %1668
        %1670 = vrot.lane.b32.xlu0 %v1648, 44
        %v1671 = vpop.permute.xlu0 %1670
        %1672 = vrot.lane.b32.xlu0 %v1649, 44
        %v1673 = vpop.permute.xlu0 %1672
        %1674 = vrot.lane.b32.xlu0 %v1650, 44
        %v1675 = vpop.permute.xlu0 %1674
        %1676 = vrot.lane.b32.xlu0 %v1651, 44
        %v1677 = vpop.permute.xlu0 %1676
        %1678 = vrot.lane.b32.xlu0 %v1652, 44
        %v1679 = vpop.permute.xlu0 %1678
        %vm1680 = vcmask 359424
        %v1681 = vsel %vm1680, %v1663, %v1665
        %v1682 = vsel %vm1680, %v1665, %v1667
        %v1683 = vsel %vm1680, %v1667, %v1669
        %v1684 = vsel %vm1680, %v1669, %v1671
        %v1685 = vsel %vm1680, %v1671, %v1673
        %v1686 = vsel %vm1680, %v1673, %v1675
        %v1687 = vsel %vm1680, %v1675, %v1677
        %v1688 = vsel %vm1680, %v1677, %v1679
        %1697 = vst [vmem:[#allocation3 + $0x5c0] sm:$0xff] %v1681
        %1698 = vst [vmem:[#allocation3 + $0x5c8] sm:$0xff] %v1682
        %1699 = vst [vmem:[#allocation3 + $0x5d0] sm:$0xff] %v1683
        %1700 = vst [vmem:[#allocation3 + $0x5d8] sm:$0xff] %v1684
        %1701 = vst [vmem:[#allocation3 + $0x5e0] sm:$0xff] %v1685
        %1702 = vst [vmem:[#allocation3 + $0x5e8] sm:$0xff] %v1686
        %1703 = vst [vmem:[#allocation3 + $0x5f0] sm:$0xff] %v1687
        %1704 = vst [vmem:[#allocation3 + $0x5f8] sm:$0xff] %v1688
        %v1705 = vld [vmem:[#allocation2 + $0x8] sm:$0xff]
        %v1706 = vld [vmem:[#allocation2 + $0x10] sm:$0xff]
        %v1707 = vld [vmem:[#allocation2 + $0x18] sm:$0xff]
        %v1708 = vld [vmem:[#allocation2 + $0x20] sm:$0xff]
        %v1709 = vld [vmem:[#allocation2 + $0x28] sm:$0xff]
        %v1710 = vld [vmem:[#allocation2 + $0x30] sm:$0xff]
        %v1711 = vld [vmem:[#allocation2 + $0x38] sm:$0xff]
        %v1712 = vld [vmem:[#allocation2 + $0x40] sm:$0xff]
        %v1713 = vld [vmem:[#allocation2 + $0x48] sm:$0xff]
        %1723 = vrot.lane.b32.xlu0 %v1705, 36
        %v1724 = vpop.permute.xlu0 %1723
        %1725 = vrot.lane.b32.xlu0 %v1706, 36
        %v1726 = vpop.permute.xlu0 %1725
        %1727 = vrot.lane.b32.xlu0 %v1707, 36
        %v1728 = vpop.permute.xlu0 %1727
        %1729 = vrot.lane.b32.xlu0 %v1708, 36
        %v1730 = vpop.permute.xlu0 %1729
        %1731 = vrot.lane.b32.xlu0 %v1709, 36
        %v1732 = vpop.permute.xlu0 %1731
        %1733 = vrot.lane.b32.xlu0 %v1710, 36
        %v1734 = vpop.permute.xlu0 %1733
        %1735 = vrot.lane.b32.xlu0 %v1711, 36
        %v1736 = vpop.permute.xlu0 %1735
        %1737 = vrot.lane.b32.xlu0 %v1712, 36
        %v1738 = vpop.permute.xlu0 %1737
        %1739 = vrot.lane.b32.xlu0 %v1713, 36
        %v1740 = vpop.permute.xlu0 %1739
        %vm1741 = vcmask 293888
        %v1742 = vsel %vm1741, %v1724, %v1726
        %v1743 = vsel %vm1741, %v1726, %v1728
        %v1744 = vsel %vm1741, %v1728, %v1730
        %v1745 = vsel %vm1741, %v1730, %v1732
        %v1746 = vsel %vm1741, %v1732, %v1734
        %v1747 = vsel %vm1741, %v1734, %v1736
        %v1748 = vsel %vm1741, %v1736, %v1738
        %v1749 = vsel %vm1741, %v1738, %v1740
        %1758 = vst [vmem:[#allocation3 + $0x600] sm:$0xff] %v1742
        %1759 = vst [vmem:[#allocation3 + $0x608] sm:$0xff] %v1743
        %1760 = vst [vmem:[#allocation3 + $0x610] sm:$0xff] %v1744
        %1761 = vst [vmem:[#allocation3 + $0x618] sm:$0xff] %v1745
        %1762 = vst [vmem:[#allocation3 + $0x620] sm:$0xff] %v1746
        %1763 = vst [vmem:[#allocation3 + $0x628] sm:$0xff] %v1747
        %1764 = vst [vmem:[#allocation3 + $0x630] sm:$0xff] %v1748
        %1765 = vst [vmem:[#allocation3 + $0x638] sm:$0xff] %v1749
        %v1766 = vld [vmem:[#allocation2 + $0x8] sm:$0xff]
        %v1767 = vld [vmem:[#allocation2 + $0x10] sm:$0xff]
        %v1768 = vld [vmem:[#allocation2 + $0x18] sm:$0xff]
        %v1769 = vld [vmem:[#allocation2 + $0x20] sm:$0xff]
        %v1770 = vld [vmem:[#allocation2 + $0x28] sm:$0xff]
        %v1771 = vld [vmem:[#allocation2 + $0x30] sm:$0xff]
        %v1772 = vld [vmem:[#allocation2 + $0x38] sm:$0xff]
        %v1773 = vld [vmem:[#allocation2 + $0x40] sm:$0xff]
        %v1774 = vld [vmem:[#allocation2 + $0x48] sm:$0xff]
        %1784 = vrot.lane.b32.xlu0 %v1766, 35
        %v1785 = vpop.permute.xlu0 %1784
        %1786 = vrot.lane.b32.xlu0 %v1767, 35
        %v1787 = vpop.permute.xlu0 %1786
        %1788 = vrot.lane.b32.xlu0 %v1768, 35
        %v1789 = vpop.permute.xlu0 %1788
        %1790 = vrot.lane.b32.xlu0 %v1769, 35
        %v1791 = vpop.permute.xlu0 %1790
        %1792 = vrot.lane.b32.xlu0 %v1770, 35
        %v1793 = vpop.permute.xlu0 %1792
        %1794 = vrot.lane.b32.xlu0 %v1771, 35
        %v1795 = vpop.permute.xlu0 %1794
        %1796 = vrot.lane.b32.xlu0 %v1772, 35
        %v1797 = vpop.permute.xlu0 %1796
        %1798 = vrot.lane.b32.xlu0 %v1773, 35
        %v1799 = vpop.permute.xlu0 %1798
        %1800 = vrot.lane.b32.xlu0 %v1774, 35
        %v1801 = vpop.permute.xlu0 %1800
        %vm1802 = vcmask 285696
        %v1803 = vsel %vm1802, %v1785, %v1787
        %v1804 = vsel %vm1802, %v1787, %v1789
        %v1805 = vsel %vm1802, %v1789, %v1791
        %v1806 = vsel %vm1802, %v1791, %v1793
        %v1807 = vsel %vm1802, %v1793, %v1795
        %v1808 = vsel %vm1802, %v1795, %v1797
        %v1809 = vsel %vm1802, %v1797, %v1799
        %v1810 = vsel %vm1802, %v1799, %v1801
        %1819 = vst [vmem:[#allocation3 + $0x640] sm:$0xff] %v1803
        %1820 = vst [vmem:[#allocation3 + $0x648] sm:$0xff] %v1804
        %1821 = vst [vmem:[#allocation3 + $0x650] sm:$0xff] %v1805
        %1822 = vst [vmem:[#allocation3 + $0x658] sm:$0xff] %v1806
        %1823 = vst [vmem:[#allocation3 + $0x660] sm:$0xff] %v1807
        %1824 = vst [vmem:[#allocation3 + $0x668] sm:$0xff] %v1808
        %1825 = vst [vmem:[#allocation3 + $0x670] sm:$0xff] %v1809
        %1826 = vst [vmem:[#allocation3 + $0x678] sm:$0xff] %v1810
        %v1827 = vld [vmem:[#allocation2 + $0x8] sm:$0xff]
        %v1828 = vld [vmem:[#allocation2 + $0x10] sm:$0xff]
        %v1829 = vld [vmem:[#allocation2 + $0x18] sm:$0xff]
        %v1830 = vld [vmem:[#allocation2 + $0x20] sm:$0xff]
        %v1831 = vld [vmem:[#allocation2 + $0x28] sm:$0xff]
        %v1832 = vld [vmem:[#allocation2 + $0x30] sm:$0xff]
        %v1833 = vld [vmem:[#allocation2 + $0x38] sm:$0xff]
        %v1834 = vld [vmem:[#allocation2 + $0x40] sm:$0xff]
        %v1835 = vld [vmem:[#allocation2 + $0x48] sm:$0xff]
        %1845 = vrot.lane.b32.xlu0 %v1827, 34
        %v1846 = vpop.permute.xlu0 %1845
        %1847 = vrot.lane.b32.xlu0 %v1828, 34
        %v1848 = vpop.permute.xlu0 %1847
        %1849 = vrot.lane.b32.xlu0 %v1829, 34
        %v1850 = vpop.permute.xlu0 %1849
        %1851 = vrot.lane.b32.xlu0 %v1830, 34
        %v1852 = vpop.permute.xlu0 %1851
        %1853 = vrot.lane.b32.xlu0 %v1831, 34
        %v1854 = vpop.permute.xlu0 %1853
        %1855 = vrot.lane.b32.xlu0 %v1832, 34
        %v1856 = vpop.permute.xlu0 %1855
        %1857 = vrot.lane.b32.xlu0 %v1833, 34
        %v1858 = vpop.permute.xlu0 %1857
        %1859 = vrot.lane.b32.xlu0 %v1834, 34
        %v1860 = vpop.permute.xlu0 %1859
        %1861 = vrot.lane.b32.xlu0 %v1835, 34
        %v1862 = vpop.permute.xlu0 %1861
        %vm1863 = vcmask 277504
        %v1864 = vsel %vm1863, %v1846, %v1848
        %v1865 = vsel %vm1863, %v1848, %v1850
        %v1866 = vsel %vm1863, %v1850, %v1852
        %v1867 = vsel %vm1863, %v1852, %v1854
        %v1868 = vsel %vm1863, %v1854, %v1856
        %v1869 = vsel %vm1863, %v1856, %v1858
        %v1870 = vsel %vm1863, %v1858, %v1860
        %v1871 = vsel %vm1863, %v1860, %v1862
        %1880 = vst [vmem:[#allocation3 + $0x680] sm:$0xff] %v1864
        %1881 = vst [vmem:[#allocation3 + $0x688] sm:$0xff] %v1865
        %1882 = vst [vmem:[#allocation3 + $0x690] sm:$0xff] %v1866
        %1883 = vst [vmem:[#allocation3 + $0x698] sm:$0xff] %v1867
        %1884 = vst [vmem:[#allocation3 + $0x6a0] sm:$0xff] %v1868
        %1885 = vst [vmem:[#allocation3 + $0x6a8] sm:$0xff] %v1869
        %1886 = vst [vmem:[#allocation3 + $0x6b0] sm:$0xff] %v1870
        %1887 = vst [vmem:[#allocation3 + $0x6b8] sm:$0xff] %v1871
        %v1888 = vld [vmem:[#allocation7] sm:$0xff]
        %v1889 = vld [vmem:[#allocation7 + $0x8] sm:$0xff]
        %v1890 = vld [vmem:[#allocation3] sm:$0xff]
        %v1891 = vld [vmem:[#allocation3 + $0x8] sm:$0xff]
        %v1892 = vld [vmem:[#allocation3 + $0x10] sm:$0xff]
        %v1893 = vld [vmem:[#allocation3 + $0x18] sm:$0xff]
        %v1894 = vld [vmem:[#allocation3 + $0x20] sm:$0xff]
        %v1895 = vld [vmem:[#allocation3 + $0x28] sm:$0xff]
        %v1896 = vld [vmem:[#allocation3 + $0x30] sm:$0xff]
        %v1897 = vld [vmem:[#allocation3 + $0x38] sm:$0xff]
        %v1898 = vld [vmem:[#allocation3 + $0x40] sm:$0xff]
        %v1899 = vld [vmem:[#allocation3 + $0x48] sm:$0xff]
        %v1900 = vld [vmem:[#allocation3 + $0x50] sm:$0xff]
        %v1901 = vld [vmem:[#allocation3 + $0x58] sm:$0xff]
        %v1902 = vld [vmem:[#allocation3 + $0x60] sm:$0xff]
        %v1903 = vld [vmem:[#allocation3 + $0x68] sm:$0xff]
        %v1904 = vld [vmem:[#allocation3 + $0x70] sm:$0xff]
        %v1905 = vld [vmem:[#allocation3 + $0x78] sm:$0xff]
        %v1906 = vld [vmem:[#allocation3 + $0x80] sm:$0xff]
        %v1907 = vld [vmem:[#allocation3 + $0x88] sm:$0xff]
        %v1908 = vld [vmem:[#allocation3 + $0x90] sm:$0xff]
        %v1909 = vld [vmem:[#allocation3 + $0x98] sm:$0xff]
        %v1910 = vld [vmem:[#allocation3 + $0xa0] sm:$0xff]
        %v1911 = vld [vmem:[#allocation3 + $0xa8] sm:$0xff]
        %v1912 = vld [vmem:[#allocation3 + $0xb0] sm:$0xff]
        %v1913 = vld [vmem:[#allocation3 + $0xb8] sm:$0xff]
        %v1914 = vld [vmem:[#allocation3 + $0xc0] sm:$0xff]
        %v1915 = vld [vmem:[#allocation3 + $0xc8] sm:$0xff]
        %v1916 = vld [vmem:[#allocation3 + $0xd0] sm:$0xff]
        %v1917 = vld [vmem:[#allocation3 + $0xd8] sm:$0xff]
        %v1918 = vld [vmem:[#allocation3 + $0xe0] sm:$0xff]
        %v1919 = vld [vmem:[#allocation3 + $0xe8] sm:$0xff]
        %v1920 = vld [vmem:[#allocation3 + $0xf0] sm:$0xff]
        %v1921 = vld [vmem:[#allocation3 + $0xf8] sm:$0xff]
        %v1922 = vld [vmem:[#allocation3 + $0x100] sm:$0xff]
        %v1923 = vld [vmem:[#allocation3 + $0x108] sm:$0xff]
        %v1924 = vld [vmem:[#allocation3 + $0x110] sm:$0xff]
        %v1925 = vld [vmem:[#allocation3 + $0x118] sm:$0xff]
        %v1926 = vld [vmem:[#allocation3 + $0x120] sm:$0xff]
        %v1927 = vld [vmem:[#allocation3 + $0x128] sm:$0xff]
        %v1928 = vld [vmem:[#allocation3 + $0x130] sm:$0xff]
        %v1929 = vld [vmem:[#allocation3 + $0x138] sm:$0xff]
        %v1930 = vld [vmem:[#allocation3 + $0x140] sm:$0xff]
        %v1931 = vld [vmem:[#allocation3 + $0x148] sm:$0xff]
        %v1932 = vld [vmem:[#allocation3 + $0x150] sm:$0xff]
        %v1933 = vld [vmem:[#allocation3 + $0x158] sm:$0xff]
        %v1934 = vld [vmem:[#allocation3 + $0x160] sm:$0xff]
        %v1935 = vld [vmem:[#allocation3 + $0x168] sm:$0xff]
        %v1936 = vld [vmem:[#allocation3 + $0x170] sm:$0xff]
        %v1937 = vld [vmem:[#allocation3 + $0x178] sm:$0xff]
        %v1938 = vld [vmem:[#allocation3 + $0x180] sm:$0xff]
        %v1939 = vld [vmem:[#allocation3 + $0x188] sm:$0xff]
        %v1940 = vld [vmem:[#allocation3 + $0x190] sm:$0xff]
        %v1941 = vld [vmem:[#allocation3 + $0x198] sm:$0xff]
        %v1942 = vld [vmem:[#allocation3 + $0x1a0] sm:$0xff]
        %v1943 = vld [vmem:[#allocation3 + $0x1a8] sm:$0xff]
        %v1944 = vld [vmem:[#allocation3 + $0x1b0] sm:$0xff]
        %v1945 = vld [vmem:[#allocation3 + $0x1b8] sm:$0xff]
        %v1946 = vld [vmem:[#allocation3 + $0x1c0] sm:$0xff]
        %v1947 = vld [vmem:[#allocation3 + $0x1c8] sm:$0xff]
        %v1948 = vld [vmem:[#allocation3 + $0x1d0] sm:$0xff]
        %v1949 = vld [vmem:[#allocation3 + $0x1d8] sm:$0xff]
        %v1950 = vld [vmem:[#allocation3 + $0x1e0] sm:$0xff]
        %v1951 = vld [vmem:[#allocation3 + $0x1e8] sm:$0xff]
        %v1952 = vld [vmem:[#allocation3 + $0x1f0] sm:$0xff]
        %v1953 = vld [vmem:[#allocation3 + $0x1f8] sm:$0xff]
        %v1954 = vld [vmem:[#allocation3 + $0x200] sm:$0xff]
        %v1955 = vld [vmem:[#allocation3 + $0x208] sm:$0xff]
        %v1956 = vld [vmem:[#allocation3 + $0x210] sm:$0xff]
        %v1957 = vld [vmem:[#allocation3 + $0x218] sm:$0xff]
        %v1958 = vld [vmem:[#allocation3 + $0x220] sm:$0xff]
        %v1959 = vld [vmem:[#allocation3 + $0x228] sm:$0xff]
        %v1960 = vld [vmem:[#allocation3 + $0x230] sm:$0xff]
        %v1961 = vld [vmem:[#allocation3 + $0x238] sm:$0xff]
        %v1962 = vld [vmem:[#allocation3 + $0x240] sm:$0xff]
        %v1963 = vld [vmem:[#allocation3 + $0x248] sm:$0xff]
        %v1964 = vld [vmem:[#allocation3 + $0x250] sm:$0xff]
        %v1965 = vld [vmem:[#allocation3 + $0x258] sm:$0xff]
        %v1966 = vld [vmem:[#allocation3 + $0x260] sm:$0xff]
        %v1967 = vld [vmem:[#allocation3 + $0x268] sm:$0xff]
        %v1968 = vld [vmem:[#allocation3 + $0x270] sm:$0xff]
        %v1969 = vld [vmem:[#allocation3 + $0x278] sm:$0xff]
        %v1970 = vld [vmem:[#allocation3 + $0x280] sm:$0xff]
        %v1971 = vld [vmem:[#allocation3 + $0x288] sm:$0xff]
        %v1972 = vld [vmem:[#allocation3 + $0x290] sm:$0xff]
        %v1973 = vld [vmem:[#allocation3 + $0x298] sm:$0xff]
        %v1974 = vld [vmem:[#allocation3 + $0x2a0] sm:$0xff]
        %v1975 = vld [vmem:[#allocation3 + $0x2a8] sm:$0xff]
        %v1976 = vld [vmem:[#allocation3 + $0x2b0] sm:$0xff]
        %v1977 = vld [vmem:[#allocation3 + $0x2b8] sm:$0xff]
        %v1978 = vld [vmem:[#allocation3 + $0x2c0] sm:$0xff]
        %v1979 = vld [vmem:[#allocation3 + $0x2c8] sm:$0xff]
        %v1980 = vld [vmem:[#allocation3 + $0x2d0] sm:$0xff]
        %v1981 = vld [vmem:[#allocation3 + $0x2d8] sm:$0xff]
        %v1982 = vld [vmem:[#allocation3 + $0x2e0] sm:$0xff]
        %v1983 = vld [vmem:[#allocation3 + $0x2e8] sm:$0xff]
        %v1984 = vld [vmem:[#allocation3 + $0x2f0] sm:$0xff]
        %v1985 = vld [vmem:[#allocation3 + $0x2f8] sm:$0xff]
        %v1986 = vld [vmem:[#allocation3 + $0x300] sm:$0xff]
        %v1987 = vld [vmem:[#allocation3 + $0x308] sm:$0xff]
        %v1988 = vld [vmem:[#allocation3 + $0x310] sm:$0xff]
        %v1989 = vld [vmem:[#allocation3 + $0x318] sm:$0xff]
        %v1990 = vld [vmem:[#allocation3 + $0x320] sm:$0xff]
        %v1991 = vld [vmem:[#allocation3 + $0x328] sm:$0xff]
        %v1992 = vld [vmem:[#allocation3 + $0x330] sm:$0xff]
        %v1993 = vld [vmem:[#allocation3 + $0x338] sm:$0xff]
        %v1994 = vld [vmem:[#allocation3 + $0x340] sm:$0xff]
        %v1995 = vld [vmem:[#allocation3 + $0x348] sm:$0xff]
        %v1996 = vld [vmem:[#allocation3 + $0x350] sm:$0xff]
        %v1997 = vld [vmem:[#allocation3 + $0x358] sm:$0xff]
        %v1998 = vld [vmem:[#allocation3 + $0x360] sm:$0xff]
        %v1999 = vld [vmem:[#allocation3 + $0x368] sm:$0xff]
        %v2000 = vld [vmem:[#allocation3 + $0x370] sm:$0xff]
        %v2001 = vld [vmem:[#allocation3 + $0x378] sm:$0xff]
        %v2002 = vld [vmem:[#allocation3 + $0x380] sm:$0xff]
        %v2003 = vld [vmem:[#allocation3 + $0x388] sm:$0xff]
        %v2004 = vld [vmem:[#allocation3 + $0x390] sm:$0xff]
        %v2005 = vld [vmem:[#allocation3 + $0x398] sm:$0xff]
        %v2006 = vld [vmem:[#allocation3 + $0x3a0] sm:$0xff]
        %v2007 = vld [vmem:[#allocation3 + $0x3a8] sm:$0xff]
        %v2008 = vld [vmem:[#allocation3 + $0x3b0] sm:$0xff]
        %v2009 = vld [vmem:[#allocation3 + $0x3b8] sm:$0xff]
        %v2010 = vld [vmem:[#allocation3 + $0x3c0] sm:$0xff]
        %v2011 = vld [vmem:[#allocation3 + $0x3c8] sm:$0xff]
        %v2012 = vld [vmem:[#allocation3 + $0x3d0] sm:$0xff]
        %v2013 = vld [vmem:[#allocation3 + $0x3d8] sm:$0xff]
        %v2014 = vld [vmem:[#allocation3 + $0x3e0] sm:$0xff]
        %v2015 = vld [vmem:[#allocation3 + $0x3e8] sm:$0xff]
        %v2016 = vld [vmem:[#allocation3 + $0x3f0] sm:$0xff]
        %v2017 = vld [vmem:[#allocation3 + $0x3f8] sm:$0xff]
        %v2018 = vld [vmem:[#allocation3 + $0x400] sm:$0xff]
        %v2019 = vld [vmem:[#allocation3 + $0x408] sm:$0xff]
        %v2020 = vld [vmem:[#allocation3 + $0x410] sm:$0xff]
        %v2021 = vld [vmem:[#allocation3 + $0x418] sm:$0xff]
        %v2022 = vld [vmem:[#allocation3 + $0x420] sm:$0xff]
        %v2023 = vld [vmem:[#allocation3 + $0x428] sm:$0xff]
        %v2024 = vld [vmem:[#allocation3 + $0x430] sm:$0xff]
        %v2025 = vld [vmem:[#allocation3 + $0x438] sm:$0xff]
        %v2026 = vld [vmem:[#allocation3 + $0x440] sm:$0xff]
        %v2027 = vld [vmem:[#allocation3 + $0x448] sm:$0xff]
        %v2028 = vld [vmem:[#allocation3 + $0x450] sm:$0xff]
        %v2029 = vld [vmem:[#allocation3 + $0x458] sm:$0xff]
        %v2030 = vld [vmem:[#allocation3 + $0x460] sm:$0xff]
        %v2031 = vld [vmem:[#allocation3 + $0x468] sm:$0xff]
        %v2032 = vld [vmem:[#allocation3 + $0x470] sm:$0xff]
        %v2033 = vld [vmem:[#allocation3 + $0x478] sm:$0xff]
        %v2034 = vld [vmem:[#allocation3 + $0x480] sm:$0xff]
        %v2035 = vld [vmem:[#allocation3 + $0x488] sm:$0xff]
        %v2036 = vld [vmem:[#allocation3 + $0x490] sm:$0xff]
        %v2037 = vld [vmem:[#allocation3 + $0x498] sm:$0xff]
        %v2038 = vld [vmem:[#allocation3 + $0x4a0] sm:$0xff]
        %v2039 = vld [vmem:[#allocation3 + $0x4a8] sm:$0xff]
        %v2040 = vld [vmem:[#allocation3 + $0x4b0] sm:$0xff]
        %v2041 = vld [vmem:[#allocation3 + $0x4b8] sm:$0xff]
        %v2042 = vld [vmem:[#allocation3 + $0x4c0] sm:$0xff]
        %v2043 = vld [vmem:[#allocation3 + $0x4c8] sm:$0xff]
        %v2044 = vld [vmem:[#allocation3 + $0x4d0] sm:$0xff]
        %v2045 = vld [vmem:[#allocation3 + $0x4d8] sm:$0xff]
        %v2046 = vld [vmem:[#allocation3 + $0x4e0] sm:$0xff]
        %v2047 = vld [vmem:[#allocation3 + $0x4e8] sm:$0xff]
        %v2048 = vld [vmem:[#allocation3 + $0x4f0] sm:$0xff]
        %v2049 = vld [vmem:[#allocation3 + $0x4f8] sm:$0xff]
        %v2050 = vld [vmem:[#allocation3 + $0x500] sm:$0xff]
        %v2051 = vld [vmem:[#allocation3 + $0x508] sm:$0xff]
        %v2052 = vld [vmem:[#allocation3 + $0x510] sm:$0xff]
        %v2053 = vld [vmem:[#allocation3 + $0x518] sm:$0xff]
        %v2054 = vld [vmem:[#allocation3 + $0x520] sm:$0xff]
        %v2055 = vld [vmem:[#allocation3 + $0x528] sm:$0xff]
        %v2056 = vld [vmem:[#allocation3 + $0x530] sm:$0xff]
        %v2057 = vld [vmem:[#allocation3 + $0x538] sm:$0xff]
        %v2058 = vld [vmem:[#allocation3 + $0x540] sm:$0xff]
        %v2059 = vld [vmem:[#allocation3 + $0x548] sm:$0xff]
        %v2060 = vld [vmem:[#allocation3 + $0x550] sm:$0xff]
        %v2061 = vld [vmem:[#allocation3 + $0x558] sm:$0xff]
        %v2062 = vld [vmem:[#allocation3 + $0x560] sm:$0xff]
        %v2063 = vld [vmem:[#allocation3 + $0x568] sm:$0xff]
        %v2064 = vld [vmem:[#allocation3 + $0x570] sm:$0xff]
        %v2065 = vld [vmem:[#allocation3 + $0x578] sm:$0xff]
        %v2066 = vld [vmem:[#allocation3 + $0x580] sm:$0xff]
        %v2067 = vld [vmem:[#allocation3 + $0x588] sm:$0xff]
        %v2068 = vld [vmem:[#allocation3 + $0x590] sm:$0xff]
        %v2069 = vld [vmem:[#allocation3 + $0x598] sm:$0xff]
        %v2070 = vld [vmem:[#allocation3 + $0x5a0] sm:$0xff]
        %v2071 = vld [vmem:[#allocation3 + $0x5a8] sm:$0xff]
        %v2072 = vld [vmem:[#allocation3 + $0x5b0] sm:$0xff]
        %v2073 = vld [vmem:[#allocation3 + $0x5b8] sm:$0xff]
        %v2074 = vld [vmem:[#allocation3 + $0x5c0] sm:$0xff]
        %v2075 = vld [vmem:[#allocation3 + $0x5c8] sm:$0xff]
        %v2076 = vld [vmem:[#allocation3 + $0x5d0] sm:$0xff]
        %v2077 = vld [vmem:[#allocation3 + $0x5d8] sm:$0xff]
        %v2078 = vld [vmem:[#allocation3 + $0x5e0] sm:$0xff]
        %v2079 = vld [vmem:[#allocation3 + $0x5e8] sm:$0xff]
        %v2080 = vld [vmem:[#allocation3 + $0x5f0] sm:$0xff]
        %v2081 = vld [vmem:[#allocation3 + $0x5f8] sm:$0xff]
        %v2082 = vld [vmem:[#allocation3 + $0x600] sm:$0xff]
        %v2083 = vld [vmem:[#allocation3 + $0x608] sm:$0xff]
        %v2084 = vld [vmem:[#allocation3 + $0x610] sm:$0xff]
        %v2085 = vld [vmem:[#allocation3 + $0x618] sm:$0xff]
        %v2086 = vld [vmem:[#allocation3 + $0x620] sm:$0xff]
        %v2087 = vld [vmem:[#allocation3 + $0x628] sm:$0xff]
        %v2088 = vld [vmem:[#allocation3 + $0x630] sm:$0xff]
        %v2089 = vld [vmem:[#allocation3 + $0x638] sm:$0xff]
        %v2090 = vld [vmem:[#allocation3 + $0x640] sm:$0xff]
        %v2091 = vld [vmem:[#allocation3 + $0x648] sm:$0xff]
        %v2092 = vld [vmem:[#allocation3 + $0x650] sm:$0xff]
        %v2093 = vld [vmem:[#allocation3 + $0x658] sm:$0xff]
        %v2094 = vld [vmem:[#allocation3 + $0x660] sm:$0xff]
        %v2095 = vld [vmem:[#allocation3 + $0x668] sm:$0xff]
        %v2096 = vld [vmem:[#allocation3 + $0x670] sm:$0xff]
        %v2097 = vld [vmem:[#allocation3 + $0x678] sm:$0xff]
        %v2098 = vld [vmem:[#allocation3 + $0x680] sm:$0xff]
        %v2099 = vld [vmem:[#allocation3 + $0x688] sm:$0xff]
        %v2100 = vld [vmem:[#allocation3 + $0x690] sm:$0xff]
        %v2101 = vld [vmem:[#allocation3 + $0x698] sm:$0xff]
        %v2102 = vld [vmem:[#allocation3 + $0x6a0] sm:$0xff]
        %v2103 = vld [vmem:[#allocation3 + $0x6a8] sm:$0xff]
        %v2104 = vld [vmem:[#allocation3 + $0x6b0] sm:$0xff]
        %v2105 = vld [vmem:[#allocation3 + $0x6b8] sm:$0xff]
        %vm2106 = vcmask 719872
        %v2108 = vsel %vm2106, %v1889, 0
        %2110 = vmatprep.subr.mxu0 %v1891
        %2111 = vmatpush1.msra.mxu0 %v1890
        %2112 = vmatprep.subr.mxu0 %v1899
        %2113 = vmatpush1.msra.mxu0 %v1898
        %2114 = vmatprep.subr.mxu0 %v1907
        %2115 = vmatpush1.msra.mxu0 %v1906
        %2116 = vmatprep.subr.mxu0 %v1915
        %2117 = vmatpush1.msra.mxu0 %v1914
        %2118 = vmatprep.subr.mxu0 %v1923
        %2119 = vmatpush1.msra.mxu0 %v1922
        %2120 = vmatprep.subr.mxu0 %v1931
        %2121 = vmatpush1.msra.mxu0 %v1930
        %2122 = vmatprep.subr.mxu0 %v1939
        %2123 = vmatpush1.msra.mxu0 %v1938
        %2124 = vmatprep.subr.mxu0 %v1947
        %2125 = vmatpush1.msra.mxu0 %v1946
        %2126 = vmatprep.subr.mxu0 %v1955
        %2127 = vmatpush1.msra.mxu0 %v1954
        %2128 = vmatprep.subr.mxu0 %v1963
        %2129 = vmatpush1.msra.mxu0 %v1962
        %2130 = vmatprep.subr.mxu0 %v1971
        %2131 = vmatpush1.msra.mxu0 %v1970
        %2132 = vmatprep.subr.mxu0 %v1979
        %2133 = vmatpush1.msra.mxu0 %v1978
        %2134 = vmatprep.subr.mxu0 %v1987
        %2135 = vmatpush1.msra.mxu0 %v1986
        %2136 = vmatprep.subr.mxu0 %v1995
        %2137 = vmatpush1.msra.mxu0 %v1994
        %2138 = vmatprep.subr.mxu0 %v2003
        %2139 = vmatpush1.msra.mxu0 %v2002
        %2140 = vmatprep.subr.mxu0 %v2011
        %2141 = vmatpush1.msra.mxu0 %v2010
        %2142 = vmatprep.subr.mxu0 %v2019
        %2143 = vmatpush1.msra.mxu0 %v2018
        %2144 = vmatprep.subr.mxu0 %v2027
        %2145 = vmatpush1.msra.mxu0 %v2026
        %2146 = vmatprep.subr.mxu0 %v2035
        %2147 = vmatpush1.msra.mxu0 %v2034
        %2148 = vmatprep.subr.mxu0 %v2043
        %2149 = vmatpush1.msra.mxu0 %v2042
        %2150 = vmatprep.subr.mxu0 %v2051
        %2151 = vmatpush1.msra.mxu0 %v2050
        %2152 = vmatprep.subr.mxu0 %v2059
        %2153 = vmatpush1.msra.mxu0 %v2058
        %2154 = vmatprep.subr.mxu0 %v2067
        %2155 = vmatpush1.msra.mxu0 %v2066
        %2156 = vmatprep.subr.mxu0 %v2075
        %2157 = vmatpush1.msra.mxu0 %v2074
        %2158 = vmatprep.subr.mxu0 %v2083
        %2159 = vmatpush1.msra.mxu0 %v2082
        %2160 = vmatprep.subr.mxu0 %v2091
        %2161 = vmatpush1.msra.mxu0 %v2090
        %2162 = vmatprep.subr.mxu0 %v2099
        %2163 = vmatpush1.msra.mxu0 %v2098
        %2164 = vmatprep.subr.mxu0 0.0
        %2165 = vmatpush1.msra.mxu0 0.0
        %2166 = vmatprep.subr.mxu0 0.0
        %2167 = vmatpush1.msra.mxu0 0.0
        %2168 = vmatprep.subr.mxu0 0.0
        %2169 = vmatpush1.msra.mxu0 0.0
        %2170 = vmatprep.subr.mxu0 0.0
        %2171 = vmatpush1.msra.mxu0 0.0
        %2172 = vmatprep.subr.mxu0 0.0
        %2173 = vmatpush1.msra.mxu0 0.0
        %2174 = vmatprep.mubr.f32.mxu0 %v2108
        %2175 = vmatmul.mubr.f32.gmra.mrb[0].mxu0 %v1888
        %v2176 = vpop.f32.mrb[0].mxu0
        %v2177 = vadd.f32 0.0, %v2176
        %v2178 = vpop.f32.mrb[0].mxu0
        %v2179 = vadd.f32 0.0, %v2178
        %2180 = vdwg.mxu0
        %2181 = vmatprep.subr.mxu0 %v1893
        %2182 = vmatpush1.msra.mxu0 %v1892
        %2183 = vmatprep.subr.mxu0 %v1901
        %2184 = vmatpush1.msra.mxu0 %v1900
        %2185 = vmatprep.subr.mxu0 %v1909
        %2186 = vmatpush1.msra.mxu0 %v1908
        %2187 = vmatprep.subr.mxu0 %v1917
        %2188 = vmatpush1.msra.mxu0 %v1916
        %2189 = vmatprep.subr.mxu0 %v1925
        %2190 = vmatpush1.msra.mxu0 %v1924
        %2191 = vmatprep.subr.mxu0 %v1933
        %2192 = vmatpush1.msra.mxu0 %v1932
        %2193 = vmatprep.subr.mxu0 %v1941
        %2194 = vmatpush1.msra.mxu0 %v1940
        %2195 = vmatprep.subr.mxu0 %v1949
        %2196 = vmatpush1.msra.mxu0 %v1948
        %2197 = vmatprep.subr.mxu0 %v1957
        %2198 = vmatpush1.msra.mxu0 %v1956
        %2199 = vmatprep.subr.mxu0 %v1965
        %2200 = vmatpush1.msra.mxu0 %v1964
        %2201 = vmatprep.subr.mxu0 %v1973
        %2202 = vmatpush1.msra.mxu0 %v1972
        %2203 = vmatprep.subr.mxu0 %v1981
        %2204 = vmatpush1.msra.mxu0 %v1980
        %2205 = vmatprep.subr.mxu0 %v1989
        %2206 = vmatpush1.msra.mxu0 %v1988
        %2207 = vmatprep.subr.mxu0 %v1997
        %2208 = vmatpush1.msra.mxu0 %v1996
        %2209 = vmatprep.subr.mxu0 %v2005
        %2210 = vmatpush1.msra.mxu0 %v2004
        %2211 = vmatprep.subr.mxu0 %v2013
        %2212 = vmatpush1.msra.mxu0 %v2012
        %2213 = vmatprep.subr.mxu0 %v2021
        %2214 = vmatpush1.msra.mxu0 %v2020
        %2215 = vmatprep.subr.mxu0 %v2029
        %2216 = vmatpush1.msra.mxu0 %v2028
        %2217 = vmatprep.subr.mxu0 %v2037
        %2218 = vmatpush1.msra.mxu0 %v2036
        %2219 = vmatprep.subr.mxu0 %v2045
        %2220 = vmatpush1.msra.mxu0 %v2044
        %2221 = vmatprep.subr.mxu0 %v2053
        %2222 = vmatpush1.msra.mxu0 %v2052
        %2223 = vmatprep.subr.mxu0 %v2061
        %2224 = vmatpush1.msra.mxu0 %v2060
        %2225 = vmatprep.subr.mxu0 %v2069
        %2226 = vmatpush1.msra.mxu0 %v2068
        %2227 = vmatprep.subr.mxu0 %v2077
        %2228 = vmatpush1.msra.mxu0 %v2076
        %2229 = vmatprep.subr.mxu0 %v2085
        %2230 = vmatpush1.msra.mxu0 %v2084
        %2231 = vmatprep.subr.mxu0 %v2093
        %2232 = vmatpush1.msra.mxu0 %v2092
        %2233 = vmatprep.subr.mxu0 %v2101
        %2234 = vmatpush1.msra.mxu0 %v2100
        %2235 = vmatprep.subr.mxu0 0.0
        %2236 = vmatpush1.msra.mxu0 0.0
        %2237 = vmatprep.subr.mxu0 0.0
        %2238 = vmatpush1.msra.mxu0 0.0
        %2239 = vmatprep.subr.mxu0 0.0
        %2240 = vmatpush1.msra.mxu0 0.0
        %2241 = vmatprep.subr.mxu0 0.0
        %2242 = vmatpush1.msra.mxu0 0.0
        %2243 = vmatprep.subr.mxu0 0.0
        %2244 = vmatpush1.msra.mxu0 0.0
        %2245 = vmatprep.mubr.f32.mxu0 %v2108
        %2246 = vmatmul.mubr.f32.gmra.mrb[0].mxu0 %v1888
        %v2247 = vpop.f32.mrb[0].mxu0
        %v2248 = vadd.f32 0.0, %v2247
        %v2249 = vpop.f32.mrb[0].mxu0
        %v2250 = vadd.f32 0.0, %v2249
        %2251 = vdwg.mxu0
        %2252 = vmatprep.subr.mxu0 %v1895
        %2253 = vmatpush1.msra.mxu0 %v1894
        %2254 = vmatprep.subr.mxu0 %v1903
        %2255 = vmatpush1.msra.mxu0 %v1902
        %2256 = vmatprep.subr.mxu0 %v1911
        %2257 = vmatpush1.msra.mxu0 %v1910
        %2258 = vmatprep.subr.mxu0 %v1919
        %2259 = vmatpush1.msra.mxu0 %v1918
        %2260 = vmatprep.subr.mxu0 %v1927
        %2261 = vmatpush1.msra.mxu0 %v1926
        %2262 = vmatprep.subr.mxu0 %v1935
        %2263 = vmatpush1.msra.mxu0 %v1934
        %2264 = vmatprep.subr.mxu0 %v1943
        %2265 = vmatpush1.msra.mxu0 %v1942
        %2266 = vmatprep.subr.mxu0 %v1951
        %2267 = vmatpush1.msra.mxu0 %v1950
        %2268 = vmatprep.subr.mxu0 %v1959
        %2269 = vmatpush1.msra.mxu0 %v1958
        %2270 = vmatprep.subr.mxu0 %v1967
        %2271 = vmatpush1.msra.mxu0 %v1966
        %2272 = vmatprep.subr.mxu0 %v1975
        %2273 = vmatpush1.msra.mxu0 %v1974
        %2274 = vmatprep.subr.mxu0 %v1983
        %2275 = vmatpush1.msra.mxu0 %v1982
        %2276 = vmatprep.subr.mxu0 %v1991
        %2277 = vmatpush1.msra.mxu0 %v1990
        %2278 = vmatprep.subr.mxu0 %v1999
        %2279 = vmatpush1.msra.mxu0 %v1998
        %2280 = vmatprep.subr.mxu0 %v2007
        %2281 = vmatpush1.msra.mxu0 %v2006
        %2282 = vmatprep.subr.mxu0 %v2015
        %2283 = vmatpush1.msra.mxu0 %v2014
        %2284 = vmatprep.subr.mxu0 %v2023
        %2285 = vmatpush1.msra.mxu0 %v2022
        %2286 = vmatprep.subr.mxu0 %v2031
        %2287 = vmatpush1.msra.mxu0 %v2030
        %2288 = vmatprep.subr.mxu0 %v2039
        %2289 = vmatpush1.msra.mxu0 %v2038
        %2290 = vmatprep.subr.mxu0 %v2047
        %2291 = vmatpush1.msra.mxu0 %v2046
        %2292 = vmatprep.subr.mxu0 %v2055
        %2293 = vmatpush1.msra.mxu0 %v2054
        %2294 = vmatprep.subr.mxu0 %v2063
        %2295 = vmatpush1.msra.mxu0 %v2062
        %2296 = vmatprep.subr.mxu0 %v2071
        %2297 = vmatpush1.msra.mxu0 %v2070
        %2298 = vmatprep.subr.mxu0 %v2079
        %2299 = vmatpush1.msra.mxu0 %v2078
        %2300 = vmatprep.subr.mxu0 %v2087
        %2301 = vmatpush1.msra.mxu0 %v2086
        %2302 = vmatprep.subr.mxu0 %v2095
        %2303 = vmatpush1.msra.mxu0 %v2094
        %2304 = vmatprep.subr.mxu0 %v2103
        %2305 = vmatpush1.msra.mxu0 %v2102
        %2306 = vmatprep.subr.mxu0 0.0
        %2307 = vmatpush1.msra.mxu0 0.0
        %2308 = vmatprep.subr.mxu0 0.0
        %2309 = vmatpush1.msra.mxu0 0.0
        %2310 = vmatprep.subr.mxu0 0.0
        %2311 = vmatpush1.msra.mxu0 0.0
        %2312 = vmatprep.subr.mxu0 0.0
        %2313 = vmatpush1.msra.mxu0 0.0
        %2314 = vmatprep.subr.mxu0 0.0
        %2315 = vmatpush1.msra.mxu0 0.0
        %2316 = vmatprep.mubr.f32.mxu0 %v2108
        %2317 = vmatmul.mubr.f32.gmra.mrb[0].mxu0 %v1888
        %v2318 = vpop.f32.mrb[0].mxu0
        %v2319 = vadd.f32 0.0, %v2318
        %v2320 = vpop.f32.mrb[0].mxu0
        %v2321 = vadd.f32 0.0, %v2320
        %2322 = vdwg.mxu0
        %2323 = vmatprep.subr.mxu0 %v1897
        %2324 = vmatpush1.msra.mxu0 %v1896
        %2325 = vmatprep.subr.mxu0 %v1905
        %2326 = vmatpush1.msra.mxu0 %v1904
        %2327 = vmatprep.subr.mxu0 %v1913
        %2328 = vmatpush1.msra.mxu0 %v1912
        %2329 = vmatprep.subr.mxu0 %v1921
        %2330 = vmatpush1.msra.mxu0 %v1920
        %2331 = vmatprep.subr.mxu0 %v1929
        %2332 = vmatpush1.msra.mxu0 %v1928
        %2333 = vmatprep.subr.mxu0 %v1937
        %2334 = vmatpush1.msra.mxu0 %v1936
        %2335 = vmatprep.subr.mxu0 %v1945
        %2336 = vmatpush1.msra.mxu0 %v1944
        %2337 = vmatprep.subr.mxu0 %v1953
        %2338 = vmatpush1.msra.mxu0 %v1952
        %2339 = vmatprep.subr.mxu0 %v1961
        %2340 = vmatpush1.msra.mxu0 %v1960
        %2341 = vmatprep.subr.mxu0 %v1969
        %2342 = vmatpush1.msra.mxu0 %v1968
        %2343 = vmatprep.subr.mxu0 %v1977
        %2344 = vmatpush1.msra.mxu0 %v1976
        %2345 = vmatprep.subr.mxu0 %v1985
        %2346 = vmatpush1.msra.mxu0 %v1984
        %2347 = vmatprep.subr.mxu0 %v1993
        %2348 = vmatpush1.msra.mxu0 %v1992
        %2349 = vmatprep.subr.mxu0 %v2001
        %2350 = vmatpush1.msra.mxu0 %v2000
        %2351 = vmatprep.subr.mxu0 %v2009
        %2352 = vmatpush1.msra.mxu0 %v2008
        %2353 = vmatprep.subr.mxu0 %v2017
        %2354 = vmatpush1.msra.mxu0 %v2016
        %2355 = vmatprep.subr.mxu0 %v2025
        %2356 = vmatpush1.msra.mxu0 %v2024
        %2357 = vmatprep.subr.mxu0 %v2033
        %2358 = vmatpush1.msra.mxu0 %v2032
        %2359 = vmatprep.subr.mxu0 %v2041
        %2360 = vmatpush1.msra.mxu0 %v2040
        %2361 = vmatprep.subr.mxu0 %v2049
        %2362 = vmatpush1.msra.mxu0 %v2048
        %2363 = vmatprep.subr.mxu0 %v2057
        %2364 = vmatpush1.msra.mxu0 %v2056
        %2365 = vmatprep.subr.mxu0 %v2065
        %2366 = vmatpush1.msra.mxu0 %v2064
        %2367 = vmatprep.subr.mxu0 %v2073
        %2368 = vmatpush1.msra.mxu0 %v2072
        %2369 = vmatprep.subr.mxu0 %v2081
        %2370 = vmatpush1.msra.mxu0 %v2080
        %2371 = vmatprep.subr.mxu0 %v2089
        %2372 = vmatpush1.msra.mxu0 %v2088
        %2373 = vmatprep.subr.mxu0 %v2097
        %2374 = vmatpush1.msra.mxu0 %v2096
        %2375 = vmatprep.subr.mxu0 %v2105
        %2376 = vmatpush1.msra.mxu0 %v2104
        %2377 = vmatprep.subr.mxu0 0.0
        %2378 = vmatpush1.msra.mxu0 0.0
        %2379 = vmatprep.subr.mxu0 0.0
        %2380 = vmatpush1.msra.mxu0 0.0
        %2381 = vmatprep.subr.mxu0 0.0
        %2382 = vmatpush1.msra.mxu0 0.0
        %2383 = vmatprep.subr.mxu0 0.0
        %2384 = vmatpush1.msra.mxu0 0.0
        %2385 = vmatprep.subr.mxu0 0.0
        %2386 = vmatpush1.msra.mxu0 0.0
        %2387 = vmatprep.mubr.f32.mxu0 %v2108
        %2388 = vmatmul.mubr.f32.gmra.mrb[0].mxu0 %v1888
        %v2389 = vpop.f32.mrb[0].mxu0
        %v2390 = vadd.f32 0.0, %v2389
        %v2391 = vpop.f32.mrb[0].mxu0
        %v2392 = vadd.f32 0.0, %v2391
        %2393 = vdwg.mxu0
        %v2394 = vld [vmem:[#allocation9] sm:$0xff]
        %v2396 = vlaneseq
        %v2397 = vshrl.u32 %v2396, 7
        %v2398 = vsub.s32 0, %v2397
        %v2399 = vrot.slane %v2394, %v2398
        %v2400 = vlaneseq
        %v2401 = vshrl.u32 %v2400, 7
        %v2402 = vsub.s32 1, %v2401
        %v2403 = vrot.slane %v2394, %v2402
        %v2404 = vlaneseq
        %v2405 = vshrl.u32 %v2404, 7
        %v2406 = vsub.s32 2, %v2405
        %v2407 = vrot.slane %v2394, %v2406
        %v2408 = vlaneseq
        %v2409 = vshrl.u32 %v2408, 7
        %v2410 = vsub.s32 3, %v2409
        %v2411 = vrot.slane %v2394, %v2410
        %v2412 = vlaneseq
        %v2413 = vshrl.u32 %v2412, 7
        %v2414 = vsub.s32 4, %v2413
        %v2415 = vrot.slane %v2394, %v2414
        %v2416 = vlaneseq
        %v2417 = vshrl.u32 %v2416, 7
        %v2418 = vsub.s32 5, %v2417
        %v2419 = vrot.slane %v2394, %v2418
        %v2420 = vlaneseq
        %v2421 = vshrl.u32 %v2420, 7
        %v2422 = vsub.s32 6, %v2421
        %v2423 = vrot.slane %v2394, %v2422
        %v2424 = vlaneseq
        %v2425 = vshrl.u32 %v2424, 7
        %v2426 = vsub.s32 7, %v2425
        %v2427 = vrot.slane %v2394, %v2426
        %v2436 = vmul.f32 %v2177, %v2399
        %v2437 = vmul.f32 %v2179, %v2403
        %v2438 = vmul.f32 %v2248, %v2407
        %v2439 = vmul.f32 %v2250, %v2411
        %v2440 = vmul.f32 %v2319, %v2415
        %v2441 = vmul.f32 %v2321, %v2419
        %v2442 = vmul.f32 %v2390, %v2423
        %v2443 = vmul.f32 %v2392, %v2427
        %2452 = vrot.lane.b32.xlu0 %v2436, 111
        %v2453 = vpop.permute.xlu0 %2452
        %2454 = vrot.lane.b32.xlu0 %v2437, 111
        %v2455 = vpop.permute.xlu0 %2454
        %2456 = vrot.lane.b32.xlu0 %v2438, 111
        %v2457 = vpop.permute.xlu0 %2456
        %2458 = vrot.lane.b32.xlu0 %v2439, 111
        %v2459 = vpop.permute.xlu0 %2458
        %2460 = vrot.lane.b32.xlu0 %v2440, 111
        %v2461 = vpop.permute.xlu0 %2460
        %2462 = vrot.lane.b32.xlu0 %v2441, 111
        %v2463 = vpop.permute.xlu0 %2462
        %2464 = vrot.lane.b32.xlu0 %v2442, 111
        %v2465 = vpop.permute.xlu0 %2464
        %2466 = vrot.lane.b32.xlu0 %v2443, 111
        %v2467 = vpop.permute.xlu0 %2466
        %v2468 = vsel %vm259, %v2453, %v2455
        %v2469 = vsel %vm259, %v2455, %v2457
        %v2470 = vsel %vm259, %v2457, %v2459
        %v2471 = vsel %vm259, %v2459, %v2461
        %v2472 = vsel %vm259, %v2461, %v2463
        %v2473 = vsel %vm259, %v2463, %v2465
        %v2474 = vsel %vm259, %v2465, %v2467
        %2484 = vst.msk [vmem:[#allocation2] sm:$0xff] %vm276, %v2453
        %2485 = vst [vmem:[#allocation2 + $0x8] sm:$0xff] %v2468
        %2486 = vst [vmem:[#allocation2 + $0x10] sm:$0xff] %v2469
        %2487 = vst [vmem:[#allocation2 + $0x18] sm:$0xff] %v2470
        %2488 = vst [vmem:[#allocation2 + $0x20] sm:$0xff] %v2471
        %2489 = vst [vmem:[#allocation2 + $0x28] sm:$0xff] %v2472
        %2490 = vst [vmem:[#allocation2 + $0x30] sm:$0xff] %v2473
        %2491 = vst [vmem:[#allocation2 + $0x38] sm:$0xff] %v2474
        %2492 = vst.msk [vmem:[#allocation2 + $0x40] sm:$0xff] %vm259, %v2467
        %v2493 = vld [vmem:[#allocation2] sm:$0xff]
        %v2494 = vld [vmem:[#allocation2 + $0x8] sm:$0xff]
        %v2495 = vld [vmem:[#allocation2 + $0x10] sm:$0xff]
        %v2496 = vld [vmem:[#allocation2 + $0x18] sm:$0xff]
        %v2497 = vld [vmem:[#allocation2 + $0x20] sm:$0xff]
        %v2498 = vld [vmem:[#allocation2 + $0x28] sm:$0xff]
        %v2499 = vld [vmem:[#allocation2 + $0x30] sm:$0xff]
        %v2500 = vld [vmem:[#allocation2 + $0x38] sm:$0xff]
        %2501 = vst [vmem:[#allocation3] sm:$0xff] %v2493
        %2502 = vst [vmem:[#allocation3 + $0x8] sm:$0xff] %v2494
        %2503 = vst [vmem:[#allocation3 + $0x10] sm:$0xff] %v2495
        %2504 = vst [vmem:[#allocation3 + $0x18] sm:$0xff] %v2496
        %2505 = vst [vmem:[#allocation3 + $0x20] sm:$0xff] %v2497
        %2506 = vst [vmem:[#allocation3 + $0x28] sm:$0xff] %v2498
        %2507 = vst [vmem:[#allocation3 + $0x30] sm:$0xff] %v2499
        %2508 = vst [vmem:[#allocation3 + $0x38] sm:$0xff] %v2500
        %v2509 = vld [vmem:[#allocation2] sm:$0xff]
        %v2510 = vld [vmem:[#allocation2 + $0x8] sm:$0xff]
        %v2511 = vld [vmem:[#allocation2 + $0x10] sm:$0xff]
        %v2512 = vld [vmem:[#allocation2 + $0x18] sm:$0xff]
        %v2513 = vld [vmem:[#allocation2 + $0x20] sm:$0xff]
        %v2514 = vld [vmem:[#allocation2 + $0x28] sm:$0xff]
        %v2515 = vld [vmem:[#allocation2 + $0x30] sm:$0xff]
        %v2516 = vld [vmem:[#allocation2 + $0x38] sm:$0xff]
        %v2517 = vld [vmem:[#allocation2 + $0x40] sm:$0xff]
        %2527 = vrot.lane.b32.xlu0 %v2509, 127
        %v2528 = vpop.permute.xlu0 %2527
        %2529 = vrot.lane.b32.xlu0 %v2510, 127
        %v2530 = vpop.permute.xlu0 %2529
        %2531 = vrot.lane.b32.xlu0 %v2511, 127
        %v2532 = vpop.permute.xlu0 %2531
        %2533 = vrot.lane.b32.xlu0 %v2512, 127
        %v2534 = vpop.permute.xlu0 %2533
        %2535 = vrot.lane.b32.xlu0 %v2513, 127
        %v2536 = vpop.permute.xlu0 %2535
        %2537 = vrot.lane.b32.xlu0 %v2514, 127
        %v2538 = vpop.permute.xlu0 %2537
        %2539 = vrot.lane.b32.xlu0 %v2515, 127
        %v2540 = vpop.permute.xlu0 %2539
        %2541 = vrot.lane.b32.xlu0 %v2516, 127
        %v2542 = vpop.permute.xlu0 %2541
        %2543 = vrot.lane.b32.xlu0 %v2517, 127
        %v2544 = vpop.permute.xlu0 %2543
        %v2545 = vsel %vm338, %v2528, %v2530
        %v2546 = vsel %vm338, %v2530, %v2532
        %v2547 = vsel %vm338, %v2532, %v2534
        %v2548 = vsel %vm338, %v2534, %v2536
        %v2549 = vsel %vm338, %v2536, %v2538
        %v2550 = vsel %vm338, %v2538, %v2540
        %v2551 = vsel %vm338, %v2540, %v2542
        %v2552 = vsel %vm338, %v2542, %v2544
        %2561 = vst [vmem:[#allocation3 + $0x40] sm:$0xff] %v2545
        %2562 = vst [vmem:[#allocation3 + $0x48] sm:$0xff] %v2546
        %2563 = vst [vmem:[#allocation3 + $0x50] sm:$0xff] %v2547
        %2564 = vst [vmem:[#allocation3 + $0x58] sm:$0xff] %v2548
        %2565 = vst [vmem:[#allocation3 + $0x60] sm:$0xff] %v2549
        %2566 = vst [vmem:[#allocation3 + $0x68] sm:$0xff] %v2550
        %2567 = vst [vmem:[#allocation3 + $0x70] sm:$0xff] %v2551
        %2568 = vst [vmem:[#allocation3 + $0x78] sm:$0xff] %v2552
        %v2569 = vld [vmem:[#allocation2] sm:$0xff]
        %v2570 = vld [vmem:[#allocation2 + $0x8] sm:$0xff]
        %v2571 = vld [vmem:[#allocation2 + $0x10] sm:$0xff]
        %v2572 = vld [vmem:[#allocation2 + $0x18] sm:$0xff]
        %v2573 = vld [vmem:[#allocation2 + $0x20] sm:$0xff]
        %v2574 = vld [vmem:[#allocation2 + $0x28] sm:$0xff]
        %v2575 = vld [vmem:[#allocation2 + $0x30] sm:$0xff]
        %v2576 = vld [vmem:[#allocation2 + $0x38] sm:$0xff]
        %v2577 = vld [vmem:[#allocation2 + $0x40] sm:$0xff]
        %2587 = vrot.lane.b32.xlu0 %v2569, 126
        %v2588 = vpop.permute.xlu0 %2587
        %2589 = vrot.lane.b32.xlu0 %v2570, 126
        %v2590 = vpop.permute.xlu0 %2589
        %2591 = vrot.lane.b32.xlu0 %v2571, 126
        %v2592 = vpop.permute.xlu0 %2591
        %2593 = vrot.lane.b32.xlu0 %v2572, 126
        %v2594 = vpop.permute.xlu0 %2593
        %2595 = vrot.lane.b32.xlu0 %v2573, 126
        %v2596 = vpop.permute.xlu0 %2595
        %2597 = vrot.lane.b32.xlu0 %v2574, 126
        %v2598 = vpop.permute.xlu0 %2597
        %2599 = vrot.lane.b32.xlu0 %v2575, 126
        %v2600 = vpop.permute.xlu0 %2599
        %2601 = vrot.lane.b32.xlu0 %v2576, 126
        %v2602 = vpop.permute.xlu0 %2601
        %2603 = vrot.lane.b32.xlu0 %v2577, 126
        %v2604 = vpop.permute.xlu0 %2603
        %v2605 = vsel %vm399, %v2588, %v2590
        %v2606 = vsel %vm399, %v2590, %v2592
        %v2607 = vsel %vm399, %v2592, %v2594
        %v2608 = vsel %vm399, %v2594, %v2596
        %v2609 = vsel %vm399, %v2596, %v2598
        %v2610 = vsel %vm399, %v2598, %v2600
        %v2611 = vsel %vm399, %v2600, %v2602
        %v2612 = vsel %vm399, %v2602, %v2604
        %2621 = vst [vmem:[#allocation3 + $0x80] sm:$0xff] %v2605
        %2622 = vst [vmem:[#allocation3 + $0x88] sm:$0xff] %v2606
        %2623 = vst [vmem:[#allocation3 + $0x90] sm:$0xff] %v2607
        %2624 = vst [vmem:[#allocation3 + $0x98] sm:$0xff] %v2608
        %2625 = vst [vmem:[#allocation3 + $0xa0] sm:$0xff] %v2609
        %2626 = vst [vmem:[#allocation3 + $0xa8] sm:$0xff] %v2610
        %2627 = vst [vmem:[#allocation3 + $0xb0] sm:$0xff] %v2611
        %2628 = vst [vmem:[#allocation3 + $0xb8] sm:$0xff] %v2612
        %v2629 = vld [vmem:[#allocation2] sm:$0xff]
        %v2630 = vld [vmem:[#allocation2 + $0x8] sm:$0xff]
        %v2631 = vld [vmem:[#allocation2 + $0x10] sm:$0xff]
        %v2632 = vld [vmem:[#allocation2 + $0x18] sm:$0xff]
        %v2633 = vld [vmem:[#allocation2 + $0x20] sm:$0xff]
        %v2634 = vld [vmem:[#allocation2 + $0x28] sm:$0xff]
        %v2635 = vld [vmem:[#allocation2 + $0x30] sm:$0xff]
        %v2636 = vld [vmem:[#allocation2 + $0x38] sm:$0xff]
        %v2637 = vld [vmem:[#allocation2 + $0x40] sm:$0xff]
        %2647 = vrot.lane.b32.xlu0 %v2629, 118
        %v2648 = vpop.permute.xlu0 %2647
        %2649 = vrot.lane.b32.xlu0 %v2630, 118
        %v2650 = vpop.permute.xlu0 %2649
        %2651 = vrot.lane.b32.xlu0 %v2631, 118
        %v2652 = vpop.permute.xlu0 %2651
        %2653 = vrot.lane.b32.xlu0 %v2632, 118
        %v2654 = vpop.permute.xlu0 %2653
        %2655 = vrot.lane.b32.xlu0 %v2633, 118
        %v2656 = vpop.permute.xlu0 %2655
        %2657 = vrot.lane.b32.xlu0 %v2634, 118
        %v2658 = vpop.permute.xlu0 %2657
        %2659 = vrot.lane.b32.xlu0 %v2635, 118
        %v2660 = vpop.permute.xlu0 %2659
        %2661 = vrot.lane.b32.xlu0 %v2636, 118
        %v2662 = vpop.permute.xlu0 %2661
        %2663 = vrot.lane.b32.xlu0 %v2637, 118
        %v2664 = vpop.permute.xlu0 %2663
        %v2665 = vsel %vm460, %v2648, %v2650
        %v2666 = vsel %vm460, %v2650, %v2652
        %v2667 = vsel %vm460, %v2652, %v2654
        %v2668 = vsel %vm460, %v2654, %v2656
        %v2669 = vsel %vm460, %v2656, %v2658
        %v2670 = vsel %vm460, %v2658, %v2660
        %v2671 = vsel %vm460, %v2660, %v2662
        %v2672 = vsel %vm460, %v2662, %v2664
        %2681 = vst [vmem:[#allocation3 + $0xc0] sm:$0xff] %v2665
        %2682 = vst [vmem:[#allocation3 + $0xc8] sm:$0xff] %v2666
        %2683 = vst [vmem:[#allocation3 + $0xd0] sm:$0xff] %v2667
        %2684 = vst [vmem:[#allocation3 + $0xd8] sm:$0xff] %v2668
        %2685 = vst [vmem:[#allocation3 + $0xe0] sm:$0xff] %v2669
        %2686 = vst [vmem:[#allocation3 + $0xe8] sm:$0xff] %v2670
        %2687 = vst [vmem:[#allocation3 + $0xf0] sm:$0xff] %v2671
        %2688 = vst [vmem:[#allocation3 + $0xf8] sm:$0xff] %v2672
        %v2689 = vld [vmem:[#allocation2] sm:$0xff]
        %v2690 = vld [vmem:[#allocation2 + $0x8] sm:$0xff]
        %v2691 = vld [vmem:[#allocation2 + $0x10] sm:$0xff]
        %v2692 = vld [vmem:[#allocation2 + $0x18] sm:$0xff]
        %v2693 = vld [vmem:[#allocation2 + $0x20] sm:$0xff]
        %v2694 = vld [vmem:[#allocation2 + $0x28] sm:$0xff]
        %v2695 = vld [vmem:[#allocation2 + $0x30] sm:$0xff]
        %v2696 = vld [vmem:[#allocation2 + $0x38] sm:$0xff]
        %v2697 = vld [vmem:[#allocation2 + $0x40] sm:$0xff]
        %2707 = vrot.lane.b32.xlu0 %v2689, 117
        %v2708 = vpop.permute.xlu0 %2707
        %2709 = vrot.lane.b32.xlu0 %v2690, 117
        %v2710 = vpop.permute.xlu0 %2709
        %2711 = vrot.lane.b32.xlu0 %v2691, 117
        %v2712 = vpop.permute.xlu0 %2711
        %2713 = vrot.lane.b32.xlu0 %v2692, 117
        %v2714 = vpop.permute.xlu0 %2713
        %2715 = vrot.lane.b32.xlu0 %v2693, 117
        %v2716 = vpop.permute.xlu0 %2715
        %2717 = vrot.lane.b32.xlu0 %v2694, 117
        %v2718 = vpop.permute.xlu0 %2717
        %2719 = vrot.lane.b32.xlu0 %v2695, 117
        %v2720 = vpop.permute.xlu0 %2719
        %2721 = vrot.lane.b32.xlu0 %v2696, 117
        %v2722 = vpop.permute.xlu0 %2721
        %2723 = vrot.lane.b32.xlu0 %v2697, 117
        %v2724 = vpop.permute.xlu0 %2723
        %v2725 = vsel %vm521, %v2708, %v2710
        %v2726 = vsel %vm521, %v2710, %v2712
        %v2727 = vsel %vm521, %v2712, %v2714
        %v2728 = vsel %vm521, %v2714, %v2716
        %v2729 = vsel %vm521, %v2716, %v2718
        %v2730 = vsel %vm521, %v2718, %v2720
        %v2731 = vsel %vm521, %v2720, %v2722
        %v2732 = vsel %vm521, %v2722, %v2724
        %2741 = vst [vmem:[#allocation3 + $0x100] sm:$0xff] %v2725
        %2742 = vst [vmem:[#allocation3 + $0x108] sm:$0xff] %v2726
        %2743 = vst [vmem:[#allocation3 + $0x110] sm:$0xff] %v2727
        %2744 = vst [vmem:[#allocation3 + $0x118] sm:$0xff] %v2728
        %2745 = vst [vmem:[#allocation3 + $0x120] sm:$0xff] %v2729
        %2746 = vst [vmem:[#allocation3 + $0x128] sm:$0xff] %v2730
        %2747 = vst [vmem:[#allocation3 + $0x130] sm:$0xff] %v2731
        %2748 = vst [vmem:[#allocation3 + $0x138] sm:$0xff] %v2732
        %v2749 = vld [vmem:[#allocation2] sm:$0xff]
        %v2750 = vld [vmem:[#allocation2 + $0x8] sm:$0xff]
        %v2751 = vld [vmem:[#allocation2 + $0x10] sm:$0xff]
        %v2752 = vld [vmem:[#allocation2 + $0x18] sm:$0xff]
        %v2753 = vld [vmem:[#allocation2 + $0x20] sm:$0xff]
        %v2754 = vld [vmem:[#allocation2 + $0x28] sm:$0xff]
        %v2755 = vld [vmem:[#allocation2 + $0x30] sm:$0xff]
        %v2756 = vld [vmem:[#allocation2 + $0x38] sm:$0xff]
        %v2757 = vld [vmem:[#allocation2 + $0x40] sm:$0xff]
        %2767 = vrot.lane.b32.xlu0 %v2749, 116
        %v2768 = vpop.permute.xlu0 %2767
        %2769 = vrot.lane.b32.xlu0 %v2750, 116
        %v2770 = vpop.permute.xlu0 %2769
        %2771 = vrot.lane.b32.xlu0 %v2751, 116
        %v2772 = vpop.permute.xlu0 %2771
        %2773 = vrot.lane.b32.xlu0 %v2752, 116
        %v2774 = vpop.permute.xlu0 %2773
        %2775 = vrot.lane.b32.xlu0 %v2753, 116
        %v2776 = vpop.permute.xlu0 %2775
        %2777 = vrot.lane.b32.xlu0 %v2754, 116
        %v2778 = vpop.permute.xlu0 %2777
        %2779 = vrot.lane.b32.xlu0 %v2755, 116
        %v2780 = vpop.permute.xlu0 %2779
        %2781 = vrot.lane.b32.xlu0 %v2756, 116
        %v2782 = vpop.permute.xlu0 %2781
        %2783 = vrot.lane.b32.xlu0 %v2757, 116
        %v2784 = vpop.permute.xlu0 %2783
        %v2785 = vsel %vm582, %v2768, %v2770
        %v2786 = vsel %vm582, %v2770, %v2772
        %v2787 = vsel %vm582, %v2772, %v2774
        %v2788 = vsel %vm582, %v2774, %v2776
        %v2789 = vsel %vm582, %v2776, %v2778
        %v2790 = vsel %vm582, %v2778, %v2780
        %v2791 = vsel %vm582, %v2780, %v2782
        %v2792 = vsel %vm582, %v2782, %v2784
        %2801 = vst [vmem:[#allocation3 + $0x140] sm:$0xff] %v2785
        %2802 = vst [vmem:[#allocation3 + $0x148] sm:$0xff] %v2786
        %2803 = vst [vmem:[#allocation3 + $0x150] sm:$0xff] %v2787
        %2804 = vst [vmem:[#allocation3 + $0x158] sm:$0xff] %v2788
        %2805 = vst [vmem:[#allocation3 + $0x160] sm:$0xff] %v2789
        %2806 = vst [vmem:[#allocation3 + $0x168] sm:$0xff] %v2790
        %2807 = vst [vmem:[#allocation3 + $0x170] sm:$0xff] %v2791
        %2808 = vst [vmem:[#allocation3 + $0x178] sm:$0xff] %v2792
        %v2809 = vld [vmem:[#allocation2] sm:$0xff]
        %v2810 = vld [vmem:[#allocation2 + $0x8] sm:$0xff]
        %v2811 = vld [vmem:[#allocation2 + $0x10] sm:$0xff]
        %v2812 = vld [vmem:[#allocation2 + $0x18] sm:$0xff]
        %v2813 = vld [vmem:[#allocation2 + $0x20] sm:$0xff]
        %v2814 = vld [vmem:[#allocation2 + $0x28] sm:$0xff]
        %v2815 = vld [vmem:[#allocation2 + $0x30] sm:$0xff]
        %v2816 = vld [vmem:[#allocation2 + $0x38] sm:$0xff]
        %v2817 = vld [vmem:[#allocation2 + $0x40] sm:$0xff]
        %2827 = vrot.lane.b32.xlu0 %v2809, 108
        %v2828 = vpop.permute.xlu0 %2827
        %2829 = vrot.lane.b32.xlu0 %v2810, 108
        %v2830 = vpop.permute.xlu0 %2829
        %2831 = vrot.lane.b32.xlu0 %v2811, 108
        %v2832 = vpop.permute.xlu0 %2831
        %2833 = vrot.lane.b32.xlu0 %v2812, 108
        %v2834 = vpop.permute.xlu0 %2833
        %2835 = vrot.lane.b32.xlu0 %v2813, 108
        %v2836 = vpop.permute.xlu0 %2835
        %2837 = vrot.lane.b32.xlu0 %v2814, 108
        %v2838 = vpop.permute.xlu0 %2837
        %2839 = vrot.lane.b32.xlu0 %v2815, 108
        %v2840 = vpop.permute.xlu0 %2839
        %2841 = vrot.lane.b32.xlu0 %v2816, 108
        %v2842 = vpop.permute.xlu0 %2841
        %2843 = vrot.lane.b32.xlu0 %v2817, 108
        %v2844 = vpop.permute.xlu0 %2843
        %v2845 = vsel %vm643, %v2828, %v2830
        %v2846 = vsel %vm643, %v2830, %v2832
        %v2847 = vsel %vm643, %v2832, %v2834
        %v2848 = vsel %vm643, %v2834, %v2836
        %v2849 = vsel %vm643, %v2836, %v2838
        %v2850 = vsel %vm643, %v2838, %v2840
        %v2851 = vsel %vm643, %v2840, %v2842
        %v2852 = vsel %vm643, %v2842, %v2844
        %2861 = vst [vmem:[#allocation3 + $0x180] sm:$0xff] %v2845
        %2862 = vst [vmem:[#allocation3 + $0x188] sm:$0xff] %v2846
        %2863 = vst [vmem:[#allocation3 + $0x190] sm:$0xff] %v2847
        %2864 = vst [vmem:[#allocation3 + $0x198] sm:$0xff] %v2848
        %2865 = vst [vmem:[#allocation3 + $0x1a0] sm:$0xff] %v2849
        %2866 = vst [vmem:[#allocation3 + $0x1a8] sm:$0xff] %v2850
        %2867 = vst [vmem:[#allocation3 + $0x1b0] sm:$0xff] %v2851
        %2868 = vst [vmem:[#allocation3 + $0x1b8] sm:$0xff] %v2852
        %v2869 = vld [vmem:[#allocation2] sm:$0xff]
        %v2870 = vld [vmem:[#allocation2 + $0x8] sm:$0xff]
        %v2871 = vld [vmem:[#allocation2 + $0x10] sm:$0xff]
        %v2872 = vld [vmem:[#allocation2 + $0x18] sm:$0xff]
        %v2873 = vld [vmem:[#allocation2 + $0x20] sm:$0xff]
        %v2874 = vld [vmem:[#allocation2 + $0x28] sm:$0xff]
        %v2875 = vld [vmem:[#allocation2 + $0x30] sm:$0xff]
        %v2876 = vld [vmem:[#allocation2 + $0x38] sm:$0xff]
        %v2877 = vld [vmem:[#allocation2 + $0x40] sm:$0xff]
        %2887 = vrot.lane.b32.xlu0 %v2869, 107
        %v2888 = vpop.permute.xlu0 %2887
        %2889 = vrot.lane.b32.xlu0 %v2870, 107
        %v2890 = vpop.permute.xlu0 %2889
        %2891 = vrot.lane.b32.xlu0 %v2871, 107
        %v2892 = vpop.permute.xlu0 %2891
        %2893 = vrot.lane.b32.xlu0 %v2872, 107
        %v2894 = vpop.permute.xlu0 %2893
        %2895 = vrot.lane.b32.xlu0 %v2873, 107
        %v2896 = vpop.permute.xlu0 %2895
        %2897 = vrot.lane.b32.xlu0 %v2874, 107
        %v2898 = vpop.permute.xlu0 %2897
        %2899 = vrot.lane.b32.xlu0 %v2875, 107
        %v2900 = vpop.permute.xlu0 %2899
        %2901 = vrot.lane.b32.xlu0 %v2876, 107
        %v2902 = vpop.permute.xlu0 %2901
        %2903 = vrot.lane.b32.xlu0 %v2877, 107
        %v2904 = vpop.permute.xlu0 %2903
        %v2905 = vsel %vm704, %v2888, %v2890
        %v2906 = vsel %vm704, %v2890, %v2892
        %v2907 = vsel %vm704, %v2892, %v2894
        %v2908 = vsel %vm704, %v2894, %v2896
        %v2909 = vsel %vm704, %v2896, %v2898
        %v2910 = vsel %vm704, %v2898, %v2900
        %v2911 = vsel %vm704, %v2900, %v2902
        %v2912 = vsel %vm704, %v2902, %v2904
        %2921 = vst [vmem:[#allocation3 + $0x1c0] sm:$0xff] %v2905
        %2922 = vst [vmem:[#allocation3 + $0x1c8] sm:$0xff] %v2906
        %2923 = vst [vmem:[#allocation3 + $0x1d0] sm:$0xff] %v2907
        %2924 = vst [vmem:[#allocation3 + $0x1d8] sm:$0xff] %v2908
        %2925 = vst [vmem:[#allocation3 + $0x1e0] sm:$0xff] %v2909
        %2926 = vst [vmem:[#allocation3 + $0x1e8] sm:$0xff] %v2910
        %2927 = vst [vmem:[#allocation3 + $0x1f0] sm:$0xff] %v2911
        %2928 = vst [vmem:[#allocation3 + $0x1f8] sm:$0xff] %v2912
        %v2929 = vld [vmem:[#allocation2] sm:$0xff]
        %v2930 = vld [vmem:[#allocation2 + $0x8] sm:$0xff]
        %v2931 = vld [vmem:[#allocation2 + $0x10] sm:$0xff]
        %v2932 = vld [vmem:[#allocation2 + $0x18] sm:$0xff]
        %v2933 = vld [vmem:[#allocation2 + $0x20] sm:$0xff]
        %v2934 = vld [vmem:[#allocation2 + $0x28] sm:$0xff]
        %v2935 = vld [vmem:[#allocation2 + $0x30] sm:$0xff]
        %v2936 = vld [vmem:[#allocation2 + $0x38] sm:$0xff]
        %v2937 = vld [vmem:[#allocation2 + $0x40] sm:$0xff]
        %2947 = vrot.lane.b32.xlu0 %v2929, 106
        %v2948 = vpop.permute.xlu0 %2947
        %2949 = vrot.lane.b32.xlu0 %v2930, 106
        %v2950 = vpop.permute.xlu0 %2949
        %2951 = vrot.lane.b32.xlu0 %v2931, 106
        %v2952 = vpop.permute.xlu0 %2951
        %2953 = vrot.lane.b32.xlu0 %v2932, 106
        %v2954 = vpop.permute.xlu0 %2953
        %2955 = vrot.lane.b32.xlu0 %v2933, 106
        %v2956 = vpop.permute.xlu0 %2955
        %2957 = vrot.lane.b32.xlu0 %v2934, 106
        %v2958 = vpop.permute.xlu0 %2957
        %2959 = vrot.lane.b32.xlu0 %v2935, 106
        %v2960 = vpop.permute.xlu0 %2959
        %2961 = vrot.lane.b32.xlu0 %v2936, 106
        %v2962 = vpop.permute.xlu0 %2961
        %2963 = vrot.lane.b32.xlu0 %v2937, 106
        %v2964 = vpop.permute.xlu0 %2963
        %v2965 = vsel %vm765, %v2948, %v2950
        %v2966 = vsel %vm765, %v2950, %v2952
        %v2967 = vsel %vm765, %v2952, %v2954
        %v2968 = vsel %vm765, %v2954, %v2956
        %v2969 = vsel %vm765, %v2956, %v2958
        %v2970 = vsel %vm765, %v2958, %v2960
        %v2971 = vsel %vm765, %v2960, %v2962
        %v2972 = vsel %vm765, %v2962, %v2964
        %2981 = vst [vmem:[#allocation3 + $0x200] sm:$0xff] %v2965
        %2982 = vst [vmem:[#allocation3 + $0x208] sm:$0xff] %v2966
        %2983 = vst [vmem:[#allocation3 + $0x210] sm:$0xff] %v2967
        %2984 = vst [vmem:[#allocation3 + $0x218] sm:$0xff] %v2968
        %2985 = vst [vmem:[#allocation3 + $0x220] sm:$0xff] %v2969
        %2986 = vst [vmem:[#allocation3 + $0x228] sm:$0xff] %v2970
        %2987 = vst [vmem:[#allocation3 + $0x230] sm:$0xff] %v2971
        %2988 = vst [vmem:[#allocation3 + $0x238] sm:$0xff] %v2972
        %v2989 = vld [vmem:[#allocation2] sm:$0xff]
        %v2990 = vld [vmem:[#allocation2 + $0x8] sm:$0xff]
        %v2991 = vld [vmem:[#allocation2 + $0x10] sm:$0xff]
        %v2992 = vld [vmem:[#allocation2 + $0x18] sm:$0xff]
        %v2993 = vld [vmem:[#allocation2 + $0x20] sm:$0xff]
        %v2994 = vld [vmem:[#allocation2 + $0x28] sm:$0xff]
        %v2995 = vld [vmem:[#allocation2 + $0x30] sm:$0xff]
        %v2996 = vld [vmem:[#allocation2 + $0x38] sm:$0xff]
        %v2997 = vld [vmem:[#allocation2 + $0x40] sm:$0xff]
        %3007 = vrot.lane.b32.xlu0 %v2989, 28
        %v3008 = vpop.permute.xlu0 %3007
        %3009 = vrot.lane.b32.xlu0 %v2990, 28
        %v3010 = vpop.permute.xlu0 %3009
        %3011 = vrot.lane.b32.xlu0 %v2991, 28
        %v3012 = vpop.permute.xlu0 %3011
        %3013 = vrot.lane.b32.xlu0 %v2992, 28
        %v3014 = vpop.permute.xlu0 %3013
        %3015 = vrot.lane.b32.xlu0 %v2993, 28
        %v3016 = vpop.permute.xlu0 %3015
        %3017 = vrot.lane.b32.xlu0 %v2994, 28
        %v3018 = vpop.permute.xlu0 %3017
        %3019 = vrot.lane.b32.xlu0 %v2995, 28
        %v3020 = vpop.permute.xlu0 %3019
        %3021 = vrot.lane.b32.xlu0 %v2996, 28
        %v3022 = vpop.permute.xlu0 %3021
        %3023 = vrot.lane.b32.xlu0 %v2997, 28
        %v3024 = vpop.permute.xlu0 %3023
        %v3025 = vsel %vm826, %v3008, %v3010
        %v3026 = vsel %vm826, %v3010, %v3012
        %v3027 = vsel %vm826, %v3012, %v3014
        %v3028 = vsel %vm826, %v3014, %v3016
        %v3029 = vsel %vm826, %v3016, %v3018
        %v3030 = vsel %vm826, %v3018, %v3020
        %v3031 = vsel %vm826, %v3020, %v3022
        %v3032 = vsel %vm826, %v3022, %v3024
        %3041 = vst [vmem:[#allocation3 + $0x240] sm:$0xff] %v3025
        %3042 = vst [vmem:[#allocation3 + $0x248] sm:$0xff] %v3026
        %3043 = vst [vmem:[#allocation3 + $0x250] sm:$0xff] %v3027
        %3044 = vst [vmem:[#allocation3 + $0x258] sm:$0xff] %v3028
        %3045 = vst [vmem:[#allocation3 + $0x260] sm:$0xff] %v3029
        %3046 = vst [vmem:[#allocation3 + $0x268] sm:$0xff] %v3030
        %3047 = vst [vmem:[#allocation3 + $0x270] sm:$0xff] %v3031
        %3048 = vst [vmem:[#allocation3 + $0x278] sm:$0xff] %v3032
        %v3049 = vld [vmem:[#allocation2] sm:$0xff]
        %v3050 = vld [vmem:[#allocation2 + $0x8] sm:$0xff]
        %v3051 = vld [vmem:[#allocation2 + $0x10] sm:$0xff]
        %v3052 = vld [vmem:[#allocation2 + $0x18] sm:$0xff]
        %v3053 = vld [vmem:[#allocation2 + $0x20] sm:$0xff]
        %v3054 = vld [vmem:[#allocation2 + $0x28] sm:$0xff]
        %v3055 = vld [vmem:[#allocation2 + $0x30] sm:$0xff]
        %v3056 = vld [vmem:[#allocation2 + $0x38] sm:$0xff]
        %v3057 = vld [vmem:[#allocation2 + $0x40] sm:$0xff]
        %3067 = vrot.lane.b32.xlu0 %v3049, 27
        %v3068 = vpop.permute.xlu0 %3067
        %3069 = vrot.lane.b32.xlu0 %v3050, 27
        %v3070 = vpop.permute.xlu0 %3069
        %3071 = vrot.lane.b32.xlu0 %v3051, 27
        %v3072 = vpop.permute.xlu0 %3071
        %3073 = vrot.lane.b32.xlu0 %v3052, 27
        %v3074 = vpop.permute.xlu0 %3073
        %3075 = vrot.lane.b32.xlu0 %v3053, 27
        %v3076 = vpop.permute.xlu0 %3075
        %3077 = vrot.lane.b32.xlu0 %v3054, 27
        %v3078 = vpop.permute.xlu0 %3077
        %3079 = vrot.lane.b32.xlu0 %v3055, 27
        %v3080 = vpop.permute.xlu0 %3079
        %3081 = vrot.lane.b32.xlu0 %v3056, 27
        %v3082 = vpop.permute.xlu0 %3081
        %3083 = vrot.lane.b32.xlu0 %v3057, 27
        %v3084 = vpop.permute.xlu0 %3083
        %v3085 = vsel %vm887, %v3068, %v3070
        %v3086 = vsel %vm887, %v3070, %v3072
        %v3087 = vsel %vm887, %v3072, %v3074
        %v3088 = vsel %vm887, %v3074, %v3076
        %v3089 = vsel %vm887, %v3076, %v3078
        %v3090 = vsel %vm887, %v3078, %v3080
        %v3091 = vsel %vm887, %v3080, %v3082
        %v3092 = vsel %vm887, %v3082, %v3084
        %3101 = vst [vmem:[#allocation3 + $0x280] sm:$0xff] %v3085
        %3102 = vst [vmem:[#allocation3 + $0x288] sm:$0xff] %v3086
        %3103 = vst [vmem:[#allocation3 + $0x290] sm:$0xff] %v3087
        %3104 = vst [vmem:[#allocation3 + $0x298] sm:$0xff] %v3088
        %3105 = vst [vmem:[#allocation3 + $0x2a0] sm:$0xff] %v3089
        %3106 = vst [vmem:[#allocation3 + $0x2a8] sm:$0xff] %v3090
        %3107 = vst [vmem:[#allocation3 + $0x2b0] sm:$0xff] %v3091
        %3108 = vst [vmem:[#allocation3 + $0x2b8] sm:$0xff] %v3092
        %v3109 = vld [vmem:[#allocation2] sm:$0xff]
        %v3110 = vld [vmem:[#allocation2 + $0x8] sm:$0xff]
        %v3111 = vld [vmem:[#allocation2 + $0x10] sm:$0xff]
        %v3112 = vld [vmem:[#allocation2 + $0x18] sm:$0xff]
        %v3113 = vld [vmem:[#allocation2 + $0x20] sm:$0xff]
        %v3114 = vld [vmem:[#allocation2 + $0x28] sm:$0xff]
        %v3115 = vld [vmem:[#allocation2 + $0x30] sm:$0xff]
        %v3116 = vld [vmem:[#allocation2 + $0x38] sm:$0xff]
        %v3117 = vld [vmem:[#allocation2 + $0x40] sm:$0xff]
        %3127 = vrot.lane.b32.xlu0 %v3109, 26
        %v3128 = vpop.permute.xlu0 %3127
        %3129 = vrot.lane.b32.xlu0 %v3110, 26
        %v3130 = vpop.permute.xlu0 %3129
        %3131 = vrot.lane.b32.xlu0 %v3111, 26
        %v3132 = vpop.permute.xlu0 %3131
        %3133 = vrot.lane.b32.xlu0 %v3112, 26
        %v3134 = vpop.permute.xlu0 %3133
        %3135 = vrot.lane.b32.xlu0 %v3113, 26
        %v3136 = vpop.permute.xlu0 %3135
        %3137 = vrot.lane.b32.xlu0 %v3114, 26
        %v3138 = vpop.permute.xlu0 %3137
        %3139 = vrot.lane.b32.xlu0 %v3115, 26
        %v3140 = vpop.permute.xlu0 %3139
        %3141 = vrot.lane.b32.xlu0 %v3116, 26
        %v3142 = vpop.permute.xlu0 %3141
        %3143 = vrot.lane.b32.xlu0 %v3117, 26
        %v3144 = vpop.permute.xlu0 %3143
        %v3145 = vsel %vm948, %v3128, %v3130
        %v3146 = vsel %vm948, %v3130, %v3132
        %v3147 = vsel %vm948, %v3132, %v3134
        %v3148 = vsel %vm948, %v3134, %v3136
        %v3149 = vsel %vm948, %v3136, %v3138
        %v3150 = vsel %vm948, %v3138, %v3140
        %v3151 = vsel %vm948, %v3140, %v3142
        %v3152 = vsel %vm948, %v3142, %v3144
        %3161 = vst [vmem:[#allocation3 + $0x2c0] sm:$0xff] %v3145
        %3162 = vst [vmem:[#allocation3 + $0x2c8] sm:$0xff] %v3146
        %3163 = vst [vmem:[#allocation3 + $0x2d0] sm:$0xff] %v3147
        %3164 = vst [vmem:[#allocation3 + $0x2d8] sm:$0xff] %v3148
        %3165 = vst [vmem:[#allocation3 + $0x2e0] sm:$0xff] %v3149
        %3166 = vst [vmem:[#allocation3 + $0x2e8] sm:$0xff] %v3150
        %3167 = vst [vmem:[#allocation3 + $0x2f0] sm:$0xff] %v3151
        %3168 = vst [vmem:[#allocation3 + $0x2f8] sm:$0xff] %v3152
        %v3169 = vld [vmem:[#allocation2] sm:$0xff]
        %v3170 = vld [vmem:[#allocation2 + $0x8] sm:$0xff]
        %v3171 = vld [vmem:[#allocation2 + $0x10] sm:$0xff]
        %v3172 = vld [vmem:[#allocation2 + $0x18] sm:$0xff]
        %v3173 = vld [vmem:[#allocation2 + $0x20] sm:$0xff]
        %v3174 = vld [vmem:[#allocation2 + $0x28] sm:$0xff]
        %v3175 = vld [vmem:[#allocation2 + $0x30] sm:$0xff]
        %v3176 = vld [vmem:[#allocation2 + $0x38] sm:$0xff]
        %v3177 = vld [vmem:[#allocation2 + $0x40] sm:$0xff]
        %3187 = vrot.lane.b32.xlu0 %v3169, 18
        %v3188 = vpop.permute.xlu0 %3187
        %3189 = vrot.lane.b32.xlu0 %v3170, 18
        %v3190 = vpop.permute.xlu0 %3189
        %3191 = vrot.lane.b32.xlu0 %v3171, 18
        %v3192 = vpop.permute.xlu0 %3191
        %3193 = vrot.lane.b32.xlu0 %v3172, 18
        %v3194 = vpop.permute.xlu0 %3193
        %3195 = vrot.lane.b32.xlu0 %v3173, 18
        %v3196 = vpop.permute.xlu0 %3195
        %3197 = vrot.lane.b32.xlu0 %v3174, 18
        %v3198 = vpop.permute.xlu0 %3197
        %3199 = vrot.lane.b32.xlu0 %v3175, 18
        %v3200 = vpop.permute.xlu0 %3199
        %3201 = vrot.lane.b32.xlu0 %v3176, 18
        %v3202 = vpop.permute.xlu0 %3201
        %3203 = vrot.lane.b32.xlu0 %v3177, 18
        %v3204 = vpop.permute.xlu0 %3203
        %v3205 = vsel %vm1009, %v3188, %v3190
        %v3206 = vsel %vm1009, %v3190, %v3192
        %v3207 = vsel %vm1009, %v3192, %v3194
        %v3208 = vsel %vm1009, %v3194, %v3196
        %v3209 = vsel %vm1009, %v3196, %v3198
        %v3210 = vsel %vm1009, %v3198, %v3200
        %v3211 = vsel %vm1009, %v3200, %v3202
        %v3212 = vsel %vm1009, %v3202, %v3204
        %3221 = vst [vmem:[#allocation3 + $0x300] sm:$0xff] %v3205
        %3222 = vst [vmem:[#allocation3 + $0x308] sm:$0xff] %v3206
        %3223 = vst [vmem:[#allocation3 + $0x310] sm:$0xff] %v3207
        %3224 = vst [vmem:[#allocation3 + $0x318] sm:$0xff] %v3208
        %3225 = vst [vmem:[#allocation3 + $0x320] sm:$0xff] %v3209
        %3226 = vst [vmem:[#allocation3 + $0x328] sm:$0xff] %v3210
        %3227 = vst [vmem:[#allocation3 + $0x330] sm:$0xff] %v3211
        %3228 = vst [vmem:[#allocation3 + $0x338] sm:$0xff] %v3212
        %v3229 = vld [vmem:[#allocation2] sm:$0xff]
        %v3230 = vld [vmem:[#allocation2 + $0x8] sm:$0xff]
        %v3231 = vld [vmem:[#allocation2 + $0x10] sm:$0xff]
        %v3232 = vld [vmem:[#allocation2 + $0x18] sm:$0xff]
        %v3233 = vld [vmem:[#allocation2 + $0x20] sm:$0xff]
        %v3234 = vld [vmem:[#allocation2 + $0x28] sm:$0xff]
        %v3235 = vld [vmem:[#allocation2 + $0x30] sm:$0xff]
        %v3236 = vld [vmem:[#allocation2 + $0x38] sm:$0xff]
        %v3237 = vld [vmem:[#allocation2 + $0x40] sm:$0xff]
        %3247 = vrot.lane.b32.xlu0 %v3229, 17
        %v3248 = vpop.permute.xlu0 %3247
        %3249 = vrot.lane.b32.xlu0 %v3230, 17
        %v3250 = vpop.permute.xlu0 %3249
        %3251 = vrot.lane.b32.xlu0 %v3231, 17
        %v3252 = vpop.permute.xlu0 %3251
        %3253 = vrot.lane.b32.xlu0 %v3232, 17
        %v3254 = vpop.permute.xlu0 %3253
        %3255 = vrot.lane.b32.xlu0 %v3233, 17
        %v3256 = vpop.permute.xlu0 %3255
        %3257 = vrot.lane.b32.xlu0 %v3234, 17
        %v3258 = vpop.permute.xlu0 %3257
        %3259 = vrot.lane.b32.xlu0 %v3235, 17
        %v3260 = vpop.permute.xlu0 %3259
        %3261 = vrot.lane.b32.xlu0 %v3236, 17
        %v3262 = vpop.permute.xlu0 %3261
        %3263 = vrot.lane.b32.xlu0 %v3237, 17
        %v3264 = vpop.permute.xlu0 %3263
        %v3265 = vsel %vm1070, %v3248, %v3250
        %v3266 = vsel %vm1070, %v3250, %v3252
        %v3267 = vsel %vm1070, %v3252, %v3254
        %v3268 = vsel %vm1070, %v3254, %v3256
        %v3269 = vsel %vm1070, %v3256, %v3258
        %v3270 = vsel %vm1070, %v3258, %v3260
        %v3271 = vsel %vm1070, %v3260, %v3262
        %v3272 = vsel %vm1070, %v3262, %v3264
        %3281 = vst [vmem:[#allocation3 + $0x340] sm:$0xff] %v3265
        %3282 = vst [vmem:[#allocation3 + $0x348] sm:$0xff] %v3266
        %3283 = vst [vmem:[#allocation3 + $0x350] sm:$0xff] %v3267
        %3284 = vst [vmem:[#allocation3 + $0x358] sm:$0xff] %v3268
        %3285 = vst [vmem:[#allocation3 + $0x360] sm:$0xff] %v3269
        %3286 = vst [vmem:[#allocation3 + $0x368] sm:$0xff] %v3270
        %3287 = vst [vmem:[#allocation3 + $0x370] sm:$0xff] %v3271
        %3288 = vst [vmem:[#allocation3 + $0x378] sm:$0xff] %v3272
        %v3289 = vld [vmem:[#allocation2] sm:$0xff]
        %v3290 = vld [vmem:[#allocation2 + $0x8] sm:$0xff]
        %v3291 = vld [vmem:[#allocation2 + $0x10] sm:$0xff]
        %v3292 = vld [vmem:[#allocation2 + $0x18] sm:$0xff]
        %v3293 = vld [vmem:[#allocation2 + $0x20] sm:$0xff]
        %v3294 = vld [vmem:[#allocation2 + $0x28] sm:$0xff]
        %v3295 = vld [vmem:[#allocation2 + $0x30] sm:$0xff]
        %v3296 = vld [vmem:[#allocation2 + $0x38] sm:$0xff]
        %v3297 = vld [vmem:[#allocation2 + $0x40] sm:$0xff]
        %3307 = vrot.lane.b32.xlu0 %v3289, 16
        %v3308 = vpop.permute.xlu0 %3307
        %3309 = vrot.lane.b32.xlu0 %v3290, 16
        %v3310 = vpop.permute.xlu0 %3309
        %3311 = vrot.lane.b32.xlu0 %v3291, 16
        %v3312 = vpop.permute.xlu0 %3311
        %3313 = vrot.lane.b32.xlu0 %v3292, 16
        %v3314 = vpop.permute.xlu0 %3313
        %3315 = vrot.lane.b32.xlu0 %v3293, 16
        %v3316 = vpop.permute.xlu0 %3315
        %3317 = vrot.lane.b32.xlu0 %v3294, 16
        %v3318 = vpop.permute.xlu0 %3317
        %3319 = vrot.lane.b32.xlu0 %v3295, 16
        %v3320 = vpop.permute.xlu0 %3319
        %3321 = vrot.lane.b32.xlu0 %v3296, 16
        %v3322 = vpop.permute.xlu0 %3321
        %3323 = vrot.lane.b32.xlu0 %v3297, 16
        %v3324 = vpop.permute.xlu0 %3323
        %v3325 = vsel %vm1131, %v3308, %v3310
        %v3326 = vsel %vm1131, %v3310, %v3312
        %v3327 = vsel %vm1131, %v3312, %v3314
        %v3328 = vsel %vm1131, %v3314, %v3316
        %v3329 = vsel %vm1131, %v3316, %v3318
        %v3330 = vsel %vm1131, %v3318, %v3320
        %v3331 = vsel %vm1131, %v3320, %v3322
        %v3332 = vsel %vm1131, %v3322, %v3324
        %3341 = vst [vmem:[#allocation3 + $0x380] sm:$0xff] %v3325
        %3342 = vst [vmem:[#allocation3 + $0x388] sm:$0xff] %v3326
        %3343 = vst [vmem:[#allocation3 + $0x390] sm:$0xff] %v3327
        %3344 = vst [vmem:[#allocation3 + $0x398] sm:$0xff] %v3328
        %3345 = vst [vmem:[#allocation3 + $0x3a0] sm:$0xff] %v3329
        %3346 = vst [vmem:[#allocation3 + $0x3a8] sm:$0xff] %v3330
        %3347 = vst [vmem:[#allocation3 + $0x3b0] sm:$0xff] %v3331
        %3348 = vst [vmem:[#allocation3 + $0x3b8] sm:$0xff] %v3332
        %v3349 = vld [vmem:[#allocation2] sm:$0xff]
        %v3350 = vld [vmem:[#allocation2 + $0x8] sm:$0xff]
        %v3351 = vld [vmem:[#allocation2 + $0x10] sm:$0xff]
        %v3352 = vld [vmem:[#allocation2 + $0x18] sm:$0xff]
        %v3353 = vld [vmem:[#allocation2 + $0x20] sm:$0xff]
        %v3354 = vld [vmem:[#allocation2 + $0x28] sm:$0xff]
        %v3355 = vld [vmem:[#allocation2 + $0x30] sm:$0xff]
        %v3356 = vld [vmem:[#allocation2 + $0x38] sm:$0xff]
        %v3357 = vld [vmem:[#allocation2 + $0x40] sm:$0xff]
        %3367 = vrot.lane.b32.xlu0 %v3349, 8
        %v3368 = vpop.permute.xlu0 %3367
        %3369 = vrot.lane.b32.xlu0 %v3350, 8
        %v3370 = vpop.permute.xlu0 %3369
        %3371 = vrot.lane.b32.xlu0 %v3351, 8
        %v3372 = vpop.permute.xlu0 %3371
        %3373 = vrot.lane.b32.xlu0 %v3352, 8
        %v3374 = vpop.permute.xlu0 %3373
        %3375 = vrot.lane.b32.xlu0 %v3353, 8
        %v3376 = vpop.permute.xlu0 %3375
        %3377 = vrot.lane.b32.xlu0 %v3354, 8
        %v3378 = vpop.permute.xlu0 %3377
        %3379 = vrot.lane.b32.xlu0 %v3355, 8
        %v3380 = vpop.permute.xlu0 %3379
        %3381 = vrot.lane.b32.xlu0 %v3356, 8
        %v3382 = vpop.permute.xlu0 %3381
        %3383 = vrot.lane.b32.xlu0 %v3357, 8
        %v3384 = vpop.permute.xlu0 %3383
        %v3385 = vsel %vm1192, %v3368, %v3370
        %v3386 = vsel %vm1192, %v3370, %v3372
        %v3387 = vsel %vm1192, %v3372, %v3374
        %v3388 = vsel %vm1192, %v3374, %v3376
        %v3389 = vsel %vm1192, %v3376, %v3378
        %v3390 = vsel %vm1192, %v3378, %v3380
        %v3391 = vsel %vm1192, %v3380, %v3382
        %v3392 = vsel %vm1192, %v3382, %v3384
        %3401 = vst [vmem:[#allocation3 + $0x3c0] sm:$0xff] %v3385
        %3402 = vst [vmem:[#allocation3 + $0x3c8] sm:$0xff] %v3386
        %3403 = vst [vmem:[#allocation3 + $0x3d0] sm:$0xff] %v3387
        %3404 = vst [vmem:[#allocation3 + $0x3d8] sm:$0xff] %v3388
        %3405 = vst [vmem:[#allocation3 + $0x3e0] sm:$0xff] %v3389
        %3406 = vst [vmem:[#allocation3 + $0x3e8] sm:$0xff] %v3390
        %3407 = vst [vmem:[#allocation3 + $0x3f0] sm:$0xff] %v3391
        %3408 = vst [vmem:[#allocation3 + $0x3f8] sm:$0xff] %v3392
        %v3409 = vld [vmem:[#allocation2] sm:$0xff]
        %v3410 = vld [vmem:[#allocation2 + $0x8] sm:$0xff]
        %v3411 = vld [vmem:[#allocation2 + $0x10] sm:$0xff]
        %v3412 = vld [vmem:[#allocation2 + $0x18] sm:$0xff]
        %v3413 = vld [vmem:[#allocation2 + $0x20] sm:$0xff]
        %v3414 = vld [vmem:[#allocation2 + $0x28] sm:$0xff]
        %v3415 = vld [vmem:[#allocation2 + $0x30] sm:$0xff]
        %v3416 = vld [vmem:[#allocation2 + $0x38] sm:$0xff]
        %v3417 = vld [vmem:[#allocation2 + $0x40] sm:$0xff]
        %3427 = vrot.lane.b32.xlu0 %v3409, 7
        %v3428 = vpop.permute.xlu0 %3427
        %3429 = vrot.lane.b32.xlu0 %v3410, 7
        %v3430 = vpop.permute.xlu0 %3429
        %3431 = vrot.lane.b32.xlu0 %v3411, 7
        %v3432 = vpop.permute.xlu0 %3431
        %3433 = vrot.lane.b32.xlu0 %v3412, 7
        %v3434 = vpop.permute.xlu0 %3433
        %3435 = vrot.lane.b32.xlu0 %v3413, 7
        %v3436 = vpop.permute.xlu0 %3435
        %3437 = vrot.lane.b32.xlu0 %v3414, 7
        %v3438 = vpop.permute.xlu0 %3437
        %3439 = vrot.lane.b32.xlu0 %v3415, 7
        %v3440 = vpop.permute.xlu0 %3439
        %3441 = vrot.lane.b32.xlu0 %v3416, 7
        %v3442 = vpop.permute.xlu0 %3441
        %3443 = vrot.lane.b32.xlu0 %v3417, 7
        %v3444 = vpop.permute.xlu0 %3443
        %v3445 = vsel %vm1253, %v3428, %v3430
        %v3446 = vsel %vm1253, %v3430, %v3432
        %v3447 = vsel %vm1253, %v3432, %v3434
        %v3448 = vsel %vm1253, %v3434, %v3436
        %v3449 = vsel %vm1253, %v3436, %v3438
        %v3450 = vsel %vm1253, %v3438, %v3440
        %v3451 = vsel %vm1253, %v3440, %v3442
        %v3452 = vsel %vm1253, %v3442, %v3444
        %3461 = vst [vmem:[#allocation3 + $0x400] sm:$0xff] %v3445
        %3462 = vst [vmem:[#allocation3 + $0x408] sm:$0xff] %v3446
        %3463 = vst [vmem:[#allocation3 + $0x410] sm:$0xff] %v3447
        %3464 = vst [vmem:[#allocation3 + $0x418] sm:$0xff] %v3448
        %3465 = vst [vmem:[#allocation3 + $0x420] sm:$0xff] %v3449
        %3466 = vst [vmem:[#allocation3 + $0x428] sm:$0xff] %v3450
        %3467 = vst [vmem:[#allocation3 + $0x430] sm:$0xff] %v3451
        %3468 = vst [vmem:[#allocation3 + $0x438] sm:$0xff] %v3452
        %v3469 = vld [vmem:[#allocation2] sm:$0xff]
        %v3470 = vld [vmem:[#allocation2 + $0x8] sm:$0xff]
        %v3471 = vld [vmem:[#allocation2 + $0x10] sm:$0xff]
        %v3472 = vld [vmem:[#allocation2 + $0x18] sm:$0xff]
        %v3473 = vld [vmem:[#allocation2 + $0x20] sm:$0xff]
        %v3474 = vld [vmem:[#allocation2 + $0x28] sm:$0xff]
        %v3475 = vld [vmem:[#allocation2 + $0x30] sm:$0xff]
        %v3476 = vld [vmem:[#allocation2 + $0x38] sm:$0xff]
        %v3477 = vld [vmem:[#allocation2 + $0x40] sm:$0xff]
        %3487 = vrot.lane.b32.xlu0 %v3469, 6
        %v3488 = vpop.permute.xlu0 %3487
        %3489 = vrot.lane.b32.xlu0 %v3470, 6
        %v3490 = vpop.permute.xlu0 %3489
        %3491 = vrot.lane.b32.xlu0 %v3471, 6
        %v3492 = vpop.permute.xlu0 %3491
        %3493 = vrot.lane.b32.xlu0 %v3472, 6
        %v3494 = vpop.permute.xlu0 %3493
        %3495 = vrot.lane.b32.xlu0 %v3473, 6
        %v3496 = vpop.permute.xlu0 %3495
        %3497 = vrot.lane.b32.xlu0 %v3474, 6
        %v3498 = vpop.permute.xlu0 %3497
        %3499 = vrot.lane.b32.xlu0 %v3475, 6
        %v3500 = vpop.permute.xlu0 %3499
        %3501 = vrot.lane.b32.xlu0 %v3476, 6
        %v3502 = vpop.permute.xlu0 %3501
        %3503 = vrot.lane.b32.xlu0 %v3477, 6
        %v3504 = vpop.permute.xlu0 %3503
        %v3505 = vsel %vm1314, %v3488, %v3490
        %v3506 = vsel %vm1314, %v3490, %v3492
        %v3507 = vsel %vm1314, %v3492, %v3494
        %v3508 = vsel %vm1314, %v3494, %v3496
        %v3509 = vsel %vm1314, %v3496, %v3498
        %v3510 = vsel %vm1314, %v3498, %v3500
        %v3511 = vsel %vm1314, %v3500, %v3502
        %v3512 = vsel %vm1314, %v3502, %v3504
        %3521 = vst [vmem:[#allocation3 + $0x440] sm:$0xff] %v3505
        %3522 = vst [vmem:[#allocation3 + $0x448] sm:$0xff] %v3506
        %3523 = vst [vmem:[#allocation3 + $0x450] sm:$0xff] %v3507
        %3524 = vst [vmem:[#allocation3 + $0x458] sm:$0xff] %v3508
        %3525 = vst [vmem:[#allocation3 + $0x460] sm:$0xff] %v3509
        %3526 = vst [vmem:[#allocation3 + $0x468] sm:$0xff] %v3510
        %3527 = vst [vmem:[#allocation3 + $0x470] sm:$0xff] %v3511
        %3528 = vst [vmem:[#allocation3 + $0x478] sm:$0xff] %v3512
        %v3529 = vld [vmem:[#allocation2 + $0x8] sm:$0xff]
        %v3530 = vld [vmem:[#allocation2 + $0x10] sm:$0xff]
        %v3531 = vld [vmem:[#allocation2 + $0x18] sm:$0xff]
        %v3532 = vld [vmem:[#allocation2 + $0x20] sm:$0xff]
        %v3533 = vld [vmem:[#allocation2 + $0x28] sm:$0xff]
        %v3534 = vld [vmem:[#allocation2 + $0x30] sm:$0xff]
        %v3535 = vld [vmem:[#allocation2 + $0x38] sm:$0xff]
        %v3536 = vld [vmem:[#allocation2 + $0x40] sm:$0xff]
        %v3537 = vld [vmem:[#allocation2 + $0x48] sm:$0xff]
        %3547 = vrot.lane.b32.xlu0 %v3529, 56
        %v3548 = vpop.permute.xlu0 %3547
        %3549 = vrot.lane.b32.xlu0 %v3530, 56
        %v3550 = vpop.permute.xlu0 %3549
        %3551 = vrot.lane.b32.xlu0 %v3531, 56
        %v3552 = vpop.permute.xlu0 %3551
        %3553 = vrot.lane.b32.xlu0 %v3532, 56
        %v3554 = vpop.permute.xlu0 %3553
        %3555 = vrot.lane.b32.xlu0 %v3533, 56
        %v3556 = vpop.permute.xlu0 %3555
        %3557 = vrot.lane.b32.xlu0 %v3534, 56
        %v3558 = vpop.permute.xlu0 %3557
        %3559 = vrot.lane.b32.xlu0 %v3535, 56
        %v3560 = vpop.permute.xlu0 %3559
        %3561 = vrot.lane.b32.xlu0 %v3536, 56
        %v3562 = vpop.permute.xlu0 %3561
        %3563 = vrot.lane.b32.xlu0 %v3537, 56
        %v3564 = vpop.permute.xlu0 %3563
        %v3565 = vsel %vm1375, %v3548, %v3550
        %v3566 = vsel %vm1375, %v3550, %v3552
        %v3567 = vsel %vm1375, %v3552, %v3554
        %v3568 = vsel %vm1375, %v3554, %v3556
        %v3569 = vsel %vm1375, %v3556, %v3558
        %v3570 = vsel %vm1375, %v3558, %v3560
        %v3571 = vsel %vm1375, %v3560, %v3562
        %v3572 = vsel %vm1375, %v3562, %v3564
        %3581 = vst [vmem:[#allocation3 + $0x480] sm:$0xff] %v3565
        %3582 = vst [vmem:[#allocation3 + $0x488] sm:$0xff] %v3566
        %3583 = vst [vmem:[#allocation3 + $0x490] sm:$0xff] %v3567
        %3584 = vst [vmem:[#allocation3 + $0x498] sm:$0xff] %v3568
        %3585 = vst [vmem:[#allocation3 + $0x4a0] sm:$0xff] %v3569
        %3586 = vst [vmem:[#allocation3 + $0x4a8] sm:$0xff] %v3570
        %3587 = vst [vmem:[#allocation3 + $0x4b0] sm:$0xff] %v3571
        %3588 = vst [vmem:[#allocation3 + $0x4b8] sm:$0xff] %v3572
        %v3589 = vld [vmem:[#allocation2 + $0x8] sm:$0xff]
        %v3590 = vld [vmem:[#allocation2 + $0x10] sm:$0xff]
        %v3591 = vld [vmem:[#allocation2 + $0x18] sm:$0xff]
        %v3592 = vld [vmem:[#allocation2 + $0x20] sm:$0xff]
        %v3593 = vld [vmem:[#allocation2 + $0x28] sm:$0xff]
        %v3594 = vld [vmem:[#allocation2 + $0x30] sm:$0xff]
        %v3595 = vld [vmem:[#allocation2 + $0x38] sm:$0xff]
        %v3596 = vld [vmem:[#allocation2 + $0x40] sm:$0xff]
        %v3597 = vld [vmem:[#allocation2 + $0x48] sm:$0xff]
        %3607 = vrot.lane.b32.xlu0 %v3589, 55
        %v3608 = vpop.permute.xlu0 %3607
        %3609 = vrot.lane.b32.xlu0 %v3590, 55
        %v3610 = vpop.permute.xlu0 %3609
        %3611 = vrot.lane.b32.xlu0 %v3591, 55
        %v3612 = vpop.permute.xlu0 %3611
        %3613 = vrot.lane.b32.xlu0 %v3592, 55
        %v3614 = vpop.permute.xlu0 %3613
        %3615 = vrot.lane.b32.xlu0 %v3593, 55
        %v3616 = vpop.permute.xlu0 %3615
        %3617 = vrot.lane.b32.xlu0 %v3594, 55
        %v3618 = vpop.permute.xlu0 %3617
        %3619 = vrot.lane.b32.xlu0 %v3595, 55
        %v3620 = vpop.permute.xlu0 %3619
        %3621 = vrot.lane.b32.xlu0 %v3596, 55
        %v3622 = vpop.permute.xlu0 %3621
        %3623 = vrot.lane.b32.xlu0 %v3597, 55
        %v3624 = vpop.permute.xlu0 %3623
        %v3625 = vsel %vm1436, %v3608, %v3610
        %v3626 = vsel %vm1436, %v3610, %v3612
        %v3627 = vsel %vm1436, %v3612, %v3614
        %v3628 = vsel %vm1436, %v3614, %v3616
        %v3629 = vsel %vm1436, %v3616, %v3618
        %v3630 = vsel %vm1436, %v3618, %v3620
        %v3631 = vsel %vm1436, %v3620, %v3622
        %v3632 = vsel %vm1436, %v3622, %v3624
        %3641 = vst [vmem:[#allocation3 + $0x4c0] sm:$0xff] %v3625
        %3642 = vst [vmem:[#allocation3 + $0x4c8] sm:$0xff] %v3626
        %3643 = vst [vmem:[#allocation3 + $0x4d0] sm:$0xff] %v3627
        %3644 = vst [vmem:[#allocation3 + $0x4d8] sm:$0xff] %v3628
        %3645 = vst [vmem:[#allocation3 + $0x4e0] sm:$0xff] %v3629
        %3646 = vst [vmem:[#allocation3 + $0x4e8] sm:$0xff] %v3630
        %3647 = vst [vmem:[#allocation3 + $0x4f0] sm:$0xff] %v3631
        %3648 = vst [vmem:[#allocation3 + $0x4f8] sm:$0xff] %v3632
        %v3649 = vld [vmem:[#allocation2 + $0x8] sm:$0xff]
        %v3650 = vld [vmem:[#allocation2 + $0x10] sm:$0xff]
        %v3651 = vld [vmem:[#allocation2 + $0x18] sm:$0xff]
        %v3652 = vld [vmem:[#allocation2 + $0x20] sm:$0xff]
        %v3653 = vld [vmem:[#allocation2 + $0x28] sm:$0xff]
        %v3654 = vld [vmem:[#allocation2 + $0x30] sm:$0xff]
        %v3655 = vld [vmem:[#allocation2 + $0x38] sm:$0xff]
        %v3656 = vld [vmem:[#allocation2 + $0x40] sm:$0xff]
        %v3657 = vld [vmem:[#allocation2 + $0x48] sm:$0xff]
        %3667 = vrot.lane.b32.xlu0 %v3649, 54
        %v3668 = vpop.permute.xlu0 %3667
        %3669 = vrot.lane.b32.xlu0 %v3650, 54
        %v3670 = vpop.permute.xlu0 %3669
        %3671 = vrot.lane.b32.xlu0 %v3651, 54
        %v3672 = vpop.permute.xlu0 %3671
        %3673 = vrot.lane.b32.xlu0 %v3652, 54
        %v3674 = vpop.permute.xlu0 %3673
        %3675 = vrot.lane.b32.xlu0 %v3653, 54
        %v3676 = vpop.permute.xlu0 %3675
        %3677 = vrot.lane.b32.xlu0 %v3654, 54
        %v3678 = vpop.permute.xlu0 %3677
        %3679 = vrot.lane.b32.xlu0 %v3655, 54
        %v3680 = vpop.permute.xlu0 %3679
        %3681 = vrot.lane.b32.xlu0 %v3656, 54
        %v3682 = vpop.permute.xlu0 %3681
        %3683 = vrot.lane.b32.xlu0 %v3657, 54
        %v3684 = vpop.permute.xlu0 %3683
        %v3685 = vsel %vm1497, %v3668, %v3670
        %v3686 = vsel %vm1497, %v3670, %v3672
        %v3687 = vsel %vm1497, %v3672, %v3674
        %v3688 = vsel %vm1497, %v3674, %v3676
        %v3689 = vsel %vm1497, %v3676, %v3678
        %v3690 = vsel %vm1497, %v3678, %v3680
        %v3691 = vsel %vm1497, %v3680, %v3682
        %v3692 = vsel %vm1497, %v3682, %v3684
        %3701 = vst [vmem:[#allocation3 + $0x500] sm:$0xff] %v3685
        %3702 = vst [vmem:[#allocation3 + $0x508] sm:$0xff] %v3686
        %3703 = vst [vmem:[#allocation3 + $0x510] sm:$0xff] %v3687
        %3704 = vst [vmem:[#allocation3 + $0x518] sm:$0xff] %v3688
        %3705 = vst [vmem:[#allocation3 + $0x520] sm:$0xff] %v3689
        %3706 = vst [vmem:[#allocation3 + $0x528] sm:$0xff] %v3690
        %3707 = vst [vmem:[#allocation3 + $0x530] sm:$0xff] %v3691
        %3708 = vst [vmem:[#allocation3 + $0x538] sm:$0xff] %v3692
        %v3709 = vld [vmem:[#allocation2 + $0x8] sm:$0xff]
        %v3710 = vld [vmem:[#allocation2 + $0x10] sm:$0xff]
        %v3711 = vld [vmem:[#allocation2 + $0x18] sm:$0xff]
        %v3712 = vld [vmem:[#allocation2 + $0x20] sm:$0xff]
        %v3713 = vld [vmem:[#allocation2 + $0x28] sm:$0xff]
        %v3714 = vld [vmem:[#allocation2 + $0x30] sm:$0xff]
        %v3715 = vld [vmem:[#allocation2 + $0x38] sm:$0xff]
        %v3716 = vld [vmem:[#allocation2 + $0x40] sm:$0xff]
        %v3717 = vld [vmem:[#allocation2 + $0x48] sm:$0xff]
        %3727 = vrot.lane.b32.xlu0 %v3709, 46
        %v3728 = vpop.permute.xlu0 %3727
        %3729 = vrot.lane.b32.xlu0 %v3710, 46
        %v3730 = vpop.permute.xlu0 %3729
        %3731 = vrot.lane.b32.xlu0 %v3711, 46
        %v3732 = vpop.permute.xlu0 %3731
        %3733 = vrot.lane.b32.xlu0 %v3712, 46
        %v3734 = vpop.permute.xlu0 %3733
        %3735 = vrot.lane.b32.xlu0 %v3713, 46
        %v3736 = vpop.permute.xlu0 %3735
        %3737 = vrot.lane.b32.xlu0 %v3714, 46
        %v3738 = vpop.permute.xlu0 %3737
        %3739 = vrot.lane.b32.xlu0 %v3715, 46
        %v3740 = vpop.permute.xlu0 %3739
        %3741 = vrot.lane.b32.xlu0 %v3716, 46
        %v3742 = vpop.permute.xlu0 %3741
        %3743 = vrot.lane.b32.xlu0 %v3717, 46
        %v3744 = vpop.permute.xlu0 %3743
        %v3745 = vsel %vm1558, %v3728, %v3730
        %v3746 = vsel %vm1558, %v3730, %v3732
        %v3747 = vsel %vm1558, %v3732, %v3734
        %v3748 = vsel %vm1558, %v3734, %v3736
        %v3749 = vsel %vm1558, %v3736, %v3738
        %v3750 = vsel %vm1558, %v3738, %v3740
        %v3751 = vsel %vm1558, %v3740, %v3742
        %v3752 = vsel %vm1558, %v3742, %v3744
        %3761 = vst [vmem:[#allocation3 + $0x540] sm:$0xff] %v3745
        %3762 = vst [vmem:[#allocation3 + $0x548] sm:$0xff] %v3746
        %3763 = vst [vmem:[#allocation3 + $0x550] sm:$0xff] %v3747
        %3764 = vst [vmem:[#allocation3 + $0x558] sm:$0xff] %v3748
        %3765 = vst [vmem:[#allocation3 + $0x560] sm:$0xff] %v3749
        %3766 = vst [vmem:[#allocation3 + $0x568] sm:$0xff] %v3750
        %3767 = vst [vmem:[#allocation3 + $0x570] sm:$0xff] %v3751
        %3768 = vst [vmem:[#allocation3 + $0x578] sm:$0xff] %v3752
        %v3769 = vld [vmem:[#allocation2 + $0x8] sm:$0xff]
        %v3770 = vld [vmem:[#allocation2 + $0x10] sm:$0xff]
        %v3771 = vld [vmem:[#allocation2 + $0x18] sm:$0xff]
        %v3772 = vld [vmem:[#allocation2 + $0x20] sm:$0xff]
        %v3773 = vld [vmem:[#allocation2 + $0x28] sm:$0xff]
        %v3774 = vld [vmem:[#allocation2 + $0x30] sm:$0xff]
        %v3775 = vld [vmem:[#allocation2 + $0x38] sm:$0xff]
        %v3776 = vld [vmem:[#allocation2 + $0x40] sm:$0xff]
        %v3777 = vld [vmem:[#allocation2 + $0x48] sm:$0xff]
        %3787 = vrot.lane.b32.xlu0 %v3769, 45
        %v3788 = vpop.permute.xlu0 %3787
        %3789 = vrot.lane.b32.xlu0 %v3770, 45
        %v3790 = vpop.permute.xlu0 %3789
        %3791 = vrot.lane.b32.xlu0 %v3771, 45
        %v3792 = vpop.permute.xlu0 %3791
        %3793 = vrot.lane.b32.xlu0 %v3772, 45
        %v3794 = vpop.permute.xlu0 %3793
        %3795 = vrot.lane.b32.xlu0 %v3773, 45
        %v3796 = vpop.permute.xlu0 %3795
        %3797 = vrot.lane.b32.xlu0 %v3774, 45
        %v3798 = vpop.permute.xlu0 %3797
        %3799 = vrot.lane.b32.xlu0 %v3775, 45
        %v3800 = vpop.permute.xlu0 %3799
        %3801 = vrot.lane.b32.xlu0 %v3776, 45
        %v3802 = vpop.permute.xlu0 %3801
        %3803 = vrot.lane.b32.xlu0 %v3777, 45
        %v3804 = vpop.permute.xlu0 %3803
        %v3805 = vsel %vm1619, %v3788, %v3790
        %v3806 = vsel %vm1619, %v3790, %v3792
        %v3807 = vsel %vm1619, %v3792, %v3794
        %v3808 = vsel %vm1619, %v3794, %v3796
        %v3809 = vsel %vm1619, %v3796, %v3798
        %v3810 = vsel %vm1619, %v3798, %v3800
        %v3811 = vsel %vm1619, %v3800, %v3802
        %v3812 = vsel %vm1619, %v3802, %v3804
        %3821 = vst [vmem:[#allocation3 + $0x580] sm:$0xff] %v3805
        %3822 = vst [vmem:[#allocation3 + $0x588] sm:$0xff] %v3806
        %3823 = vst [vmem:[#allocation3 + $0x590] sm:$0xff] %v3807
        %3824 = vst [vmem:[#allocation3 + $0x598] sm:$0xff] %v3808
        %3825 = vst [vmem:[#allocation3 + $0x5a0] sm:$0xff] %v3809
        %3826 = vst [vmem:[#allocation3 + $0x5a8] sm:$0xff] %v3810
        %3827 = vst [vmem:[#allocation3 + $0x5b0] sm:$0xff] %v3811
        %3828 = vst [vmem:[#allocation3 + $0x5b8] sm:$0xff] %v3812
        %v3829 = vld [vmem:[#allocation2 + $0x8] sm:$0xff]
        %v3830 = vld [vmem:[#allocation2 + $0x10] sm:$0xff]
        %v3831 = vld [vmem:[#allocation2 + $0x18] sm:$0xff]
        %v3832 = vld [vmem:[#allocation2 + $0x20] sm:$0xff]
        %v3833 = vld [vmem:[#allocation2 + $0x28] sm:$0xff]
        %v3834 = vld [vmem:[#allocation2 + $0x30] sm:$0xff]
        %v3835 = vld [vmem:[#allocation2 + $0x38] sm:$0xff]
        %v3836 = vld [vmem:[#allocation2 + $0x40] sm:$0xff]
        %v3837 = vld [vmem:[#allocation2 + $0x48] sm:$0xff]
        %3847 = vrot.lane.b32.xlu0 %v3829, 44
        %v3848 = vpop.permute.xlu0 %3847
        %3849 = vrot.lane.b32.xlu0 %v3830, 44
        %v3850 = vpop.permute.xlu0 %3849
        %3851 = vrot.lane.b32.xlu0 %v3831, 44
        %v3852 = vpop.permute.xlu0 %3851
        %3853 = vrot.lane.b32.xlu0 %v3832, 44
        %v3854 = vpop.permute.xlu0 %3853
        %3855 = vrot.lane.b32.xlu0 %v3833, 44
        %v3856 = vpop.permute.xlu0 %3855
        %3857 = vrot.lane.b32.xlu0 %v3834, 44
        %v3858 = vpop.permute.xlu0 %3857
        %3859 = vrot.lane.b32.xlu0 %v3835, 44
        %v3860 = vpop.permute.xlu0 %3859
        %3861 = vrot.lane.b32.xlu0 %v3836, 44
        %v3862 = vpop.permute.xlu0 %3861
        %3863 = vrot.lane.b32.xlu0 %v3837, 44
        %v3864 = vpop.permute.xlu0 %3863
        %v3865 = vsel %vm1680, %v3848, %v3850
        %v3866 = vsel %vm1680, %v3850, %v3852
        %v3867 = vsel %vm1680, %v3852, %v3854
        %v3868 = vsel %vm1680, %v3854, %v3856
        %v3869 = vsel %vm1680, %v3856, %v3858
        %v3870 = vsel %vm1680, %v3858, %v3860
        %v3871 = vsel %vm1680, %v3860, %v3862
        %v3872 = vsel %vm1680, %v3862, %v3864
        %3881 = vst [vmem:[#allocation3 + $0x5c0] sm:$0xff] %v3865
        %3882 = vst [vmem:[#allocation3 + $0x5c8] sm:$0xff] %v3866
        %3883 = vst [vmem:[#allocation3 + $0x5d0] sm:$0xff] %v3867
        %3884 = vst [vmem:[#allocation3 + $0x5d8] sm:$0xff] %v3868
        %3885 = vst [vmem:[#allocation3 + $0x5e0] sm:$0xff] %v3869
        %3886 = vst [vmem:[#allocation3 + $0x5e8] sm:$0xff] %v3870
        %3887 = vst [vmem:[#allocation3 + $0x5f0] sm:$0xff] %v3871
        %3888 = vst [vmem:[#allocation3 + $0x5f8] sm:$0xff] %v3872
        %v3889 = vld [vmem:[#allocation2 + $0x8] sm:$0xff]
        %v3890 = vld [vmem:[#allocation2 + $0x10] sm:$0xff]
        %v3891 = vld [vmem:[#allocation2 + $0x18] sm:$0xff]
        %v3892 = vld [vmem:[#allocation2 + $0x20] sm:$0xff]
        %v3893 = vld [vmem:[#allocation2 + $0x28] sm:$0xff]
        %v3894 = vld [vmem:[#allocation2 + $0x30] sm:$0xff]
        %v3895 = vld [vmem:[#allocation2 + $0x38] sm:$0xff]
        %v3896 = vld [vmem:[#allocation2 + $0x40] sm:$0xff]
        %v3897 = vld [vmem:[#allocation2 + $0x48] sm:$0xff]
        %3907 = vrot.lane.b32.xlu0 %v3889, 36
        %v3908 = vpop.permute.xlu0 %3907
        %3909 = vrot.lane.b32.xlu0 %v3890, 36
        %v3910 = vpop.permute.xlu0 %3909
        %3911 = vrot.lane.b32.xlu0 %v3891, 36
        %v3912 = vpop.permute.xlu0 %3911
        %3913 = vrot.lane.b32.xlu0 %v3892, 36
        %v3914 = vpop.permute.xlu0 %3913
        %3915 = vrot.lane.b32.xlu0 %v3893, 36
        %v3916 = vpop.permute.xlu0 %3915
        %3917 = vrot.lane.b32.xlu0 %v3894, 36
        %v3918 = vpop.permute.xlu0 %3917
        %3919 = vrot.lane.b32.xlu0 %v3895, 36
        %v3920 = vpop.permute.xlu0 %3919
        %3921 = vrot.lane.b32.xlu0 %v3896, 36
        %v3922 = vpop.permute.xlu0 %3921
        %3923 = vrot.lane.b32.xlu0 %v3897, 36
        %v3924 = vpop.permute.xlu0 %3923
        %v3925 = vsel %vm1741, %v3908, %v3910
        %v3926 = vsel %vm1741, %v3910, %v3912
        %v3927 = vsel %vm1741, %v3912, %v3914
        %v3928 = vsel %vm1741, %v3914, %v3916
        %v3929 = vsel %vm1741, %v3916, %v3918
        %v3930 = vsel %vm1741, %v3918, %v3920
        %v3931 = vsel %vm1741, %v3920, %v3922
        %v3932 = vsel %vm1741, %v3922, %v3924
        %3941 = vst [vmem:[#allocation3 + $0x600] sm:$0xff] %v3925
        %3942 = vst [vmem:[#allocation3 + $0x608] sm:$0xff] %v3926
        %3943 = vst [vmem:[#allocation3 + $0x610] sm:$0xff] %v3927
        %3944 = vst [vmem:[#allocation3 + $0x618] sm:$0xff] %v3928
        %3945 = vst [vmem:[#allocation3 + $0x620] sm:$0xff] %v3929
        %3946 = vst [vmem:[#allocation3 + $0x628] sm:$0xff] %v3930
        %3947 = vst [vmem:[#allocation3 + $0x630] sm:$0xff] %v3931
        %3948 = vst [vmem:[#allocation3 + $0x638] sm:$0xff] %v3932
        %v3949 = vld [vmem:[#allocation2 + $0x8] sm:$0xff]
        %v3950 = vld [vmem:[#allocation2 + $0x10] sm:$0xff]
        %v3951 = vld [vmem:[#allocation2 + $0x18] sm:$0xff]
        %v3952 = vld [vmem:[#allocation2 + $0x20] sm:$0xff]
        %v3953 = vld [vmem:[#allocation2 + $0x28] sm:$0xff]
        %v3954 = vld [vmem:[#allocation2 + $0x30] sm:$0xff]
        %v3955 = vld [vmem:[#allocation2 + $0x38] sm:$0xff]
        %v3956 = vld [vmem:[#allocation2 + $0x40] sm:$0xff]
        %v3957 = vld [vmem:[#allocation2 + $0x48] sm:$0xff]
        %3967 = vrot.lane.b32.xlu0 %v3949, 35
        %v3968 = vpop.permute.xlu0 %3967
        %3969 = vrot.lane.b32.xlu0 %v3950, 35
        %v3970 = vpop.permute.xlu0 %3969
        %3971 = vrot.lane.b32.xlu0 %v3951, 35
        %v3972 = vpop.permute.xlu0 %3971
        %3973 = vrot.lane.b32.xlu0 %v3952, 35
        %v3974 = vpop.permute.xlu0 %3973
        %3975 = vrot.lane.b32.xlu0 %v3953, 35
        %v3976 = vpop.permute.xlu0 %3975
        %3977 = vrot.lane.b32.xlu0 %v3954, 35
        %v3978 = vpop.permute.xlu0 %3977
        %3979 = vrot.lane.b32.xlu0 %v3955, 35
        %v3980 = vpop.permute.xlu0 %3979
        %3981 = vrot.lane.b32.xlu0 %v3956, 35
        %v3982 = vpop.permute.xlu0 %3981
        %3983 = vrot.lane.b32.xlu0 %v3957, 35
        %v3984 = vpop.permute.xlu0 %3983
        %v3985 = vsel %vm1802, %v3968, %v3970
        %v3986 = vsel %vm1802, %v3970, %v3972
        %v3987 = vsel %vm1802, %v3972, %v3974
        %v3988 = vsel %vm1802, %v3974, %v3976
        %v3989 = vsel %vm1802, %v3976, %v3978
        %v3990 = vsel %vm1802, %v3978, %v3980
        %v3991 = vsel %vm1802, %v3980, %v3982
        %v3992 = vsel %vm1802, %v3982, %v3984
        %4001 = vst [vmem:[#allocation3 + $0x640] sm:$0xff] %v3985
        %4002 = vst [vmem:[#allocation3 + $0x648] sm:$0xff] %v3986
        %4003 = vst [vmem:[#allocation3 + $0x650] sm:$0xff] %v3987
        %4004 = vst [vmem:[#allocation3 + $0x658] sm:$0xff] %v3988
        %4005 = vst [vmem:[#allocation3 + $0x660] sm:$0xff] %v3989
        %4006 = vst [vmem:[#allocation3 + $0x668] sm:$0xff] %v3990
        %4007 = vst [vmem:[#allocation3 + $0x670] sm:$0xff] %v3991
        %4008 = vst [vmem:[#allocation3 + $0x678] sm:$0xff] %v3992
        %v4009 = vld [vmem:[#allocation2 + $0x8] sm:$0xff]
        %v4010 = vld [vmem:[#allocation2 + $0x10] sm:$0xff]
        %v4011 = vld [vmem:[#allocation2 + $0x18] sm:$0xff]
        %v4012 = vld [vmem:[#allocation2 + $0x20] sm:$0xff]
        %v4013 = vld [vmem:[#allocation2 + $0x28] sm:$0xff]
        %v4014 = vld [vmem:[#allocation2 + $0x30] sm:$0xff]
        %v4015 = vld [vmem:[#allocation2 + $0x38] sm:$0xff]
        %v4016 = vld [vmem:[#allocation2 + $0x40] sm:$0xff]
        %v4017 = vld [vmem:[#allocation2 + $0x48] sm:$0xff]
        %4027 = vrot.lane.b32.xlu0 %v4009, 34
        %v4028 = vpop.permute.xlu0 %4027
        %4029 = vrot.lane.b32.xlu0 %v4010, 34
        %v4030 = vpop.permute.xlu0 %4029
        %4031 = vrot.lane.b32.xlu0 %v4011, 34
        %v4032 = vpop.permute.xlu0 %4031
        %4033 = vrot.lane.b32.xlu0 %v4012, 34
        %v4034 = vpop.permute.xlu0 %4033
        %4035 = vrot.lane.b32.xlu0 %v4013, 34
        %v4036 = vpop.permute.xlu0 %4035
        %4037 = vrot.lane.b32.xlu0 %v4014, 34
        %v4038 = vpop.permute.xlu0 %4037
        %4039 = vrot.lane.b32.xlu0 %v4015, 34
        %v4040 = vpop.permute.xlu0 %4039
        %4041 = vrot.lane.b32.xlu0 %v4016, 34
        %v4042 = vpop.permute.xlu0 %4041
        %4043 = vrot.lane.b32.xlu0 %v4017, 34
        %v4044 = vpop.permute.xlu0 %4043
        %v4045 = vsel %vm1863, %v4028, %v4030
        %v4046 = vsel %vm1863, %v4030, %v4032
        %v4047 = vsel %vm1863, %v4032, %v4034
        %v4048 = vsel %vm1863, %v4034, %v4036
        %v4049 = vsel %vm1863, %v4036, %v4038
        %v4050 = vsel %vm1863, %v4038, %v4040
        %v4051 = vsel %vm1863, %v4040, %v4042
        %v4052 = vsel %vm1863, %v4042, %v4044
        %4061 = vst [vmem:[#allocation3 + $0x680] sm:$0xff] %v4045
        %4062 = vst [vmem:[#allocation3 + $0x688] sm:$0xff] %v4046
        %4063 = vst [vmem:[#allocation3 + $0x690] sm:$0xff] %v4047
        %4064 = vst [vmem:[#allocation3 + $0x698] sm:$0xff] %v4048
        %4065 = vst [vmem:[#allocation3 + $0x6a0] sm:$0xff] %v4049
        %4066 = vst [vmem:[#allocation3 + $0x6a8] sm:$0xff] %v4050
        %4067 = vst [vmem:[#allocation3 + $0x6b0] sm:$0xff] %v4051
        %4068 = vst [vmem:[#allocation3 + $0x6b8] sm:$0xff] %v4052
        %s4069 = scalar_lea.vmem [#allocation7], 16
        %v4070 = vld [vmem:[%s4069] sm:$0xff]
        %v4071 = vld [vmem:[%s4069 + $0x8] sm:$0xff]
        %v4072 = vld [vmem:[#allocation3] sm:$0xff]
        %v4073 = vld [vmem:[#allocation3 + $0x8] sm:$0xff]
        %v4074 = vld [vmem:[#allocation3 + $0x10] sm:$0xff]
        %v4075 = vld [vmem:[#allocation3 + $0x18] sm:$0xff]
        %v4076 = vld [vmem:[#allocation3 + $0x20] sm:$0xff]
        %v4077 = vld [vmem:[#allocation3 + $0x28] sm:$0xff]
        %v4078 = vld [vmem:[#allocation3 + $0x30] sm:$0xff]
        %v4079 = vld [vmem:[#allocation3 + $0x38] sm:$0xff]
        %v4080 = vld [vmem:[#allocation3 + $0x40] sm:$0xff]
        %v4081 = vld [vmem:[#allocation3 + $0x48] sm:$0xff]
        %v4082 = vld [vmem:[#allocation3 + $0x50] sm:$0xff]
        %v4083 = vld [vmem:[#allocation3 + $0x58] sm:$0xff]
        %v4084 = vld [vmem:[#allocation3 + $0x60] sm:$0xff]
        %v4085 = vld [vmem:[#allocation3 + $0x68] sm:$0xff]
        %v4086 = vld [vmem:[#allocation3 + $0x70] sm:$0xff]
        %v4087 = vld [vmem:[#allocation3 + $0x78] sm:$0xff]
        %v4088 = vld [vmem:[#allocation3 + $0x80] sm:$0xff]
        %v4089 = vld [vmem:[#allocation3 + $0x88] sm:$0xff]
        %v4090 = vld [vmem:[#allocation3 + $0x90] sm:$0xff]
        %v4091 = vld [vmem:[#allocation3 + $0x98] sm:$0xff]
        %v4092 = vld [vmem:[#allocation3 + $0xa0] sm:$0xff]
        %v4093 = vld [vmem:[#allocation3 + $0xa8] sm:$0xff]
        %v4094 = vld [vmem:[#allocation3 + $0xb0] sm:$0xff]
        %v4095 = vld [vmem:[#allocation3 + $0xb8] sm:$0xff]
        %v4096 = vld [vmem:[#allocation3 + $0xc0] sm:$0xff]
        %v4097 = vld [vmem:[#allocation3 + $0xc8] sm:$0xff]
        %v4098 = vld [vmem:[#allocation3 + $0xd0] sm:$0xff]
        %v4099 = vld [vmem:[#allocation3 + $0xd8] sm:$0xff]
        %v4100 = vld [vmem:[#allocation3 + $0xe0] sm:$0xff]
        %v4101 = vld [vmem:[#allocation3 + $0xe8] sm:$0xff]
        %v4102 = vld [vmem:[#allocation3 + $0xf0] sm:$0xff]
        %v4103 = vld [vmem:[#allocation3 + $0xf8] sm:$0xff]
        %v4104 = vld [vmem:[#allocation3 + $0x100] sm:$0xff]
        %v4105 = vld [vmem:[#allocation3 + $0x108] sm:$0xff]
        %v4106 = vld [vmem:[#allocation3 + $0x110] sm:$0xff]
        %v4107 = vld [vmem:[#allocation3 + $0x118] sm:$0xff]
        %v4108 = vld [vmem:[#allocation3 + $0x120] sm:$0xff]
        %v4109 = vld [vmem:[#allocation3 + $0x128] sm:$0xff]
        %v4110 = vld [vmem:[#allocation3 + $0x130] sm:$0xff]
        %v4111 = vld [vmem:[#allocation3 + $0x138] sm:$0xff]
        %v4112 = vld [vmem:[#allocation3 + $0x140] sm:$0xff]
        %v4113 = vld [vmem:[#allocation3 + $0x148] sm:$0xff]
        %v4114 = vld [vmem:[#allocation3 + $0x150] sm:$0xff]
        %v4115 = vld [vmem:[#allocation3 + $0x158] sm:$0xff]
        %v4116 = vld [vmem:[#allocation3 + $0x160] sm:$0xff]
        %v4117 = vld [vmem:[#allocation3 + $0x168] sm:$0xff]
        %v4118 = vld [vmem:[#allocation3 + $0x170] sm:$0xff]
        %v4119 = vld [vmem:[#allocation3 + $0x178] sm:$0xff]
        %v4120 = vld [vmem:[#allocation3 + $0x180] sm:$0xff]
        %v4121 = vld [vmem:[#allocation3 + $0x188] sm:$0xff]
        %v4122 = vld [vmem:[#allocation3 + $0x190] sm:$0xff]
        %v4123 = vld [vmem:[#allocation3 + $0x198] sm:$0xff]
        %v4124 = vld [vmem:[#allocation3 + $0x1a0] sm:$0xff]
        %v4125 = vld [vmem:[#allocation3 + $0x1a8] sm:$0xff]
        %v4126 = vld [vmem:[#allocation3 + $0x1b0] sm:$0xff]
        %v4127 = vld [vmem:[#allocation3 + $0x1b8] sm:$0xff]
        %v4128 = vld [vmem:[#allocation3 + $0x1c0] sm:$0xff]
        %v4129 = vld [vmem:[#allocation3 + $0x1c8] sm:$0xff]
        %v4130 = vld [vmem:[#allocation3 + $0x1d0] sm:$0xff]
        %v4131 = vld [vmem:[#allocation3 + $0x1d8] sm:$0xff]
        %v4132 = vld [vmem:[#allocation3 + $0x1e0] sm:$0xff]
        %v4133 = vld [vmem:[#allocation3 + $0x1e8] sm:$0xff]
        %v4134 = vld [vmem:[#allocation3 + $0x1f0] sm:$0xff]
        %v4135 = vld [vmem:[#allocation3 + $0x1f8] sm:$0xff]
        %v4136 = vld [vmem:[#allocation3 + $0x200] sm:$0xff]
        %v4137 = vld [vmem:[#allocation3 + $0x208] sm:$0xff]
        %v4138 = vld [vmem:[#allocation3 + $0x210] sm:$0xff]
        %v4139 = vld [vmem:[#allocation3 + $0x218] sm:$0xff]
        %v4140 = vld [vmem:[#allocation3 + $0x220] sm:$0xff]
        %v4141 = vld [vmem:[#allocation3 + $0x228] sm:$0xff]
        %v4142 = vld [vmem:[#allocation3 + $0x230] sm:$0xff]
        %v4143 = vld [vmem:[#allocation3 + $0x238] sm:$0xff]
        %v4144 = vld [vmem:[#allocation3 + $0x240] sm:$0xff]
        %v4145 = vld [vmem:[#allocation3 + $0x248] sm:$0xff]
        %v4146 = vld [vmem:[#allocation3 + $0x250] sm:$0xff]
        %v4147 = vld [vmem:[#allocation3 + $0x258] sm:$0xff]
        %v4148 = vld [vmem:[#allocation3 + $0x260] sm:$0xff]
        %v4149 = vld [vmem:[#allocation3 + $0x268] sm:$0xff]
        %v4150 = vld [vmem:[#allocation3 + $0x270] sm:$0xff]
        %v4151 = vld [vmem:[#allocation3 + $0x278] sm:$0xff]
        %v4152 = vld [vmem:[#allocation3 + $0x280] sm:$0xff]
        %v4153 = vld [vmem:[#allocation3 + $0x288] sm:$0xff]
        %v4154 = vld [vmem:[#allocation3 + $0x290] sm:$0xff]
        %v4155 = vld [vmem:[#allocation3 + $0x298] sm:$0xff]
        %v4156 = vld [vmem:[#allocation3 + $0x2a0] sm:$0xff]
        %v4157 = vld [vmem:[#allocation3 + $0x2a8] sm:$0xff]
        %v4158 = vld [vmem:[#allocation3 + $0x2b0] sm:$0xff]
        %v4159 = vld [vmem:[#allocation3 + $0x2b8] sm:$0xff]
        %v4160 = vld [vmem:[#allocation3 + $0x2c0] sm:$0xff]
        %v4161 = vld [vmem:[#allocation3 + $0x2c8] sm:$0xff]
        %v4162 = vld [vmem:[#allocation3 + $0x2d0] sm:$0xff]
        %v4163 = vld [vmem:[#allocation3 + $0x2d8] sm:$0xff]
        %v4164 = vld [vmem:[#allocation3 + $0x2e0] sm:$0xff]
        %v4165 = vld [vmem:[#allocation3 + $0x2e8] sm:$0xff]
        %v4166 = vld [vmem:[#allocation3 + $0x2f0] sm:$0xff]
        %v4167 = vld [vmem:[#allocation3 + $0x2f8] sm:$0xff]
        %v4168 = vld [vmem:[#allocation3 + $0x300] sm:$0xff]
        %v4169 = vld [vmem:[#allocation3 + $0x308] sm:$0xff]
        %v4170 = vld [vmem:[#allocation3 + $0x310] sm:$0xff]
        %v4171 = vld [vmem:[#allocation3 + $0x318] sm:$0xff]
        %v4172 = vld [vmem:[#allocation3 + $0x320] sm:$0xff]
        %v4173 = vld [vmem:[#allocation3 + $0x328] sm:$0xff]
        %v4174 = vld [vmem:[#allocation3 + $0x330] sm:$0xff]
        %v4175 = vld [vmem:[#allocation3 + $0x338] sm:$0xff]
        %v4176 = vld [vmem:[#allocation3 + $0x340] sm:$0xff]
        %v4177 = vld [vmem:[#allocation3 + $0x348] sm:$0xff]
        %v4178 = vld [vmem:[#allocation3 + $0x350] sm:$0xff]
        %v4179 = vld [vmem:[#allocation3 + $0x358] sm:$0xff]
        %v4180 = vld [vmem:[#allocation3 + $0x360] sm:$0xff]
        %v4181 = vld [vmem:[#allocation3 + $0x368] sm:$0xff]
        %v4182 = vld [vmem:[#allocation3 + $0x370] sm:$0xff]
        %v4183 = vld [vmem:[#allocation3 + $0x378] sm:$0xff]
        %v4184 = vld [vmem:[#allocation3 + $0x380] sm:$0xff]
        %v4185 = vld [vmem:[#allocation3 + $0x388] sm:$0xff]
        %v4186 = vld [vmem:[#allocation3 + $0x390] sm:$0xff]
        %v4187 = vld [vmem:[#allocation3 + $0x398] sm:$0xff]
        %v4188 = vld [vmem:[#allocation3 + $0x3a0] sm:$0xff]
        %v4189 = vld [vmem:[#allocation3 + $0x3a8] sm:$0xff]
        %v4190 = vld [vmem:[#allocation3 + $0x3b0] sm:$0xff]
        %v4191 = vld [vmem:[#allocation3 + $0x3b8] sm:$0xff]
        %v4192 = vld [vmem:[#allocation3 + $0x3c0] sm:$0xff]
        %v4193 = vld [vmem:[#allocation3 + $0x3c8] sm:$0xff]
        %v4194 = vld [vmem:[#allocation3 + $0x3d0] sm:$0xff]
        %v4195 = vld [vmem:[#allocation3 + $0x3d8] sm:$0xff]
        %v4196 = vld [vmem:[#allocation3 + $0x3e0] sm:$0xff]
        %v4197 = vld [vmem:[#allocation3 + $0x3e8] sm:$0xff]
        %v4198 = vld [vmem:[#allocation3 + $0x3f0] sm:$0xff]
        %v4199 = vld [vmem:[#allocation3 + $0x3f8] sm:$0xff]
        %v4200 = vld [vmem:[#allocation3 + $0x400] sm:$0xff]
        %v4201 = vld [vmem:[#allocation3 + $0x408] sm:$0xff]
        %v4202 = vld [vmem:[#allocation3 + $0x410] sm:$0xff]
        %v4203 = vld [vmem:[#allocation3 + $0x418] sm:$0xff]
        %v4204 = vld [vmem:[#allocation3 + $0x420] sm:$0xff]
        %v4205 = vld [vmem:[#allocation3 + $0x428] sm:$0xff]
        %v4206 = vld [vmem:[#allocation3 + $0x430] sm:$0xff]
        %v4207 = vld [vmem:[#allocation3 + $0x438] sm:$0xff]
        %v4208 = vld [vmem:[#allocation3 + $0x440] sm:$0xff]
        %v4209 = vld [vmem:[#allocation3 + $0x448] sm:$0xff]
        %v4210 = vld [vmem:[#allocation3 + $0x450] sm:$0xff]
        %v4211 = vld [vmem:[#allocation3 + $0x458] sm:$0xff]
        %v4212 = vld [vmem:[#allocation3 + $0x460] sm:$0xff]
        %v4213 = vld [vmem:[#allocation3 + $0x468] sm:$0xff]
        %v4214 = vld [vmem:[#allocation3 + $0x470] sm:$0xff]
        %v4215 = vld [vmem:[#allocation3 + $0x478] sm:$0xff]
        %v4216 = vld [vmem:[#allocation3 + $0x480] sm:$0xff]
        %v4217 = vld [vmem:[#allocation3 + $0x488] sm:$0xff]
        %v4218 = vld [vmem:[#allocation3 + $0x490] sm:$0xff]
        %v4219 = vld [vmem:[#allocation3 + $0x498] sm:$0xff]
        %v4220 = vld [vmem:[#allocation3 + $0x4a0] sm:$0xff]
        %v4221 = vld [vmem:[#allocation3 + $0x4a8] sm:$0xff]
        %v4222 = vld [vmem:[#allocation3 + $0x4b0] sm:$0xff]
        %v4223 = vld [vmem:[#allocation3 + $0x4b8] sm:$0xff]
        %v4224 = vld [vmem:[#allocation3 + $0x4c0] sm:$0xff]
        %v4225 = vld [vmem:[#allocation3 + $0x4c8] sm:$0xff]
        %v4226 = vld [vmem:[#allocation3 + $0x4d0] sm:$0xff]
        %v4227 = vld [vmem:[#allocation3 + $0x4d8] sm:$0xff]
        %v4228 = vld [vmem:[#allocation3 + $0x4e0] sm:$0xff]
        %v4229 = vld [vmem:[#allocation3 + $0x4e8] sm:$0xff]
        %v4230 = vld [vmem:[#allocation3 + $0x4f0] sm:$0xff]
        %v4231 = vld [vmem:[#allocation3 + $0x4f8] sm:$0xff]
        %v4232 = vld [vmem:[#allocation3 + $0x500] sm:$0xff]
        %v4233 = vld [vmem:[#allocation3 + $0x508] sm:$0xff]
        %v4234 = vld [vmem:[#allocation3 + $0x510] sm:$0xff]
        %v4235 = vld [vmem:[#allocation3 + $0x518] sm:$0xff]
        %v4236 = vld [vmem:[#allocation3 + $0x520] sm:$0xff]
        %v4237 = vld [vmem:[#allocation3 + $0x528] sm:$0xff]
        %v4238 = vld [vmem:[#allocation3 + $0x530] sm:$0xff]
        %v4239 = vld [vmem:[#allocation3 + $0x538] sm:$0xff]
        %v4240 = vld [vmem:[#allocation3 + $0x540] sm:$0xff]
        %v4241 = vld [vmem:[#allocation3 + $0x548] sm:$0xff]
        %v4242 = vld [vmem:[#allocation3 + $0x550] sm:$0xff]
        %v4243 = vld [vmem:[#allocation3 + $0x558] sm:$0xff]
        %v4244 = vld [vmem:[#allocation3 + $0x560] sm:$0xff]
        %v4245 = vld [vmem:[#allocation3 + $0x568] sm:$0xff]
        %v4246 = vld [vmem:[#allocation3 + $0x570] sm:$0xff]
        %v4247 = vld [vmem:[#allocation3 + $0x578] sm:$0xff]
        %v4248 = vld [vmem:[#allocation3 + $0x580] sm:$0xff]
        %v4249 = vld [vmem:[#allocation3 + $0x588] sm:$0xff]
        %v4250 = vld [vmem:[#allocation3 + $0x590] sm:$0xff]
        %v4251 = vld [vmem:[#allocation3 + $0x598] sm:$0xff]
        %v4252 = vld [vmem:[#allocation3 + $0x5a0] sm:$0xff]
        %v4253 = vld [vmem:[#allocation3 + $0x5a8] sm:$0xff]
        %v4254 = vld [vmem:[#allocation3 + $0x5b0] sm:$0xff]
        %v4255 = vld [vmem:[#allocation3 + $0x5b8] sm:$0xff]
        %v4256 = vld [vmem:[#allocation3 + $0x5c0] sm:$0xff]
        %v4257 = vld [vmem:[#allocation3 + $0x5c8] sm:$0xff]
        %v4258 = vld [vmem:[#allocation3 + $0x5d0] sm:$0xff]
        %v4259 = vld [vmem:[#allocation3 + $0x5d8] sm:$0xff]
        %v4260 = vld [vmem:[#allocation3 + $0x5e0] sm:$0xff]
        %v4261 = vld [vmem:[#allocation3 + $0x5e8] sm:$0xff]
        %v4262 = vld [vmem:[#allocation3 + $0x5f0] sm:$0xff]
        %v4263 = vld [vmem:[#allocation3 + $0x5f8] sm:$0xff]
        %v4264 = vld [vmem:[#allocation3 + $0x600] sm:$0xff]
        %v4265 = vld [vmem:[#allocation3 + $0x608] sm:$0xff]
        %v4266 = vld [vmem:[#allocation3 + $0x610] sm:$0xff]
        %v4267 = vld [vmem:[#allocation3 + $0x618] sm:$0xff]
        %v4268 = vld [vmem:[#allocation3 + $0x620] sm:$0xff]
        %v4269 = vld [vmem:[#allocation3 + $0x628] sm:$0xff]
        %v4270 = vld [vmem:[#allocation3 + $0x630] sm:$0xff]
        %v4271 = vld [vmem:[#allocation3 + $0x638] sm:$0xff]
        %v4272 = vld [vmem:[#allocation3 + $0x640] sm:$0xff]
        %v4273 = vld [vmem:[#allocation3 + $0x648] sm:$0xff]
        %v4274 = vld [vmem:[#allocation3 + $0x650] sm:$0xff]
        %v4275 = vld [vmem:[#allocation3 + $0x658] sm:$0xff]
        %v4276 = vld [vmem:[#allocation3 + $0x660] sm:$0xff]
        %v4277 = vld [vmem:[#allocation3 + $0x668] sm:$0xff]
        %v4278 = vld [vmem:[#allocation3 + $0x670] sm:$0xff]
        %v4279 = vld [vmem:[#allocation3 + $0x678] sm:$0xff]
        %v4280 = vld [vmem:[#allocation3 + $0x680] sm:$0xff]
        %v4281 = vld [vmem:[#allocation3 + $0x688] sm:$0xff]
        %v4282 = vld [vmem:[#allocation3 + $0x690] sm:$0xff]
        %v4283 = vld [vmem:[#allocation3 + $0x698] sm:$0xff]
        %v4284 = vld [vmem:[#allocation3 + $0x6a0] sm:$0xff]
        %v4285 = vld [vmem:[#allocation3 + $0x6a8] sm:$0xff]
        %v4286 = vld [vmem:[#allocation3 + $0x6b0] sm:$0xff]
        %v4287 = vld [vmem:[#allocation3 + $0x6b8] sm:$0xff]
        %v4289 = vsel %vm2106, %v4071, 0
        %4291 = vmatprep.subr.mxu0 %v4073
        %4292 = vmatpush1.msra.mxu0 %v4072
        %4293 = vmatprep.subr.mxu0 %v4081
        %4294 = vmatpush1.msra.mxu0 %v4080
        %4295 = vmatprep.subr.mxu0 %v4089
        %4296 = vmatpush1.msra.mxu0 %v4088
        %4297 = vmatprep.subr.mxu0 %v4097
        %4298 = vmatpush1.msra.mxu0 %v4096
        %4299 = vmatprep.subr.mxu0 %v4105
        %4300 = vmatpush1.msra.mxu0 %v4104
        %4301 = vmatprep.subr.mxu0 %v4113
        %4302 = vmatpush1.msra.mxu0 %v4112
        %4303 = vmatprep.subr.mxu0 %v4121
        %4304 = vmatpush1.msra.mxu0 %v4120
        %4305 = vmatprep.subr.mxu0 %v4129
        %4306 = vmatpush1.msra.mxu0 %v4128
        %4307 = vmatprep.subr.mxu0 %v4137
        %4308 = vmatpush1.msra.mxu0 %v4136
        %4309 = vmatprep.subr.mxu0 %v4145
        %4310 = vmatpush1.msra.mxu0 %v4144
        %4311 = vmatprep.subr.mxu0 %v4153
        %4312 = vmatpush1.msra.mxu0 %v4152
        %4313 = vmatprep.subr.mxu0 %v4161
        %4314 = vmatpush1.msra.mxu0 %v4160
        %4315 = vmatprep.subr.mxu0 %v4169
        %4316 = vmatpush1.msra.mxu0 %v4168
        %4317 = vmatprep.subr.mxu0 %v4177
        %4318 = vmatpush1.msra.mxu0 %v4176
        %4319 = vmatprep.subr.mxu0 %v4185
        %4320 = vmatpush1.msra.mxu0 %v4184
        %4321 = vmatprep.subr.mxu0 %v4193
        %4322 = vmatpush1.msra.mxu0 %v4192
        %4323 = vmatprep.subr.mxu0 %v4201
        %4324 = vmatpush1.msra.mxu0 %v4200
        %4325 = vmatprep.subr.mxu0 %v4209
        %4326 = vmatpush1.msra.mxu0 %v4208
        %4327 = vmatprep.subr.mxu0 %v4217
        %4328 = vmatpush1.msra.mxu0 %v4216
        %4329 = vmatprep.subr.mxu0 %v4225
        %4330 = vmatpush1.msra.mxu0 %v4224
        %4331 = vmatprep.subr.mxu0 %v4233
        %4332 = vmatpush1.msra.mxu0 %v4232
        %4333 = vmatprep.subr.mxu0 %v4241
        %4334 = vmatpush1.msra.mxu0 %v4240
        %4335 = vmatprep.subr.mxu0 %v4249
        %4336 = vmatpush1.msra.mxu0 %v4248
        %4337 = vmatprep.subr.mxu0 %v4257
        %4338 = vmatpush1.msra.mxu0 %v4256
        %4339 = vmatprep.subr.mxu0 %v4265
        %4340 = vmatpush1.msra.mxu0 %v4264
        %4341 = vmatprep.subr.mxu0 %v4273
        %4342 = vmatpush1.msra.mxu0 %v4272
        %4343 = vmatprep.subr.mxu0 %v4281
        %4344 = vmatpush1.msra.mxu0 %v4280
        %4345 = vmatprep.subr.mxu0 0.0
        %4346 = vmatpush1.msra.mxu0 0.0
        %4347 = vmatprep.subr.mxu0 0.0
        %4348 = vmatpush1.msra.mxu0 0.0
        %4349 = vmatprep.subr.mxu0 0.0
        %4350 = vmatpush1.msra.mxu0 0.0
        %4351 = vmatprep.subr.mxu0 0.0
        %4352 = vmatpush1.msra.mxu0 0.0
        %4353 = vmatprep.subr.mxu0 0.0
        %4354 = vmatpush1.msra.mxu0 0.0
        %4355 = vmatprep.mubr.f32.mxu0 %v4289
        %4356 = vmatmul.mubr.f32.gmra.mrb[0].mxu0 %v4070
        %v4357 = vpop.f32.mrb[0].mxu0
        %v4358 = vadd.f32 0.0, %v4357
        %v4359 = vpop.f32.mrb[0].mxu0
        %v4360 = vadd.f32 0.0, %v4359
        %4361 = vdwg.mxu0
        %4362 = vmatprep.subr.mxu0 %v4075
        %4363 = vmatpush1.msra.mxu0 %v4074
        %4364 = vmatprep.subr.mxu0 %v4083
        %4365 = vmatpush1.msra.mxu0 %v4082
        %4366 = vmatprep.subr.mxu0 %v4091
        %4367 = vmatpush1.msra.mxu0 %v4090
        %4368 = vmatprep.subr.mxu0 %v4099
        %4369 = vmatpush1.msra.mxu0 %v4098
        %4370 = vmatprep.subr.mxu0 %v4107
        %4371 = vmatpush1.msra.mxu0 %v4106
        %4372 = vmatprep.subr.mxu0 %v4115
        %4373 = vmatpush1.msra.mxu0 %v4114
        %4374 = vmatprep.subr.mxu0 %v4123
        %4375 = vmatpush1.msra.mxu0 %v4122
        %4376 = vmatprep.subr.mxu0 %v4131
        %4377 = vmatpush1.msra.mxu0 %v4130
        %4378 = vmatprep.subr.mxu0 %v4139
        %4379 = vmatpush1.msra.mxu0 %v4138
        %4380 = vmatprep.subr.mxu0 %v4147
        %4381 = vmatpush1.msra.mxu0 %v4146
        %4382 = vmatprep.subr.mxu0 %v4155
        %4383 = vmatpush1.msra.mxu0 %v4154
        %4384 = vmatprep.subr.mxu0 %v4163
        %4385 = vmatpush1.msra.mxu0 %v4162
        %4386 = vmatprep.subr.mxu0 %v4171
        %4387 = vmatpush1.msra.mxu0 %v4170
        %4388 = vmatprep.subr.mxu0 %v4179
        %4389 = vmatpush1.msra.mxu0 %v4178
        %4390 = vmatprep.subr.mxu0 %v4187
        %4391 = vmatpush1.msra.mxu0 %v4186
        %4392 = vmatprep.subr.mxu0 %v4195
        %4393 = vmatpush1.msra.mxu0 %v4194
        %4394 = vmatprep.subr.mxu0 %v4203
        %4395 = vmatpush1.msra.mxu0 %v4202
        %4396 = vmatprep.subr.mxu0 %v4211
        %4397 = vmatpush1.msra.mxu0 %v4210
        %4398 = vmatprep.subr.mxu0 %v4219
        %4399 = vmatpush1.msra.mxu0 %v4218
        %4400 = vmatprep.subr.mxu0 %v4227
        %4401 = vmatpush1.msra.mxu0 %v4226
        %4402 = vmatprep.subr.mxu0 %v4235
        %4403 = vmatpush1.msra.mxu0 %v4234
        %4404 = vmatprep.subr.mxu0 %v4243
        %4405 = vmatpush1.msra.mxu0 %v4242
        %4406 = vmatprep.subr.mxu0 %v4251
        %4407 = vmatpush1.msra.mxu0 %v4250
        %4408 = vmatprep.subr.mxu0 %v4259
        %4409 = vmatpush1.msra.mxu0 %v4258
        %4410 = vmatprep.subr.mxu0 %v4267
        %4411 = vmatpush1.msra.mxu0 %v4266
        %4412 = vmatprep.subr.mxu0 %v4275
        %4413 = vmatpush1.msra.mxu0 %v4274
        %4414 = vmatprep.subr.mxu0 %v4283
        %4415 = vmatpush1.msra.mxu0 %v4282
        %4416 = vmatprep.subr.mxu0 0.0
        %4417 = vmatpush1.msra.mxu0 0.0
        %4418 = vmatprep.subr.mxu0 0.0
        %4419 = vmatpush1.msra.mxu0 0.0
        %4420 = vmatprep.subr.mxu0 0.0
        %4421 = vmatpush1.msra.mxu0 0.0
        %4422 = vmatprep.subr.mxu0 0.0
        %4423 = vmatpush1.msra.mxu0 0.0
        %4424 = vmatprep.subr.mxu0 0.0
        %4425 = vmatpush1.msra.mxu0 0.0
        %4426 = vmatprep.mubr.f32.mxu0 %v4289
        %4427 = vmatmul.mubr.f32.gmra.mrb[0].mxu0 %v4070
        %v4428 = vpop.f32.mrb[0].mxu0
        %v4429 = vadd.f32 0.0, %v4428
        %v4430 = vpop.f32.mrb[0].mxu0
        %v4431 = vadd.f32 0.0, %v4430
        %4432 = vdwg.mxu0
        %4433 = vmatprep.subr.mxu0 %v4077
        %4434 = vmatpush1.msra.mxu0 %v4076
        %4435 = vmatprep.subr.mxu0 %v4085
        %4436 = vmatpush1.msra.mxu0 %v4084
        %4437 = vmatprep.subr.mxu0 %v4093
        %4438 = vmatpush1.msra.mxu0 %v4092
        %4439 = vmatprep.subr.mxu0 %v4101
        %4440 = vmatpush1.msra.mxu0 %v4100
        %4441 = vmatprep.subr.mxu0 %v4109
        %4442 = vmatpush1.msra.mxu0 %v4108
        %4443 = vmatprep.subr.mxu0 %v4117
        %4444 = vmatpush1.msra.mxu0 %v4116
        %4445 = vmatprep.subr.mxu0 %v4125
        %4446 = vmatpush1.msra.mxu0 %v4124
        %4447 = vmatprep.subr.mxu0 %v4133
        %4448 = vmatpush1.msra.mxu0 %v4132
        %4449 = vmatprep.subr.mxu0 %v4141
        %4450 = vmatpush1.msra.mxu0 %v4140
        %4451 = vmatprep.subr.mxu0 %v4149
        %4452 = vmatpush1.msra.mxu0 %v4148
        %4453 = vmatprep.subr.mxu0 %v4157
        %4454 = vmatpush1.msra.mxu0 %v4156
        %4455 = vmatprep.subr.mxu0 %v4165
        %4456 = vmatpush1.msra.mxu0 %v4164
        %4457 = vmatprep.subr.mxu0 %v4173
        %4458 = vmatpush1.msra.mxu0 %v4172
        %4459 = vmatprep.subr.mxu0 %v4181
        %4460 = vmatpush1.msra.mxu0 %v4180
        %4461 = vmatprep.subr.mxu0 %v4189
        %4462 = vmatpush1.msra.mxu0 %v4188
        %4463 = vmatprep.subr.mxu0 %v4197
        %4464 = vmatpush1.msra.mxu0 %v4196
        %4465 = vmatprep.subr.mxu0 %v4205
        %4466 = vmatpush1.msra.mxu0 %v4204
        %4467 = vmatprep.subr.mxu0 %v4213
        %4468 = vmatpush1.msra.mxu0 %v4212
        %4469 = vmatprep.subr.mxu0 %v4221
        %4470 = vmatpush1.msra.mxu0 %v4220
        %4471 = vmatprep.subr.mxu0 %v4229
        %4472 = vmatpush1.msra.mxu0 %v4228
        %4473 = vmatprep.subr.mxu0 %v4237
        %4474 = vmatpush1.msra.mxu0 %v4236
        %4475 = vmatprep.subr.mxu0 %v4245
        %4476 = vmatpush1.msra.mxu0 %v4244
        %4477 = vmatprep.subr.mxu0 %v4253
        %4478 = vmatpush1.msra.mxu0 %v4252
        %4479 = vmatprep.subr.mxu0 %v4261
        %4480 = vmatpush1.msra.mxu0 %v4260
        %4481 = vmatprep.subr.mxu0 %v4269
        %4482 = vmatpush1.msra.mxu0 %v4268
        %4483 = vmatprep.subr.mxu0 %v4277
        %4484 = vmatpush1.msra.mxu0 %v4276
        %4485 = vmatprep.subr.mxu0 %v4285
        %4486 = vmatpush1.msra.mxu0 %v4284
        %4487 = vmatprep.subr.mxu0 0.0
        %4488 = vmatpush1.msra.mxu0 0.0
        %4489 = vmatprep.subr.mxu0 0.0
        %4490 = vmatpush1.msra.mxu0 0.0
        %4491 = vmatprep.subr.mxu0 0.0
        %4492 = vmatpush1.msra.mxu0 0.0
        %4493 = vmatprep.subr.mxu0 0.0
        %4494 = vmatpush1.msra.mxu0 0.0
        %4495 = vmatprep.subr.mxu0 0.0
        %4496 = vmatpush1.msra.mxu0 0.0
        %4497 = vmatprep.mubr.f32.mxu0 %v4289
        %4498 = vmatmul.mubr.f32.gmra.mrb[0].mxu0 %v4070
        %v4499 = vpop.f32.mrb[0].mxu0
        %v4500 = vadd.f32 0.0, %v4499
        %v4501 = vpop.f32.mrb[0].mxu0
        %v4502 = vadd.f32 0.0, %v4501
        %4503 = vdwg.mxu0
        %4504 = vmatprep.subr.mxu0 %v4079
        %4505 = vmatpush1.msra.mxu0 %v4078
        %4506 = vmatprep.subr.mxu0 %v4087
        %4507 = vmatpush1.msra.mxu0 %v4086
        %4508 = vmatprep.subr.mxu0 %v4095
        %4509 = vmatpush1.msra.mxu0 %v4094
        %4510 = vmatprep.subr.mxu0 %v4103
        %4511 = vmatpush1.msra.mxu0 %v4102
        %4512 = vmatprep.subr.mxu0 %v4111
        %4513 = vmatpush1.msra.mxu0 %v4110
        %4514 = vmatprep.subr.mxu0 %v4119
        %4515 = vmatpush1.msra.mxu0 %v4118
        %4516 = vmatprep.subr.mxu0 %v4127
        %4517 = vmatpush1.msra.mxu0 %v4126
        %4518 = vmatprep.subr.mxu0 %v4135
        %4519 = vmatpush1.msra.mxu0 %v4134
        %4520 = vmatprep.subr.mxu0 %v4143
        %4521 = vmatpush1.msra.mxu0 %v4142
        %4522 = vmatprep.subr.mxu0 %v4151
        %4523 = vmatpush1.msra.mxu0 %v4150
        %4524 = vmatprep.subr.mxu0 %v4159
        %4525 = vmatpush1.msra.mxu0 %v4158
        %4526 = vmatprep.subr.mxu0 %v4167
        %4527 = vmatpush1.msra.mxu0 %v4166
        %4528 = vmatprep.subr.mxu0 %v4175
        %4529 = vmatpush1.msra.mxu0 %v4174
        %4530 = vmatprep.subr.mxu0 %v4183
        %4531 = vmatpush1.msra.mxu0 %v4182
        %4532 = vmatprep.subr.mxu0 %v4191
        %4533 = vmatpush1.msra.mxu0 %v4190
        %4534 = vmatprep.subr.mxu0 %v4199
        %4535 = vmatpush1.msra.mxu0 %v4198
        %4536 = vmatprep.subr.mxu0 %v4207
        %4537 = vmatpush1.msra.mxu0 %v4206
        %4538 = vmatprep.subr.mxu0 %v4215
        %4539 = vmatpush1.msra.mxu0 %v4214
        %4540 = vmatprep.subr.mxu0 %v4223
        %4541 = vmatpush1.msra.mxu0 %v4222
        %4542 = vmatprep.subr.mxu0 %v4231
        %4543 = vmatpush1.msra.mxu0 %v4230
        %4544 = vmatprep.subr.mxu0 %v4239
        %4545 = vmatpush1.msra.mxu0 %v4238
        %4546 = vmatprep.subr.mxu0 %v4247
        %4547 = vmatpush1.msra.mxu0 %v4246
        %4548 = vmatprep.subr.mxu0 %v4255
        %4549 = vmatpush1.msra.mxu0 %v4254
        %4550 = vmatprep.subr.mxu0 %v4263
        %4551 = vmatpush1.msra.mxu0 %v4262
        %4552 = vmatprep.subr.mxu0 %v4271
        %4553 = vmatpush1.msra.mxu0 %v4270
        %4554 = vmatprep.subr.mxu0 %v4279
        %4555 = vmatpush1.msra.mxu0 %v4278
        %4556 = vmatprep.subr.mxu0 %v4287
        %4557 = vmatpush1.msra.mxu0 %v4286
        %4558 = vmatprep.subr.mxu0 0.0
        %4559 = vmatpush1.msra.mxu0 0.0
        %4560 = vmatprep.subr.mxu0 0.0
        %4561 = vmatpush1.msra.mxu0 0.0
        %4562 = vmatprep.subr.mxu0 0.0
        %4563 = vmatpush1.msra.mxu0 0.0
        %4564 = vmatprep.subr.mxu0 0.0
        %4565 = vmatpush1.msra.mxu0 0.0
        %4566 = vmatprep.subr.mxu0 0.0
        %4567 = vmatpush1.msra.mxu0 0.0
        %4568 = vmatprep.mubr.f32.mxu0 %v4289
        %4569 = vmatmul.mubr.f32.gmra.mrb[0].mxu0 %v4070
        %v4570 = vpop.f32.mrb[0].mxu0
        %v4571 = vadd.f32 0.0, %v4570
        %v4572 = vpop.f32.mrb[0].mxu0
        %v4573 = vadd.f32 0.0, %v4572
        %4574 = vdwg.mxu0
        %4575 = vst [vmem:[%s215] sm:$0xff] %v4358
        %4576 = vst [vmem:[%s215 + $0x8] sm:$0xff] %v4360
        %4577 = vst [vmem:[%s215 + $0x10] sm:$0xff] %v4429
        %4578 = vst [vmem:[%s215 + $0x18] sm:$0xff] %v4431
        %4579 = vst [vmem:[%s215 + $0x20] sm:$0xff] %v4500
        %4580 = vst [vmem:[%s215 + $0x28] sm:$0xff] %v4502
        %4581 = vst [vmem:[%s215 + $0x30] sm:$0xff] %v4571
        %4582 = vst [vmem:[%s215 + $0x38] sm:$0xff] %v4573
        %s4583 = sand.u32 %s97, 1
        %s4584 = scalar_lea.sflag [#allocation6], %s4583
        %s4585 = sand.u32 %s97, 1
        %s4586 = smul.addr %s4585, 64
        %s4587 = scalar_lea.vmem [#allocation10], %s4586
        // Predicated region
        $region45: #{tpu_custom_call.1} parent=31 // pred_check
          %p4588 = pneg %p107
        $region46: #{tpu_custom_call.1} parent=31 // pred_check_branch
          %4590 = sbr.rel (%p4588) target = $region48
        $region47: #{tpu_custom_call.1} parent=31 // pred_region
          %s4592 = ssub.s32 1024, 1024
          %4593 = vsyncadd %s4584, %s4592
          %s4594 = smul.addr %s21, 8
          %s4595 = smul.addr %s4594, 128
          %s4596 = scalar_lea.hbm %s3, %s4595
          %s4598 = sshll.u32 %s4587, 4
          %s4599 = int_to_ptr.vmem [resolvable:$true] %s4598
          %4601 = dma.vmem_to_hbm [thread:$0]  %s4599, 1024, %s4596, %s4584
        $region48: #{tpu_custom_call.1} parent=31 // pred_fallthru
          _
      $region32: #{tpu_custom_call.1} parent=5 // pred_fallthru
        _
      %p4602 = scmp.le.s32.totalorder 2, %s16
      // Predicated region
      $region49: #{tpu_custom_call.1} parent=5 // pred_check
        %p4603 = pneg %p4602
      $region50: #{tpu_custom_call.1} parent=5 // pred_check_branch
        %4605 = sbr.rel (%p4603) target = $region52
      $region51: #{tpu_custom_call.1} parent=5 // pred_region
        %s4606 = ssub.s32 %s16, 2
        // Predicated region
        $region53: #{tpu_custom_call.1} parent=51 // pred_check
          %p4607 = pneg %p113
        $region54: #{tpu_custom_call.1} parent=51 // pred_check_branch
          %4609 = sbr.rel (%p4607) target = $region56
        $region55: #{tpu_custom_call.1} parent=51 // pred_region
          %s4610 = sand.u32 %s98, 1
          %s4611 = scalar_lea.sflag [#allocation6], %s4610
          %s4612 = sand.u32 %s98, 1
          %s4613 = smul.addr %s4612, 64
          %s4614 = scalar_lea.vmem [#allocation10], %s4613
          %4615 = dma.done %s4611, 1024
        $region56: #{tpu_custom_call.1} parent=51 // pred_fallthru
          _
      $region52: #{tpu_custom_call.1} parent=5 // pred_fallthru
        _
    $region6: #{tpu_custom_call.1} parent=1 // loop_footer
      %s20 = sadd.s32 1, %s16
    $region7: #{tpu_custom_call.1} parent=1 // loop_footer_branch
      %15 = sbr.rel target = $region3
    $region8: #{tpu_custom_call.1} parent=1 // loop_exit
      _
    %4616 = vsyncpa [#allocation5], 1
    %s4617 = scalar_lea.sflag [#allocation5], 1
    %4618 = vsyncpa %s4617, 1
    %4619 = vsyncpa [#allocation8], 1
    %4620 = vsyncpa [#allocation6], 1
    %s4621 = scalar_lea.sflag [#allocation6], 1
    %4622 = vsyncpa %s4621, 1

</llo_original>
